<compile_context>
chip_gen: v6e
topology: v6e:2x2x1
jax: 0.10.0
libtpu: 0.0.40
codegen_flags: <defaults>
</compile_context>

<pallas_src>
import functools

import jax
import jax.numpy as jnp
from jax.experimental import pallas as pl
from jax.experimental.pallas import tpu as pltpu


# ------------------------------------------------------------------ kernel ---


def _decoder_kernel(*refs, n_layer, n_step, hidden):
    """Fused decoder: attention + stacked LSTMCells, full time loop, single invocation.

    refs = (z, wqT, [w_k, b_k] for k in layers ..., out)
      z    : (Bb, S, D)        latent memory bank (this core's batch block)
      wqT  : (D, 2H)           (vstack(Wq_h, Wq_c)).T  -> M = z @ wqT, loop-invariant
      w_k  : (Din_k+H, 4H)     vstack(W_ih, W_hh), gate columns reordered to (i, f, o, g)
      b_k  : (1, 4H)           b_ih + b_hh, same column order
      out  : (1, Bb, n_step*H) lane-dense output slab (reshaped to (B, n_step, H) outside)
    """
    z_ref, wq_ref = refs[0], refs[1]
    w_refs = [refs[2 + 2 * k] for k in range(n_layer)]
    b_refs = [refs[3 + 2 * k] for k in range(n_layer)]
    out_ref = refs[2 + 2 * n_layer]

    # ---- load everything once; the unrolled loop reuses the loaded values --------------
    z = z_ref[...]                                           # (Bb, S, D)
    wqT = wq_ref[...]                                        # (D, 2H)
    ws = [w_refs[k][...] for k in range(n_layer)]            # (Din_k+H, 4H)
    batch = z.shape[0]

    # [R7] hoist the bias sublane-broadcasts out of the unrolled time loop.
    bs = [jnp.broadcast_to(b_refs[k][...], (batch, 4 * hidden)) for k in range(n_layer)]

    # [R1] loop-invariant preamble: M[b, s, :] = z[b, s, :] @ wqT  (== z . Wq^T).
    # Done as per-batch 2-D MXU matmuls (B is tiny & static); cost is off the serial chain.
    M = jnp.stack(
        [jnp.dot(z[b], wqT, preferred_element_type=jnp.float32) for b in range(batch)],
        axis=0)                                              # (Bb, S, 2H)
    m_h = M[:, :, :hidden]                                   # h-part of cat(h, c)
    m_c = M[:, :, hidden:]                                   # c-part of cat(h, c)

    h = [jnp.zeros((batch, hidden), jnp.float32) for _ in range(n_layer)]
    c = [jnp.zeros((batch, hidden), jnp.float32) for _ in range(n_layer)]

    for t in range(n_step):                                  # static trip count -> unrolled
        # --- SimpleGlobalAttention (no per-step matmul, no per-step concat) --------------
        # scores[b,s] = <z[b,s], Wq^T cat(h,c)[b]> = sum_j h[b,j]*Mh[b,s,j] + c[b,j]*Mc[b,s,j]
        scores = jnp.sum(h[0][:, None, :] * m_h + c[0][:, None, :] * m_c, axis=-1)  # (Bb,S)
        scores = scores - jnp.max(scores, axis=-1, keepdims=True)
        e = jnp.exp(scores)
        attn = e * (1.0 / jnp.sum(e, axis=-1, keepdims=True))          # exact softmax
        x = jnp.sum(attn[:, :, None] * z, axis=1)                      # (Bb, D) context

        # --- stacked LSTM cells (layer 0 eats the context, layers k>0 eat h_{k-1}) -------
        # NOTE: gate weights stay as a merged cat(x,h) jnp.dot; explicit MXU staging
        # (matmul_push_rhs/acc_lhs/pop) was evaluated but skipped for cross-chip safety.
        for k in range(n_layer):
            xh = jnp.concatenate([x, h[k]], axis=-1)                   # (Bb, Din_k + H)
            gates = jnp.dot(xh, ws[k], preferred_element_type=jnp.float32) + bs[k]
            # [R4] columns are (i, f, o, g): one sigmoid over 3H, one tanh over H.
            sig = jax.nn.sigmoid(gates[:, :3 * hidden])
            i_g = sig[:, 0 * hidden:1 * hidden]
            f_g = sig[:, 1 * hidden:2 * hidden]
            o_g = sig[:, 2 * hidden:3 * hidden]
            g_g = jnp.tanh(gates[:, 3 * hidden:4 * hidden])
            c[k] = f_g * c[k] + i_g * g_g
            h[k] = o_g * jnp.tanh(c[k])
            x = h[k]                                                   # feeds next layer

        # [R6] direct lane-slice store into the VMEM output block (single HBM DMA at end).
        out_ref[0, :, t * hidden:(t + 1) * hidden] = h[n_layer - 1]


# ----------------------------------------------------------------- wrapper ---


def self_attentive_lstm_decoder(z_latent, params, n_step):
    """z_latent: (B, S, D) float32 -> (B, n_step, H) float32."""
    B, S, D = z_latent.shape
    H = params[0]["w_hh"].shape[0]
    n_layer = len(params)

    def reorder_gates(m):
        # PyTorch LSTMCell column order (i, f, g, o) -> kernel order (i, f, o, g).
        return jnp.concatenate(
            [m[..., :2 * H], m[..., 3 * H:4 * H], m[..., 2 * H:3 * H]], axis=-1)

    # Merge / permute weights once, outside the kernel.
    p0 = params[0]
    wqT = jnp.concatenate([p0["wq_h"], p0["wq_c"]], axis=0).T            # (D, 2H)

    inputs = [z_latent, wqT]
    in_specs = [
        pl.BlockSpec((None, S, D), None),   # placeholder, replaced below once Bb is known
        pl.BlockSpec((D, 2 * H), lambda i: (0, 0)),
    ]
    for p in params:
        d_in = p["w_ih"].shape[0]
        w = reorder_gates(jnp.concatenate([p["w_ih"], p["w_hh"]], axis=0))  # (d_in+H, 4H)
        b = reorder_gates(p["b"])                                           # (1, 4H)
        inputs += [w, b]
        in_specs += [
            pl.BlockSpec((d_in + H, 4 * H), lambda i: (0, 0)),
            pl.BlockSpec((1, 4 * H), lambda i: (0, 0)),
        ]

    # [R5] Batch-parallel grid across TensorCores on v7x only (2 TC/chip); on v5e/v6e the
    # grid collapses to a single step, i.e. the proven gridless behaviour.
    try:
        kind = jax.devices()[0].device_kind.lower()
    except Exception:  # pragma: no cover - defensive
        kind = ""
    num_cores = 2 if (("v7" in kind or "7x" in kind) and B % 2 == 0) else 1
    Bb = B // num_cores
    in_specs[0] = pl.BlockSpec((Bb, S, D), lambda i: (i, 0, 0))

    out_shape = jax.ShapeDtypeStruct((num_cores, Bb, n_step * H), jnp.float32)
    out_specs = pl.BlockSpec((1, Bb, n_step * H), lambda i: (i, 0, 0))

    kernel = pl.pallas_call(
        functools.partial(_decoder_kernel, n_layer=n_layer, n_step=n_step, hidden=H),
        grid=(num_cores,),
        in_specs=in_specs,
        out_specs=out_specs,
        out_shape=out_shape,
        compiler_params=pltpu.CompilerParams(dimension_semantics=("parallel",)),
    )
    out = kernel(*inputs)
    # (G, Bb, n_step*H) -> (B, n_step, H): row-major compatible, free reshape.
    return out.reshape(B, n_step, H)


# --------------------------------------------------------------- reference ---


def reference_decoder(z_latent, params, n_step):
    """Pure-JAX replica of the PyTorch forward() for correctness checking."""
    B = z_latent.shape[0]
    H = params[0]["w_hh"].shape[0]
    lst_h = [None] * n_step
    for k, p in enumerate(params):
        h = jnp.zeros((B, H), jnp.float32)
        c = jnp.zeros((B, H), jnp.float32)
        for t in range(n_step):
            if k == 0:
                q_proj = h @ p["wq_h"] + c @ p["wq_c"]
                scores = jnp.einsum("bsd,bd->bs", z_latent, q_proj)
                attn = jax.nn.softmax(scores, axis=-1)
                x = jnp.einsum("bs,bsd->bd", attn, z_latent)
            else:
                x = lst_h[t]
            gates = x @ p["w_ih"] + h @ p["w_hh"] + p["b"]
            i_g = jax.nn.sigmoid(gates[:, 0 * H:1 * H])
            f_g = jax.nn.sigmoid(gates[:, 1 * H:2 * H])
            g_g = jnp.tanh(gates[:, 2 * H:3 * H])
            o_g = jax.nn.sigmoid(gates[:, 3 * H:4 * H])
            c = f_g * c + i_g * g_g
            h = o_g * jnp.tanh(c)
            lst_h[t] = h
    return jnp.stack(lst_h, axis=1)


# -------------------------------------------------------------------- main ---


def init_params(key, n_dim_lstm_hidden, n_dim_lstm_input, n_lstm_layer):
    """Deterministic synthetic parameters; shapes follow nn.LSTMCell / Linear(2H->D, bias=False)."""
    H, D = n_dim_lstm_hidden, n_dim_lstm_input
    params = []
    bound = 1.0 / jnp.sqrt(H).astype(jnp.float32)
    for k in range(n_lstm_layer):
        key, *sub = jax.random.split(key, 7)
        d_in = D if k == 0 else H
        p = {
            # LSTMCell weights, pre-transposed to (in, 4H); bias = bias_ih + bias_hh
            "w_ih": jax.random.uniform(sub[0], (d_in, 4 * H), jnp.float32, -bound, bound),
            "w_hh": jax.random.uniform(sub[1], (H, 4 * H), jnp.float32, -bound, bound),
            "b": jax.random.uniform(sub[2], (1, 4 * H), jnp.float32, -bound, bound),
        }
        if k == 0:
            # SimpleGlobalAttention query projection Linear(2H -> D, bias=False),
            # split into the h-part and c-part of cat(h, c).
            p["wq_h"] = jax.random.uniform(sub[3], (H, D), jnp.float32, -bound, bound)
            p["wq_c"] = jax.random.uniform(sub[4], (H, D), jnp.float32, -bound, bound)
        params.append(p)
    return params


if __name__ == "__main__":
    B, S, D, H = 4, 8, 16, 32          # batch, n_sample, n_dim_latent (= lstm input), lstm hidden
    N_STEP, N_LAYER = 8, 2

    key = jax.random.PRNGKey(0)
    key_z, key_p = jax.random.split(key)
    z_latent = jax.random.normal(key_z, (B, S, D), jnp.float32)
    params = init_params(key_p, H, D, N_LAYER)

    out = self_attentive_lstm_decoder(z_latent, params, N_STEP)
    out = jax.block_until_ready(out)

    ref = reference_decoder(z_latent, params, N_STEP)
    assert out.shape == (B, N_STEP, H), out.shape
    max_err = float(jnp.max(jnp.abs(out - ref)))
    assert jnp.allclose(out, ref, atol=1e-4, rtol=1e-4), max_err

    print("KERNEL_OK")
</pallas_src>

<mosaic_0001>
module attributes {stable_mosaic.version = 11 : i64} {
  func.func @_decoder_kernel(%arg0: i32, %arg1: memref<4x8x16xf32, #tpu.memory_space<vmem>>, %arg2: memref<16x64xf32, #tpu.memory_space<vmem>>, %arg3: memref<48x128xf32, #tpu.memory_space<vmem>>, %arg4: memref<1x128xf32, #tpu.memory_space<vmem>>, %arg5: memref<64x128xf32, #tpu.memory_space<vmem>>, %arg6: memref<1x128xf32, #tpu.memory_space<vmem>>, %arg7: memref<1x4x256xf32, #tpu.memory_space<vmem>>) attributes {dimension_semantics = [#tpu.dimension_semantics<parallel>], iteration_bounds = array<i64: 1>, scalar_prefetch = 0 : i64, scratch_operands = 0 : i64, tpu.core_type = #tpu.core_type<tc>, window_params = [{transform_indices = @transform_0, window_bounds = array<i64: 4, 8, 16>}, {pipeline_mode = #tpu.pipeline_mode<synchronous>, transform_indices = @transform_1, window_bounds = array<i64: 16, 64>}, {pipeline_mode = #tpu.pipeline_mode<synchronous>, transform_indices = @transform_2, window_bounds = array<i64: 48, 128>}, {pipeline_mode = #tpu.pipeline_mode<synchronous>, transform_indices = @transform_3, window_bounds = array<i64: 1, 128>}, {pipeline_mode = #tpu.pipeline_mode<synchronous>, transform_indices = @transform_4, window_bounds = array<i64: 64, 128>}, {pipeline_mode = #tpu.pipeline_mode<synchronous>, transform_indices = @transform_5, window_bounds = array<i64: 1, 128>}, {transform_indices = @transform_6, window_bounds = array<i64: 1, 4, 256>}]} {
    %c0 = arith.constant 0 : index
    %c0_0 = arith.constant 0 : index
    %c0_1 = arith.constant 0 : index
    %0 = vector.load %arg1[%c0, %c0_0, %c0_1] : memref<4x8x16xf32, #tpu.memory_space<vmem>>, vector<4x8x16xf32>
    %c0_2 = arith.constant 0 : index
    %c0_3 = arith.constant 0 : index
    %1 = vector.load %arg2[%c0_2, %c0_3] : memref<16x64xf32, #tpu.memory_space<vmem>>, vector<16x64xf32>
    %c0_4 = arith.constant 0 : index
    %c0_5 = arith.constant 0 : index
    %2 = vector.load %arg3[%c0_4, %c0_5] : memref<48x128xf32, #tpu.memory_space<vmem>>, vector<48x128xf32>
    %c0_6 = arith.constant 0 : index
    %c0_7 = arith.constant 0 : index
    %3 = vector.load %arg5[%c0_6, %c0_7] : memref<64x128xf32, #tpu.memory_space<vmem>>, vector<64x128xf32>
    %c0_8 = arith.constant 0 : index
    %c0_9 = arith.constant 0 : index
    %4 = vector.load %arg4[%c0_8, %c0_9] : memref<1x128xf32, #tpu.memory_space<vmem>>, vector<1x128xf32>
    %5 = vector.shape_cast %4 : vector<1x128xf32> to vector<1x128xf32>
    %6 = vector.broadcast %5 : vector<1x128xf32> to vector<4x128xf32>
    %c0_10 = arith.constant 0 : index
    %c0_11 = arith.constant 0 : index
    %7 = vector.load %arg6[%c0_10, %c0_11] : memref<1x128xf32, #tpu.memory_space<vmem>>, vector<1x128xf32>
    %8 = vector.shape_cast %7 : vector<1x128xf32> to vector<1x128xf32>
    %9 = vector.broadcast %8 : vector<1x128xf32> to vector<4x128xf32>
    %10 = vector.extract_strided_slice %0 {offsets = [0, 0, 0], sizes = [1, 8, 16], strides = [1, 1, 1]} : vector<4x8x16xf32> to vector<1x8x16xf32>
    %11 = vector.shape_cast %10 : vector<1x8x16xf32> to vector<8x16xf32>
    %cst = arith.constant dense<0.000000e+00> : vector<8x64xf32>
    %12 = tpu.matmul %11, %1, %cst {dimension_numbers = #tpu.dot_dimension_numbers<[1], [0], [0], [1], [0, 0, 1, 1], [], []>} : vector<8x16xf32>, vector<16x64xf32>, vector<8x64xf32> -> vector<8x64xf32>
    %13 = vector.extract_strided_slice %0 {offsets = [1, 0, 0], sizes = [1, 8, 16], strides = [1, 1, 1]} : vector<4x8x16xf32> to vector<1x8x16xf32>
    %14 = vector.shape_cast %13 : vector<1x8x16xf32> to vector<8x16xf32>
    %cst_12 = arith.constant dense<0.000000e+00> : vector<8x64xf32>
    %15 = tpu.matmul %14, %1, %cst_12 {dimension_numbers = #tpu.dot_dimension_numbers<[1], [0], [0], [1], [0, 0, 1, 1], [], []>} : vector<8x16xf32>, vector<16x64xf32>, vector<8x64xf32> -> vector<8x64xf32>
    %16 = vector.extract_strided_slice %0 {offsets = [2, 0, 0], sizes = [1, 8, 16], strides = [1, 1, 1]} : vector<4x8x16xf32> to vector<1x8x16xf32>
    %17 = vector.shape_cast %16 : vector<1x8x16xf32> to vector<8x16xf32>
    %cst_13 = arith.constant dense<0.000000e+00> : vector<8x64xf32>
    %18 = tpu.matmul %17, %1, %cst_13 {dimension_numbers = #tpu.dot_dimension_numbers<[1], [0], [0], [1], [0, 0, 1, 1], [], []>} : vector<8x16xf32>, vector<16x64xf32>, vector<8x64xf32> -> vector<8x64xf32>
    %19 = vector.extract_strided_slice %0 {offsets = [3, 0, 0], sizes = [1, 8, 16], strides = [1, 1, 1]} : vector<4x8x16xf32> to vector<1x8x16xf32>
    %20 = vector.shape_cast %19 : vector<1x8x16xf32> to vector<8x16xf32>
    %cst_14 = arith.constant dense<0.000000e+00> : vector<8x64xf32>
    %21 = tpu.matmul %20, %1, %cst_14 {dimension_numbers = #tpu.dot_dimension_numbers<[1], [0], [0], [1], [0, 0, 1, 1], [], []>} : vector<8x16xf32>, vector<16x64xf32>, vector<8x64xf32> -> vector<8x64xf32>
    %22 = vector.shape_cast %12 : vector<8x64xf32> to vector<1x8x64xf32>
    %23 = vector.shape_cast %15 : vector<8x64xf32> to vector<1x8x64xf32>
    %24 = vector.shape_cast %18 : vector<8x64xf32> to vector<1x8x64xf32>
    %25 = vector.shape_cast %21 : vector<8x64xf32> to vector<1x8x64xf32>
    %26 = tpu.concatenate %22, %23, %24, %25 in 0 : vector<1x8x64xf32>, vector<1x8x64xf32>, vector<1x8x64xf32>, vector<1x8x64xf32> -> vector<4x8x64xf32>
    %27 = vector.extract_strided_slice %26 {offsets = [0, 0, 0], sizes = [4, 8, 32], strides = [1, 1, 1]} : vector<4x8x64xf32> to vector<4x8x32xf32>
    %28 = vector.extract_strided_slice %26 {offsets = [0, 0, 32], sizes = [4, 8, 32], strides = [1, 1, 1]} : vector<4x8x64xf32> to vector<4x8x32xf32>
    %cst_15 = arith.constant 0.000000e+00 : f32
    %29 = vector.broadcast %cst_15 : f32 to vector<4x32xf32>
    %cst_16 = arith.constant 0.000000e+00 : f32
    %30 = vector.broadcast %cst_16 : f32 to vector<4x32xf32>
    %cst_17 = arith.constant 0.000000e+00 : f32
    %31 = vector.broadcast %cst_17 : f32 to vector<4x32xf32>
    %cst_18 = arith.constant 0.000000e+00 : f32
    %32 = vector.broadcast %cst_18 : f32 to vector<4x32xf32>
    %33 = vector.shape_cast %29 : vector<4x32xf32> to vector<4x1x32xf32>
    %34 = vector.broadcast %33 : vector<4x1x32xf32> to vector<4x8x32xf32>
    %35 = arith.mulf %34, %27 : vector<4x8x32xf32>
    %36 = vector.shape_cast %31 : vector<4x32xf32> to vector<4x1x32xf32>
    %37 = vector.broadcast %36 : vector<4x1x32xf32> to vector<4x8x32xf32>
    %38 = arith.mulf %37, %28 : vector<4x8x32xf32>
    %39 = arith.addf %35, %38 : vector<4x8x32xf32>
    %cst_19 = arith.constant dense<0.000000e+00> : vector<4x8xf32>
    %40 = vector.multi_reduction <add>, %39, %cst_19 [2] : vector<4x8x32xf32> to vector<4x8xf32>
    %cst_20 = arith.constant dense<0xFF800000> : vector<4xf32>
    %41 = vector.multi_reduction <maximumf>, %40, %cst_20 [1] : vector<4x8xf32> to vector<4xf32>
    %42 = vector.shape_cast %41 : vector<4xf32> to vector<4x1xf32>
    %43 = vector.broadcast %42 : vector<4x1xf32> to vector<4x8xf32>
    %44 = arith.subf %40, %43 : vector<4x8xf32>
    %45 = math.exp %44 : vector<4x8xf32>
    %cst_21 = arith.constant dense<0.000000e+00> : vector<4xf32>
    %46 = vector.multi_reduction <add>, %45, %cst_21 [1] : vector<4x8xf32> to vector<4xf32>
    %47 = vector.shape_cast %46 : vector<4xf32> to vector<4x1xf32>
    %cst_22 = arith.constant 1.000000e+00 : f32
    %48 = vector.broadcast %cst_22 : f32 to vector<4x1xf32>
    %49 = arith.divf %48, %47 : vector<4x1xf32>
    %50 = vector.broadcast %49 : vector<4x1xf32> to vector<4x8xf32>
    %51 = arith.mulf %45, %50 : vector<4x8xf32>
    %52 = vector.shape_cast %51 : vector<4x8xf32> to vector<4x8x1xf32>
    %53 = vector.broadcast %52 : vector<4x8x1xf32> to vector<4x8x16xf32>
    %54 = arith.mulf %53, %0 : vector<4x8x16xf32>
    %cst_23 = arith.constant dense<0.000000e+00> : vector<4x16xf32>
    %55 = vector.multi_reduction <add>, %54, %cst_23 [1] : vector<4x8x16xf32> to vector<4x16xf32>
    %56 = tpu.concatenate %55, %29 in 1 : vector<4x16xf32>, vector<4x32xf32> -> vector<4x48xf32>
    %cst_24 = arith.constant dense<0.000000e+00> : vector<4x128xf32>
    %57 = tpu.matmul %56, %2, %cst_24 {dimension_numbers = #tpu.dot_dimension_numbers<[1], [0], [0], [1], [0, 0, 1, 1], [], []>} : vector<4x48xf32>, vector<48x128xf32>, vector<4x128xf32> -> vector<4x128xf32>
    %58 = arith.addf %57, %6 : vector<4x128xf32>
    %59 = vector.extract_strided_slice %58 {offsets = [0, 0], sizes = [4, 96], strides = [1, 1]} : vector<4x128xf32> to vector<4x96xf32>
    %60 = arith.negf %59 : vector<4x96xf32>
    %61 = math.exp %60 : vector<4x96xf32>
    %cst_25 = arith.constant 1.000000e+00 : f32
    %62 = vector.broadcast %cst_25 : f32 to vector<4x96xf32>
    %63 = arith.addf %62, %61 : vector<4x96xf32>
    %64 = arith.divf %62, %63 : vector<4x96xf32>
    %65 = vector.extract_strided_slice %64 {offsets = [0, 0], sizes = [4, 32], strides = [1, 1]} : vector<4x96xf32> to vector<4x32xf32>
    %66 = vector.extract_strided_slice %64 {offsets = [0, 32], sizes = [4, 32], strides = [1, 1]} : vector<4x96xf32> to vector<4x32xf32>
    %67 = vector.extract_strided_slice %64 {offsets = [0, 64], sizes = [4, 32], strides = [1, 1]} : vector<4x96xf32> to vector<4x32xf32>
    %68 = vector.extract_strided_slice %58 {offsets = [0, 96], sizes = [4, 32], strides = [1, 1]} : vector<4x128xf32> to vector<4x32xf32>
    %69 = math.tanh %68 : vector<4x32xf32>
    %70 = arith.mulf %66, %31 : vector<4x32xf32>
    %71 = arith.mulf %65, %69 : vector<4x32xf32>
    %72 = arith.addf %70, %71 : vector<4x32xf32>
    %73 = math.tanh %72 : vector<4x32xf32>
    %74 = arith.mulf %67, %73 : vector<4x32xf32>
    %75 = tpu.concatenate %74, %30 in 1 : vector<4x32xf32>, vector<4x32xf32> -> vector<4x64xf32>
    %cst_26 = arith.constant dense<0.000000e+00> : vector<4x128xf32>
    %76 = tpu.matmul %75, %3, %cst_26 {dimension_numbers = #tpu.dot_dimension_numbers<[1], [0], [0], [1], [0, 0, 1, 1], [], []>} : vector<4x64xf32>, vector<64x128xf32>, vector<4x128xf32> -> vector<4x128xf32>
    %77 = arith.addf %76, %9 : vector<4x128xf32>
    %78 = vector.extract_strided_slice %77 {offsets = [0, 0], sizes = [4, 96], strides = [1, 1]} : vector<4x128xf32> to vector<4x96xf32>
    %79 = arith.negf %78 : vector<4x96xf32>
    %80 = math.exp %79 : vector<4x96xf32>
    %cst_27 = arith.constant 1.000000e+00 : f32
    %81 = vector.broadcast %cst_27 : f32 to vector<4x96xf32>
    %82 = arith.addf %81, %80 : vector<4x96xf32>
    %83 = arith.divf %81, %82 : vector<4x96xf32>
    %84 = vector.extract_strided_slice %83 {offsets = [0, 0], sizes = [4, 32], strides = [1, 1]} : vector<4x96xf32> to vector<4x32xf32>
    %85 = vector.extract_strided_slice %83 {offsets = [0, 32], sizes = [4, 32], strides = [1, 1]} : vector<4x96xf32> to vector<4x32xf32>
    %86 = vector.extract_strided_slice %83 {offsets = [0, 64], sizes = [4, 32], strides = [1, 1]} : vector<4x96xf32> to vector<4x32xf32>
    %87 = vector.extract_strided_slice %77 {offsets = [0, 96], sizes = [4, 32], strides = [1, 1]} : vector<4x128xf32> to vector<4x32xf32>
    %88 = math.tanh %87 : vector<4x32xf32>
    %89 = arith.mulf %85, %32 : vector<4x32xf32>
    %90 = arith.mulf %84, %88 : vector<4x32xf32>
    %91 = arith.addf %89, %90 : vector<4x32xf32>
    %92 = math.tanh %91 : vector<4x32xf32>
    %93 = arith.mulf %86, %92 : vector<4x32xf32>
    %c0_28 = arith.constant 0 : index
    %c0_29 = arith.constant 0 : index
    %c0_30 = arith.constant 0 : index
    %94 = vector.load %arg7[%c0_28, %c0_29, %c0_30] : memref<1x4x256xf32, #tpu.memory_space<vmem>>, vector<1x4x32xf32>
    %95 = vector.shape_cast %94 : vector<1x4x32xf32> to vector<4x32xf32>
    %96 = vector.shape_cast %93 : vector<4x32xf32> to vector<1x4x32xf32>
    tpu.vector_store %arg7[%c0_28, %c0_29, %c0_30], %96 {strides = array<i32>} : memref<1x4x256xf32, #tpu.memory_space<vmem>>, vector<1x4x32xf32>,
    %97 = vector.shape_cast %74 : vector<4x32xf32> to vector<4x1x32xf32>
    %98 = vector.broadcast %97 : vector<4x1x32xf32> to vector<4x8x32xf32>
    %99 = arith.mulf %98, %27 : vector<4x8x32xf32>
    %100 = vector.shape_cast %72 : vector<4x32xf32> to vector<4x1x32xf32>
    %101 = vector.broadcast %100 : vector<4x1x32xf32> to vector<4x8x32xf32>
    %102 = arith.mulf %101, %28 : vector<4x8x32xf32>
    %103 = arith.addf %99, %102 : vector<4x8x32xf32>
    %cst_31 = arith.constant dense<0.000000e+00> : vector<4x8xf32>
    %104 = vector.multi_reduction <add>, %103, %cst_31 [2] : vector<4x8x32xf32> to vector<4x8xf32>
    %cst_32 = arith.constant dense<0xFF800000> : vector<4xf32>
    %105 = vector.multi_reduction <maximumf>, %104, %cst_32 [1] : vector<4x8xf32> to vector<4xf32>
    %106 = vector.shape_cast %105 : vector<4xf32> to vector<4x1xf32>
    %107 = vector.broadcast %106 : vector<4x1xf32> to vector<4x8xf32>
    %108 = arith.subf %104, %107 : vector<4x8xf32>
    %109 = math.exp %108 : vector<4x8xf32>
    %cst_33 = arith.constant dense<0.000000e+00> : vector<4xf32>
    %110 = vector.multi_reduction <add>, %109, %cst_33 [1] : vector<4x8xf32> to vector<4xf32>
    %111 = vector.shape_cast %110 : vector<4xf32> to vector<4x1xf32>
    %cst_34 = arith.constant 1.000000e+00 : f32
    %112 = vector.broadcast %cst_34 : f32 to vector<4x1xf32>
    %113 = arith.divf %112, %111 : vector<4x1xf32>
    %114 = vector.broadcast %113 : vector<4x1xf32> to vector<4x8xf32>
    %115 = arith.mulf %109, %114 : vector<4x8xf32>
    %116 = vector.shape_cast %115 : vector<4x8xf32> to vector<4x8x1xf32>
    %117 = vector.broadcast %116 : vector<4x8x1xf32> to vector<4x8x16xf32>
    %118 = arith.mulf %117, %0 : vector<4x8x16xf32>
    %cst_35 = arith.constant dense<0.000000e+00> : vector<4x16xf32>
    %119 = vector.multi_reduction <add>, %118, %cst_35 [1] : vector<4x8x16xf32> to vector<4x16xf32>
    %120 = tpu.concatenate %119, %74 in 1 : vector<4x16xf32>, vector<4x32xf32> -> vector<4x48xf32>
    %cst_36 = arith.constant dense<0.000000e+00> : vector<4x128xf32>
    %121 = tpu.matmul %120, %2, %cst_36 {dimension_numbers = #tpu.dot_dimension_numbers<[1], [0], [0], [1], [0, 0, 1, 1], [], []>} : vector<4x48xf32>, vector<48x128xf32>, vector<4x128xf32> -> vector<4x128xf32>
    %122 = arith.addf %121, %6 : vector<4x128xf32>
    %123 = vector.extract_strided_slice %122 {offsets = [0, 0], sizes = [4, 96], strides = [1, 1]} : vector<4x128xf32> to vector<4x96xf32>
    %124 = arith.negf %123 : vector<4x96xf32>
    %125 = math.exp %124 : vector<4x96xf32>
    %cst_37 = arith.constant 1.000000e+00 : f32
    %126 = vector.broadcast %cst_37 : f32 to vector<4x96xf32>
    %127 = arith.addf %126, %125 : vector<4x96xf32>
    %128 = arith.divf %126, %127 : vector<4x96xf32>
    %129 = vector.extract_strided_slice %128 {offsets = [0, 0], sizes = [4, 32], strides = [1, 1]} : vector<4x96xf32> to vector<4x32xf32>
    %130 = vector.extract_strided_slice %128 {offsets = [0, 32], sizes = [4, 32], strides = [1, 1]} : vector<4x96xf32> to vector<4x32xf32>
    %131 = vector.extract_strided_slice %128 {offsets = [0, 64], sizes = [4, 32], strides = [1, 1]} : vector<4x96xf32> to vector<4x32xf32>
    %132 = vector.extract_strided_slice %122 {offsets = [0, 96], sizes = [4, 32], strides = [1, 1]} : vector<4x128xf32> to vector<4x32xf32>
    %133 = math.tanh %132 : vector<4x32xf32>
    %134 = arith.mulf %130, %72 : vector<4x32xf32>
    %135 = arith.mulf %129, %133 : vector<4x32xf32>
    %136 = arith.addf %134, %135 : vector<4x32xf32>
    %137 = math.tanh %136 : vector<4x32xf32>
    %138 = arith.mulf %131, %137 : vector<4x32xf32>
    %139 = tpu.concatenate %138, %93 in 1 : vector<4x32xf32>, vector<4x32xf32> -> vector<4x64xf32>
    %cst_38 = arith.constant dense<0.000000e+00> : vector<4x128xf32>
    %140 = tpu.matmul %139, %3, %cst_38 {dimension_numbers = #tpu.dot_dimension_numbers<[1], [0], [0], [1], [0, 0, 1, 1], [], []>} : vector<4x64xf32>, vector<64x128xf32>, vector<4x128xf32> -> vector<4x128xf32>
    %141 = arith.addf %140, %9 : vector<4x128xf32>
    %142 = vector.extract_strided_slice %141 {offsets = [0, 0], sizes = [4, 96], strides = [1, 1]} : vector<4x128xf32> to vector<4x96xf32>
    %143 = arith.negf %142 : vector<4x96xf32>
    %144 = math.exp %143 : vector<4x96xf32>
    %cst_39 = arith.constant 1.000000e+00 : f32
    %145 = vector.broadcast %cst_39 : f32 to vector<4x96xf32>
    %146 = arith.addf %145, %144 : vector<4x96xf32>
    %147 = arith.divf %145, %146 : vector<4x96xf32>
    %148 = vector.extract_strided_slice %147 {offsets = [0, 0], sizes = [4, 32], strides = [1, 1]} : vector<4x96xf32> to vector<4x32xf32>
    %149 = vector.extract_strided_slice %147 {offsets = [0, 32], sizes = [4, 32], strides = [1, 1]} : vector<4x96xf32> to vector<4x32xf32>
    %150 = vector.extract_strided_slice %147 {offsets = [0, 64], sizes = [4, 32], strides = [1, 1]} : vector<4x96xf32> to vector<4x32xf32>
    %151 = vector.extract_strided_slice %141 {offsets = [0, 96], sizes = [4, 32], strides = [1, 1]} : vector<4x128xf32> to vector<4x32xf32>
    %152 = math.tanh %151 : vector<4x32xf32>
    %153 = arith.mulf %149, %91 : vector<4x32xf32>
    %154 = arith.mulf %148, %152 : vector<4x32xf32>
    %155 = arith.addf %153, %154 : vector<4x32xf32>
    %156 = math.tanh %155 : vector<4x32xf32>
    %157 = arith.mulf %150, %156 : vector<4x32xf32>
    %c0_40 = arith.constant 0 : index
    %c0_41 = arith.constant 0 : index
    %c32 = arith.constant 32 : index
    %158 = vector.load %arg7[%c0_40, %c0_41, %c32] : memref<1x4x256xf32, #tpu.memory_space<vmem>>, vector<1x4x32xf32>
    %159 = vector.shape_cast %158 : vector<1x4x32xf32> to vector<4x32xf32>
    %160 = vector.shape_cast %157 : vector<4x32xf32> to vector<1x4x32xf32>
    tpu.vector_store %arg7[%c0_40, %c0_41, %c32], %160 {strides = array<i32>} : memref<1x4x256xf32, #tpu.memory_space<vmem>>, vector<1x4x32xf32>,
    %161 = vector.shape_cast %138 : vector<4x32xf32> to vector<4x1x32xf32>
    %162 = vector.broadcast %161 : vector<4x1x32xf32> to vector<4x8x32xf32>
    %163 = arith.mulf %162, %27 : vector<4x8x32xf32>
    %164 = vector.shape_cast %136 : vector<4x32xf32> to vector<4x1x32xf32>
    %165 = vector.broadcast %164 : vector<4x1x32xf32> to vector<4x8x32xf32>
    %166 = arith.mulf %165, %28 : vector<4x8x32xf32>
    %167 = arith.addf %163, %166 : vector<4x8x32xf32>
    %cst_42 = arith.constant dense<0.000000e+00> : vector<4x8xf32>
    %168 = vector.multi_reduction <add>, %167, %cst_42 [2] : vector<4x8x32xf32> to vector<4x8xf32>
    %cst_43 = arith.constant dense<0xFF800000> : vector<4xf32>
    %169 = vector.multi_reduction <maximumf>, %168, %cst_43 [1] : vector<4x8xf32> to vector<4xf32>
    %170 = vector.shape_cast %169 : vector<4xf32> to vector<4x1xf32>
    %171 = vector.broadcast %170 : vector<4x1xf32> to vector<4x8xf32>
    %172 = arith.subf %168, %171 : vector<4x8xf32>
    %173 = math.exp %172 : vector<4x8xf32>
    %cst_44 = arith.constant dense<0.000000e+00> : vector<4xf32>
    %174 = vector.multi_reduction <add>, %173, %cst_44 [1] : vector<4x8xf32> to vector<4xf32>
    %175 = vector.shape_cast %174 : vector<4xf32> to vector<4x1xf32>
    %cst_45 = arith.constant 1.000000e+00 : f32
    %176 = vector.broadcast %cst_45 : f32 to vector<4x1xf32>
    %177 = arith.divf %176, %175 : vector<4x1xf32>
    %178 = vector.broadcast %177 : vector<4x1xf32> to vector<4x8xf32>
    %179 = arith.mulf %173, %178 : vector<4x8xf32>
    %180 = vector.shape_cast %179 : vector<4x8xf32> to vector<4x8x1xf32>
    %181 = vector.broadcast %180 : vector<4x8x1xf32> to vector<4x8x16xf32>
    %182 = arith.mulf %181, %0 : vector<4x8x16xf32>
    %cst_46 = arith.constant dense<0.000000e+00> : vector<4x16xf32>
    %183 = vector.multi_reduction <add>, %182, %cst_46 [1] : vector<4x8x16xf32> to vector<4x16xf32>
    %184 = tpu.concatenate %183, %138 in 1 : vector<4x16xf32>, vector<4x32xf32> -> vector<4x48xf32>
    %cst_47 = arith.constant dense<0.000000e+00> : vector<4x128xf32>
    %185 = tpu.matmul %184, %2, %cst_47 {dimension_numbers = #tpu.dot_dimension_numbers<[1], [0], [0], [1], [0, 0, 1, 1], [], []>} : vector<4x48xf32>, vector<48x128xf32>, vector<4x128xf32> -> vector<4x128xf32>
    %186 = arith.addf %185, %6 : vector<4x128xf32>
    %187 = vector.extract_strided_slice %186 {offsets = [0, 0], sizes = [4, 96], strides = [1, 1]} : vector<4x128xf32> to vector<4x96xf32>
    %188 = arith.negf %187 : vector<4x96xf32>
    %189 = math.exp %188 : vector<4x96xf32>
    %cst_48 = arith.constant 1.000000e+00 : f32
    %190 = vector.broadcast %cst_48 : f32 to vector<4x96xf32>
    %191 = arith.addf %190, %189 : vector<4x96xf32>
    %192 = arith.divf %190, %191 : vector<4x96xf32>
    %193 = vector.extract_strided_slice %192 {offsets = [0, 0], sizes = [4, 32], strides = [1, 1]} : vector<4x96xf32> to vector<4x32xf32>
    %194 = vector.extract_strided_slice %192 {offsets = [0, 32], sizes = [4, 32], strides = [1, 1]} : vector<4x96xf32> to vector<4x32xf32>
    %195 = vector.extract_strided_slice %192 {offsets = [0, 64], sizes = [4, 32], strides = [1, 1]} : vector<4x96xf32> to vector<4x32xf32>
    %196 = vector.extract_strided_slice %186 {offsets = [0, 96], sizes = [4, 32], strides = [1, 1]} : vector<4x128xf32> to vector<4x32xf32>
    %197 = math.tanh %196 : vector<4x32xf32>
    %198 = arith.mulf %194, %136 : vector<4x32xf32>
    %199 = arith.mulf %193, %197 : vector<4x32xf32>
    %200 = arith.addf %198, %199 : vector<4x32xf32>
    %201 = math.tanh %200 : vector<4x32xf32>
    %202 = arith.mulf %195, %201 : vector<4x32xf32>
    %203 = tpu.concatenate %202, %157 in 1 : vector<4x32xf32>, vector<4x32xf32> -> vector<4x64xf32>
    %cst_49 = arith.constant dense<0.000000e+00> : vector<4x128xf32>
    %204 = tpu.matmul %203, %3, %cst_49 {dimension_numbers = #tpu.dot_dimension_numbers<[1], [0], [0], [1], [0, 0, 1, 1], [], []>} : vector<4x64xf32>, vector<64x128xf32>, vector<4x128xf32> -> vector<4x128xf32>
    %205 = arith.addf %204, %9 : vector<4x128xf32>
    %206 = vector.extract_strided_slice %205 {offsets = [0, 0], sizes = [4, 96], strides = [1, 1]} : vector<4x128xf32> to vector<4x96xf32>
    %207 = arith.negf %206 : vector<4x96xf32>
    %208 = math.exp %207 : vector<4x96xf32>
    %cst_50 = arith.constant 1.000000e+00 : f32
    %209 = vector.broadcast %cst_50 : f32 to vector<4x96xf32>
    %210 = arith.addf %209, %208 : vector<4x96xf32>
    %211 = arith.divf %209, %210 : vector<4x96xf32>
    %212 = vector.extract_strided_slice %211 {offsets = [0, 0], sizes = [4, 32], strides = [1, 1]} : vector<4x96xf32> to vector<4x32xf32>
    %213 = vector.extract_strided_slice %211 {offsets = [0, 32], sizes = [4, 32], strides = [1, 1]} : vector<4x96xf32> to vector<4x32xf32>
    %214 = vector.extract_strided_slice %211 {offsets = [0, 64], sizes = [4, 32], strides = [1, 1]} : vector<4x96xf32> to vector<4x32xf32>
    %215 = vector.extract_strided_slice %205 {offsets = [0, 96], sizes = [4, 32], strides = [1, 1]} : vector<4x128xf32> to vector<4x32xf32>
    %216 = math.tanh %215 : vector<4x32xf32>
    %217 = arith.mulf %213, %155 : vector<4x32xf32>
    %218 = arith.mulf %212, %216 : vector<4x32xf32>
    %219 = arith.addf %217, %218 : vector<4x32xf32>
    %220 = math.tanh %219 : vector<4x32xf32>
    %221 = arith.mulf %214, %220 : vector<4x32xf32>
    %c0_51 = arith.constant 0 : index
    %c0_52 = arith.constant 0 : index
    %c64 = arith.constant 64 : index
    %222 = vector.load %arg7[%c0_51, %c0_52, %c64] : memref<1x4x256xf32, #tpu.memory_space<vmem>>, vector<1x4x32xf32>
    %223 = vector.shape_cast %222 : vector<1x4x32xf32> to vector<4x32xf32>
    %224 = vector.shape_cast %221 : vector<4x32xf32> to vector<1x4x32xf32>
    tpu.vector_store %arg7[%c0_51, %c0_52, %c64], %224 {strides = array<i32>} : memref<1x4x256xf32, #tpu.memory_space<vmem>>, vector<1x4x32xf32>,
    %225 = vector.shape_cast %202 : vector<4x32xf32> to vector<4x1x32xf32>
    %226 = vector.broadcast %225 : vector<4x1x32xf32> to vector<4x8x32xf32>
    %227 = arith.mulf %226, %27 : vector<4x8x32xf32>
    %228 = vector.shape_cast %200 : vector<4x32xf32> to vector<4x1x32xf32>
    %229 = vector.broadcast %228 : vector<4x1x32xf32> to vector<4x8x32xf32>
    %230 = arith.mulf %229, %28 : vector<4x8x32xf32>
    %231 = arith.addf %227, %230 : vector<4x8x32xf32>
    %cst_53 = arith.constant dense<0.000000e+00> : vector<4x8xf32>
    %232 = vector.multi_reduction <add>, %231, %cst_53 [2] : vector<4x8x32xf32> to vector<4x8xf32>
    %cst_54 = arith.constant dense<0xFF800000> : vector<4xf32>
    %233 = vector.multi_reduction <maximumf>, %232, %cst_54 [1] : vector<4x8xf32> to vector<4xf32>
    %234 = vector.shape_cast %233 : vector<4xf32> to vector<4x1xf32>
    %235 = vector.broadcast %234 : vector<4x1xf32> to vector<4x8xf32>
    %236 = arith.subf %232, %235 : vector<4x8xf32>
    %237 = math.exp %236 : vector<4x8xf32>
    %cst_55 = arith.constant dense<0.000000e+00> : vector<4xf32>
    %238 = vector.multi_reduction <add>, %237, %cst_55 [1] : vector<4x8xf32> to vector<4xf32>
    %239 = vector.shape_cast %238 : vector<4xf32> to vector<4x1xf32>
    %cst_56 = arith.constant 1.000000e+00 : f32
    %240 = vector.broadcast %cst_56 : f32 to vector<4x1xf32>
    %241 = arith.divf %240, %239 : vector<4x1xf32>
    %242 = vector.broadcast %241 : vector<4x1xf32> to vector<4x8xf32>
    %243 = arith.mulf %237, %242 : vector<4x8xf32>
    %244 = vector.shape_cast %243 : vector<4x8xf32> to vector<4x8x1xf32>
    %245 = vector.broadcast %244 : vector<4x8x1xf32> to vector<4x8x16xf32>
    %246 = arith.mulf %245, %0 : vector<4x8x16xf32>
    %cst_57 = arith.constant dense<0.000000e+00> : vector<4x16xf32>
    %247 = vector.multi_reduction <add>, %246, %cst_57 [1] : vector<4x8x16xf32> to vector<4x16xf32>
    %248 = tpu.concatenate %247, %202 in 1 : vector<4x16xf32>, vector<4x32xf32> -> vector<4x48xf32>
    %cst_58 = arith.constant dense<0.000000e+00> : vector<4x128xf32>
    %249 = tpu.matmul %248, %2, %cst_58 {dimension_numbers = #tpu.dot_dimension_numbers<[1], [0], [0], [1], [0, 0, 1, 1], [], []>} : vector<4x48xf32>, vector<48x128xf32>, vector<4x128xf32> -> vector<4x128xf32>
    %250 = arith.addf %249, %6 : vector<4x128xf32>
    %251 = vector.extract_strided_slice %250 {offsets = [0, 0], sizes = [4, 96], strides = [1, 1]} : vector<4x128xf32> to vector<4x96xf32>
    %252 = arith.negf %251 : vector<4x96xf32>
    %253 = math.exp %252 : vector<4x96xf32>
    %cst_59 = arith.constant 1.000000e+00 : f32
    %254 = vector.broadcast %cst_59 : f32 to vector<4x96xf32>
    %255 = arith.addf %254, %253 : vector<4x96xf32>
    %256 = arith.divf %254, %255 : vector<4x96xf32>
    %257 = vector.extract_strided_slice %256 {offsets = [0, 0], sizes = [4, 32], strides = [1, 1]} : vector<4x96xf32> to vector<4x32xf32>
    %258 = vector.extract_strided_slice %256 {offsets = [0, 32], sizes = [4, 32], strides = [1, 1]} : vector<4x96xf32> to vector<4x32xf32>
    %259 = vector.extract_strided_slice %256 {offsets = [0, 64], sizes = [4, 32], strides = [1, 1]} : vector<4x96xf32> to vector<4x32xf32>
    %260 = vector.extract_strided_slice %250 {offsets = [0, 96], sizes = [4, 32], strides = [1, 1]} : vector<4x128xf32> to vector<4x32xf32>
    %261 = math.tanh %260 : vector<4x32xf32>
    %262 = arith.mulf %258, %200 : vector<4x32xf32>
    %263 = arith.mulf %257, %261 : vector<4x32xf32>
    %264 = arith.addf %262, %263 : vector<4x32xf32>
    %265 = math.tanh %264 : vector<4x32xf32>
    %266 = arith.mulf %259, %265 : vector<4x32xf32>
    %267 = tpu.concatenate %266, %221 in 1 : vector<4x32xf32>, vector<4x32xf32> -> vector<4x64xf32>
    %cst_60 = arith.constant dense<0.000000e+00> : vector<4x128xf32>
    %268 = tpu.matmul %267, %3, %cst_60 {dimension_numbers = #tpu.dot_dimension_numbers<[1], [0], [0], [1], [0, 0, 1, 1], [], []>} : vector<4x64xf32>, vector<64x128xf32>, vector<4x128xf32> -> vector<4x128xf32>
    %269 = arith.addf %268, %9 : vector<4x128xf32>
    %270 = vector.extract_strided_slice %269 {offsets = [0, 0], sizes = [4, 96], strides = [1, 1]} : vector<4x128xf32> to vector<4x96xf32>
    %271 = arith.negf %270 : vector<4x96xf32>
    %272 = math.exp %271 : vector<4x96xf32>
    %cst_61 = arith.constant 1.000000e+00 : f32
    %273 = vector.broadcast %cst_61 : f32 to vector<4x96xf32>
    %274 = arith.addf %273, %272 : vector<4x96xf32>
    %275 = arith.divf %273, %274 : vector<4x96xf32>
    %276 = vector.extract_strided_slice %275 {offsets = [0, 0], sizes = [4, 32], strides = [1, 1]} : vector<4x96xf32> to vector<4x32xf32>
    %277 = vector.extract_strided_slice %275 {offsets = [0, 32], sizes = [4, 32], strides = [1, 1]} : vector<4x96xf32> to vector<4x32xf32>
    %278 = vector.extract_strided_slice %275 {offsets = [0, 64], sizes = [4, 32], strides = [1, 1]} : vector<4x96xf32> to vector<4x32xf32>
    %279 = vector.extract_strided_slice %269 {offsets = [0, 96], sizes = [4, 32], strides = [1, 1]} : vector<4x128xf32> to vector<4x32xf32>
    %280 = math.tanh %279 : vector<4x32xf32>
    %281 = arith.mulf %277, %219 : vector<4x32xf32>
    %282 = arith.mulf %276, %280 : vector<4x32xf32>
    %283 = arith.addf %281, %282 : vector<4x32xf32>
    %284 = math.tanh %283 : vector<4x32xf32>
    %285 = arith.mulf %278, %284 : vector<4x32xf32>
    %c0_62 = arith.constant 0 : index
    %c0_63 = arith.constant 0 : index
    %c96 = arith.constant 96 : index
    %286 = vector.load %arg7[%c0_62, %c0_63, %c96] : memref<1x4x256xf32, #tpu.memory_space<vmem>>, vector<1x4x32xf32>
    %287 = vector.shape_cast %286 : vector<1x4x32xf32> to vector<4x32xf32>
    %288 = vector.shape_cast %285 : vector<4x32xf32> to vector<1x4x32xf32>
    tpu.vector_store %arg7[%c0_62, %c0_63, %c96], %288 {strides = array<i32>} : memref<1x4x256xf32, #tpu.memory_space<vmem>>, vector<1x4x32xf32>,
    %289 = vector.shape_cast %266 : vector<4x32xf32> to vector<4x1x32xf32>
    %290 = vector.broadcast %289 : vector<4x1x32xf32> to vector<4x8x32xf32>
    %291 = arith.mulf %290, %27 : vector<4x8x32xf32>
    %292 = vector.shape_cast %264 : vector<4x32xf32> to vector<4x1x32xf32>
    %293 = vector.broadcast %292 : vector<4x1x32xf32> to vector<4x8x32xf32>
    %294 = arith.mulf %293, %28 : vector<4x8x32xf32>
    %295 = arith.addf %291, %294 : vector<4x8x32xf32>
    %cst_64 = arith.constant dense<0.000000e+00> : vector<4x8xf32>
    %296 = vector.multi_reduction <add>, %295, %cst_64 [2] : vector<4x8x32xf32> to vector<4x8xf32>
    %cst_65 = arith.constant dense<0xFF800000> : vector<4xf32>
    %297 = vector.multi_reduction <maximumf>, %296, %cst_65 [1] : vector<4x8xf32> to vector<4xf32>
    %298 = vector.shape_cast %297 : vector<4xf32> to vector<4x1xf32>
    %299 = vector.broadcast %298 : vector<4x1xf32> to vector<4x8xf32>
    %300 = arith.subf %296, %299 : vector<4x8xf32>
    %301 = math.exp %300 : vector<4x8xf32>
    %cst_66 = arith.constant dense<0.000000e+00> : vector<4xf32>
    %302 = vector.multi_reduction <add>, %301, %cst_66 [1] : vector<4x8xf32> to vector<4xf32>
    %303 = vector.shape_cast %302 : vector<4xf32> to vector<4x1xf32>
    %cst_67 = arith.constant 1.000000e+00 : f32
    %304 = vector.broadcast %cst_67 : f32 to vector<4x1xf32>
    %305 = arith.divf %304, %303 : vector<4x1xf32>
    %306 = vector.broadcast %305 : vector<4x1xf32> to vector<4x8xf32>
    %307 = arith.mulf %301, %306 : vector<4x8xf32>
    %308 = vector.shape_cast %307 : vector<4x8xf32> to vector<4x8x1xf32>
    %309 = vector.broadcast %308 : vector<4x8x1xf32> to vector<4x8x16xf32>
    %310 = arith.mulf %309, %0 : vector<4x8x16xf32>
    %cst_68 = arith.constant dense<0.000000e+00> : vector<4x16xf32>
    %311 = vector.multi_reduction <add>, %310, %cst_68 [1] : vector<4x8x16xf32> to vector<4x16xf32>
    %312 = tpu.concatenate %311, %266 in 1 : vector<4x16xf32>, vector<4x32xf32> -> vector<4x48xf32>
    %cst_69 = arith.constant dense<0.000000e+00> : vector<4x128xf32>
    %313 = tpu.matmul %312, %2, %cst_69 {dimension_numbers = #tpu.dot_dimension_numbers<[1], [0], [0], [1], [0, 0, 1, 1], [], []>} : vector<4x48xf32>, vector<48x128xf32>, vector<4x128xf32> -> vector<4x128xf32>
    %314 = arith.addf %313, %6 : vector<4x128xf32>
    %315 = vector.extract_strided_slice %314 {offsets = [0, 0], sizes = [4, 96], strides = [1, 1]} : vector<4x128xf32> to vector<4x96xf32>
    %316 = arith.negf %315 : vector<4x96xf32>
    %317 = math.exp %316 : vector<4x96xf32>
    %cst_70 = arith.constant 1.000000e+00 : f32
    %318 = vector.broadcast %cst_70 : f32 to vector<4x96xf32>
    %319 = arith.addf %318, %317 : vector<4x96xf32>
    %320 = arith.divf %318, %319 : vector<4x96xf32>
    %321 = vector.extract_strided_slice %320 {offsets = [0, 0], sizes = [4, 32], strides = [1, 1]} : vector<4x96xf32> to vector<4x32xf32>
    %322 = vector.extract_strided_slice %320 {offsets = [0, 32], sizes = [4, 32], strides = [1, 1]} : vector<4x96xf32> to vector<4x32xf32>
    %323 = vector.extract_strided_slice %320 {offsets = [0, 64], sizes = [4, 32], strides = [1, 1]} : vector<4x96xf32> to vector<4x32xf32>
    %324 = vector.extract_strided_slice %314 {offsets = [0, 96], sizes = [4, 32], strides = [1, 1]} : vector<4x128xf32> to vector<4x32xf32>
    %325 = math.tanh %324 : vector<4x32xf32>
    %326 = arith.mulf %322, %264 : vector<4x32xf32>
    %327 = arith.mulf %321, %325 : vector<4x32xf32>
    %328 = arith.addf %326, %327 : vector<4x32xf32>
    %329 = math.tanh %328 : vector<4x32xf32>
    %330 = arith.mulf %323, %329 : vector<4x32xf32>
    %331 = tpu.concatenate %330, %285 in 1 : vector<4x32xf32>, vector<4x32xf32> -> vector<4x64xf32>
    %cst_71 = arith.constant dense<0.000000e+00> : vector<4x128xf32>
    %332 = tpu.matmul %331, %3, %cst_71 {dimension_numbers = #tpu.dot_dimension_numbers<[1], [0], [0], [1], [0, 0, 1, 1], [], []>} : vector<4x64xf32>, vector<64x128xf32>, vector<4x128xf32> -> vector<4x128xf32>
    %333 = arith.addf %332, %9 : vector<4x128xf32>
    %334 = vector.extract_strided_slice %333 {offsets = [0, 0], sizes = [4, 96], strides = [1, 1]} : vector<4x128xf32> to vector<4x96xf32>
    %335 = arith.negf %334 : vector<4x96xf32>
    %336 = math.exp %335 : vector<4x96xf32>
    %cst_72 = arith.constant 1.000000e+00 : f32
    %337 = vector.broadcast %cst_72 : f32 to vector<4x96xf32>
    %338 = arith.addf %337, %336 : vector<4x96xf32>
    %339 = arith.divf %337, %338 : vector<4x96xf32>
    %340 = vector.extract_strided_slice %339 {offsets = [0, 0], sizes = [4, 32], strides = [1, 1]} : vector<4x96xf32> to vector<4x32xf32>
    %341 = vector.extract_strided_slice %339 {offsets = [0, 32], sizes = [4, 32], strides = [1, 1]} : vector<4x96xf32> to vector<4x32xf32>
    %342 = vector.extract_strided_slice %339 {offsets = [0, 64], sizes = [4, 32], strides = [1, 1]} : vector<4x96xf32> to vector<4x32xf32>
    %343 = vector.extract_strided_slice %333 {offsets = [0, 96], sizes = [4, 32], strides = [1, 1]} : vector<4x128xf32> to vector<4x32xf32>
    %344 = math.tanh %343 : vector<4x32xf32>
    %345 = arith.mulf %341, %283 : vector<4x32xf32>
    %346 = arith.mulf %340, %344 : vector<4x32xf32>
    %347 = arith.addf %345, %346 : vector<4x32xf32>
    %348 = math.tanh %347 : vector<4x32xf32>
    %349 = arith.mulf %342, %348 : vector<4x32xf32>
    %c0_73 = arith.constant 0 : index
    %c0_74 = arith.constant 0 : index
    %c128 = arith.constant 128 : index
    %350 = vector.load %arg7[%c0_73, %c0_74, %c128] : memref<1x4x256xf32, #tpu.memory_space<vmem>>, vector<1x4x32xf32>
    %351 = vector.shape_cast %350 : vector<1x4x32xf32> to vector<4x32xf32>
    %352 = vector.shape_cast %349 : vector<4x32xf32> to vector<1x4x32xf32>
    tpu.vector_store %arg7[%c0_73, %c0_74, %c128], %352 {strides = array<i32>} : memref<1x4x256xf32, #tpu.memory_space<vmem>>, vector<1x4x32xf32>,
    %353 = vector.shape_cast %330 : vector<4x32xf32> to vector<4x1x32xf32>
    %354 = vector.broadcast %353 : vector<4x1x32xf32> to vector<4x8x32xf32>
    %355 = arith.mulf %354, %27 : vector<4x8x32xf32>
    %356 = vector.shape_cast %328 : vector<4x32xf32> to vector<4x1x32xf32>
    %357 = vector.broadcast %356 : vector<4x1x32xf32> to vector<4x8x32xf32>
    %358 = arith.mulf %357, %28 : vector<4x8x32xf32>
    %359 = arith.addf %355, %358 : vector<4x8x32xf32>
    %cst_75 = arith.constant dense<0.000000e+00> : vector<4x8xf32>
    %360 = vector.multi_reduction <add>, %359, %cst_75 [2] : vector<4x8x32xf32> to vector<4x8xf32>
    %cst_76 = arith.constant dense<0xFF800000> : vector<4xf32>
    %361 = vector.multi_reduction <maximumf>, %360, %cst_76 [1] : vector<4x8xf32> to vector<4xf32>
    %362 = vector.shape_cast %361 : vector<4xf32> to vector<4x1xf32>
    %363 = vector.broadcast %362 : vector<4x1xf32> to vector<4x8xf32>
    %364 = arith.subf %360, %363 : vector<4x8xf32>
    %365 = math.exp %364 : vector<4x8xf32>
    %cst_77 = arith.constant dense<0.000000e+00> : vector<4xf32>
    %366 = vector.multi_reduction <add>, %365, %cst_77 [1] : vector<4x8xf32> to vector<4xf32>
    %367 = vector.shape_cast %366 : vector<4xf32> to vector<4x1xf32>
    %cst_78 = arith.constant 1.000000e+00 : f32
    %368 = vector.broadcast %cst_78 : f32 to vector<4x1xf32>
    %369 = arith.divf %368, %367 : vector<4x1xf32>
    %370 = vector.broadcast %369 : vector<4x1xf32> to vector<4x8xf32>
    %371 = arith.mulf %365, %370 : vector<4x8xf32>
    %372 = vector.shape_cast %371 : vector<4x8xf32> to vector<4x8x1xf32>
    %373 = vector.broadcast %372 : vector<4x8x1xf32> to vector<4x8x16xf32>
    %374 = arith.mulf %373, %0 : vector<4x8x16xf32>
    %cst_79 = arith.constant dense<0.000000e+00> : vector<4x16xf32>
    %375 = vector.multi_reduction <add>, %374, %cst_79 [1] : vector<4x8x16xf32> to vector<4x16xf32>
    %376 = tpu.concatenate %375, %330 in 1 : vector<4x16xf32>, vector<4x32xf32> -> vector<4x48xf32>
    %cst_80 = arith.constant dense<0.000000e+00> : vector<4x128xf32>
    %377 = tpu.matmul %376, %2, %cst_80 {dimension_numbers = #tpu.dot_dimension_numbers<[1], [0], [0], [1], [0, 0, 1, 1], [], []>} : vector<4x48xf32>, vector<48x128xf32>, vector<4x128xf32> -> vector<4x128xf32>
    %378 = arith.addf %377, %6 : vector<4x128xf32>
    %379 = vector.extract_strided_slice %378 {offsets = [0, 0], sizes = [4, 96], strides = [1, 1]} : vector<4x128xf32> to vector<4x96xf32>
    %380 = arith.negf %379 : vector<4x96xf32>
    %381 = math.exp %380 : vector<4x96xf32>
    %cst_81 = arith.constant 1.000000e+00 : f32
    %382 = vector.broadcast %cst_81 : f32 to vector<4x96xf32>
    %383 = arith.addf %382, %381 : vector<4x96xf32>
    %384 = arith.divf %382, %383 : vector<4x96xf32>
    %385 = vector.extract_strided_slice %384 {offsets = [0, 0], sizes = [4, 32], strides = [1, 1]} : vector<4x96xf32> to vector<4x32xf32>
    %386 = vector.extract_strided_slice %384 {offsets = [0, 32], sizes = [4, 32], strides = [1, 1]} : vector<4x96xf32> to vector<4x32xf32>
    %387 = vector.extract_strided_slice %384 {offsets = [0, 64], sizes = [4, 32], strides = [1, 1]} : vector<4x96xf32> to vector<4x32xf32>
    %388 = vector.extract_strided_slice %378 {offsets = [0, 96], sizes = [4, 32], strides = [1, 1]} : vector<4x128xf32> to vector<4x32xf32>
    %389 = math.tanh %388 : vector<4x32xf32>
    %390 = arith.mulf %386, %328 : vector<4x32xf32>
    %391 = arith.mulf %385, %389 : vector<4x32xf32>
    %392 = arith.addf %390, %391 : vector<4x32xf32>
    %393 = math.tanh %392 : vector<4x32xf32>
    %394 = arith.mulf %387, %393 : vector<4x32xf32>
    %395 = tpu.concatenate %394, %349 in 1 : vector<4x32xf32>, vector<4x32xf32> -> vector<4x64xf32>
    %cst_82 = arith.constant dense<0.000000e+00> : vector<4x128xf32>
    %396 = tpu.matmul %395, %3, %cst_82 {dimension_numbers = #tpu.dot_dimension_numbers<[1], [0], [0], [1], [0, 0, 1, 1], [], []>} : vector<4x64xf32>, vector<64x128xf32>, vector<4x128xf32> -> vector<4x128xf32>
    %397 = arith.addf %396, %9 : vector<4x128xf32>
    %398 = vector.extract_strided_slice %397 {offsets = [0, 0], sizes = [4, 96], strides = [1, 1]} : vector<4x128xf32> to vector<4x96xf32>
    %399 = arith.negf %398 : vector<4x96xf32>
    %400 = math.exp %399 : vector<4x96xf32>
    %cst_83 = arith.constant 1.000000e+00 : f32
    %401 = vector.broadcast %cst_83 : f32 to vector<4x96xf32>
    %402 = arith.addf %401, %400 : vector<4x96xf32>
    %403 = arith.divf %401, %402 : vector<4x96xf32>
    %404 = vector.extract_strided_slice %403 {offsets = [0, 0], sizes = [4, 32], strides = [1, 1]} : vector<4x96xf32> to vector<4x32xf32>
    %405 = vector.extract_strided_slice %403 {offsets = [0, 32], sizes = [4, 32], strides = [1, 1]} : vector<4x96xf32> to vector<4x32xf32>
    %406 = vector.extract_strided_slice %403 {offsets = [0, 64], sizes = [4, 32], strides = [1, 1]} : vector<4x96xf32> to vector<4x32xf32>
    %407 = vector.extract_strided_slice %397 {offsets = [0, 96], sizes = [4, 32], strides = [1, 1]} : vector<4x128xf32> to vector<4x32xf32>
    %408 = math.tanh %407 : vector<4x32xf32>
    %409 = arith.mulf %405, %347 : vector<4x32xf32>
    %410 = arith.mulf %404, %408 : vector<4x32xf32>
    %411 = arith.addf %409, %410 : vector<4x32xf32>
    %412 = math.tanh %411 : vector<4x32xf32>
    %413 = arith.mulf %406, %412 : vector<4x32xf32>
    %c0_84 = arith.constant 0 : index
    %c0_85 = arith.constant 0 : index
    %c160 = arith.constant 160 : index
    %414 = vector.load %arg7[%c0_84, %c0_85, %c160] : memref<1x4x256xf32, #tpu.memory_space<vmem>>, vector<1x4x32xf32>
    %415 = vector.shape_cast %414 : vector<1x4x32xf32> to vector<4x32xf32>
    %416 = vector.shape_cast %413 : vector<4x32xf32> to vector<1x4x32xf32>
    tpu.vector_store %arg7[%c0_84, %c0_85, %c160], %416 {strides = array<i32>} : memref<1x4x256xf32, #tpu.memory_space<vmem>>, vector<1x4x32xf32>,
    %417 = vector.shape_cast %394 : vector<4x32xf32> to vector<4x1x32xf32>
    %418 = vector.broadcast %417 : vector<4x1x32xf32> to vector<4x8x32xf32>
    %419 = arith.mulf %418, %27 : vector<4x8x32xf32>
    %420 = vector.shape_cast %392 : vector<4x32xf32> to vector<4x1x32xf32>
    %421 = vector.broadcast %420 : vector<4x1x32xf32> to vector<4x8x32xf32>
    %422 = arith.mulf %421, %28 : vector<4x8x32xf32>
    %423 = arith.addf %419, %422 : vector<4x8x32xf32>
    %cst_86 = arith.constant dense<0.000000e+00> : vector<4x8xf32>
    %424 = vector.multi_reduction <add>, %423, %cst_86 [2] : vector<4x8x32xf32> to vector<4x8xf32>
    %cst_87 = arith.constant dense<0xFF800000> : vector<4xf32>
    %425 = vector.multi_reduction <maximumf>, %424, %cst_87 [1] : vector<4x8xf32> to vector<4xf32>
    %426 = vector.shape_cast %425 : vector<4xf32> to vector<4x1xf32>
    %427 = vector.broadcast %426 : vector<4x1xf32> to vector<4x8xf32>
    %428 = arith.subf %424, %427 : vector<4x8xf32>
    %429 = math.exp %428 : vector<4x8xf32>
    %cst_88 = arith.constant dense<0.000000e+00> : vector<4xf32>
    %430 = vector.multi_reduction <add>, %429, %cst_88 [1] : vector<4x8xf32> to vector<4xf32>
    %431 = vector.shape_cast %430 : vector<4xf32> to vector<4x1xf32>
    %cst_89 = arith.constant 1.000000e+00 : f32
    %432 = vector.broadcast %cst_89 : f32 to vector<4x1xf32>
    %433 = arith.divf %432, %431 : vector<4x1xf32>
    %434 = vector.broadcast %433 : vector<4x1xf32> to vector<4x8xf32>
    %435 = arith.mulf %429, %434 : vector<4x8xf32>
    %436 = vector.shape_cast %435 : vector<4x8xf32> to vector<4x8x1xf32>
    %437 = vector.broadcast %436 : vector<4x8x1xf32> to vector<4x8x16xf32>
    %438 = arith.mulf %437, %0 : vector<4x8x16xf32>
    %cst_90 = arith.constant dense<0.000000e+00> : vector<4x16xf32>
    %439 = vector.multi_reduction <add>, %438, %cst_90 [1] : vector<4x8x16xf32> to vector<4x16xf32>
    %440 = tpu.concatenate %439, %394 in 1 : vector<4x16xf32>, vector<4x32xf32> -> vector<4x48xf32>
    %cst_91 = arith.constant dense<0.000000e+00> : vector<4x128xf32>
    %441 = tpu.matmul %440, %2, %cst_91 {dimension_numbers = #tpu.dot_dimension_numbers<[1], [0], [0], [1], [0, 0, 1, 1], [], []>} : vector<4x48xf32>, vector<48x128xf32>, vector<4x128xf32> -> vector<4x128xf32>
    %442 = arith.addf %441, %6 : vector<4x128xf32>
    %443 = vector.extract_strided_slice %442 {offsets = [0, 0], sizes = [4, 96], strides = [1, 1]} : vector<4x128xf32> to vector<4x96xf32>
    %444 = arith.negf %443 : vector<4x96xf32>
    %445 = math.exp %444 : vector<4x96xf32>
    %cst_92 = arith.constant 1.000000e+00 : f32
    %446 = vector.broadcast %cst_92 : f32 to vector<4x96xf32>
    %447 = arith.addf %446, %445 : vector<4x96xf32>
    %448 = arith.divf %446, %447 : vector<4x96xf32>
    %449 = vector.extract_strided_slice %448 {offsets = [0, 0], sizes = [4, 32], strides = [1, 1]} : vector<4x96xf32> to vector<4x32xf32>
    %450 = vector.extract_strided_slice %448 {offsets = [0, 32], sizes = [4, 32], strides = [1, 1]} : vector<4x96xf32> to vector<4x32xf32>
    %451 = vector.extract_strided_slice %448 {offsets = [0, 64], sizes = [4, 32], strides = [1, 1]} : vector<4x96xf32> to vector<4x32xf32>
    %452 = vector.extract_strided_slice %442 {offsets = [0, 96], sizes = [4, 32], strides = [1, 1]} : vector<4x128xf32> to vector<4x32xf32>
    %453 = math.tanh %452 : vector<4x32xf32>
    %454 = arith.mulf %450, %392 : vector<4x32xf32>
    %455 = arith.mulf %449, %453 : vector<4x32xf32>
    %456 = arith.addf %454, %455 : vector<4x32xf32>
    %457 = math.tanh %456 : vector<4x32xf32>
    %458 = arith.mulf %451, %457 : vector<4x32xf32>
    %459 = tpu.concatenate %458, %413 in 1 : vector<4x32xf32>, vector<4x32xf32> -> vector<4x64xf32>
    %cst_93 = arith.constant dense<0.000000e+00> : vector<4x128xf32>
    %460 = tpu.matmul %459, %3, %cst_93 {dimension_numbers = #tpu.dot_dimension_numbers<[1], [0], [0], [1], [0, 0, 1, 1], [], []>} : vector<4x64xf32>, vector<64x128xf32>, vector<4x128xf32> -> vector<4x128xf32>
    %461 = arith.addf %460, %9 : vector<4x128xf32>
    %462 = vector.extract_strided_slice %461 {offsets = [0, 0], sizes = [4, 96], strides = [1, 1]} : vector<4x128xf32> to vector<4x96xf32>
    %463 = arith.negf %462 : vector<4x96xf32>
    %464 = math.exp %463 : vector<4x96xf32>
    %cst_94 = arith.constant 1.000000e+00 : f32
    %465 = vector.broadcast %cst_94 : f32 to vector<4x96xf32>
    %466 = arith.addf %465, %464 : vector<4x96xf32>
    %467 = arith.divf %465, %466 : vector<4x96xf32>
    %468 = vector.extract_strided_slice %467 {offsets = [0, 0], sizes = [4, 32], strides = [1, 1]} : vector<4x96xf32> to vector<4x32xf32>
    %469 = vector.extract_strided_slice %467 {offsets = [0, 32], sizes = [4, 32], strides = [1, 1]} : vector<4x96xf32> to vector<4x32xf32>
    %470 = vector.extract_strided_slice %467 {offsets = [0, 64], sizes = [4, 32], strides = [1, 1]} : vector<4x96xf32> to vector<4x32xf32>
    %471 = vector.extract_strided_slice %461 {offsets = [0, 96], sizes = [4, 32], strides = [1, 1]} : vector<4x128xf32> to vector<4x32xf32>
    %472 = math.tanh %471 : vector<4x32xf32>
    %473 = arith.mulf %469, %411 : vector<4x32xf32>
    %474 = arith.mulf %468, %472 : vector<4x32xf32>
    %475 = arith.addf %473, %474 : vector<4x32xf32>
    %476 = math.tanh %475 : vector<4x32xf32>
    %477 = arith.mulf %470, %476 : vector<4x32xf32>
    %c0_95 = arith.constant 0 : index
    %c0_96 = arith.constant 0 : index
    %c192 = arith.constant 192 : index
    %478 = vector.load %arg7[%c0_95, %c0_96, %c192] : memref<1x4x256xf32, #tpu.memory_space<vmem>>, vector<1x4x32xf32>
    %479 = vector.shape_cast %478 : vector<1x4x32xf32> to vector<4x32xf32>
    %480 = vector.shape_cast %477 : vector<4x32xf32> to vector<1x4x32xf32>
    tpu.vector_store %arg7[%c0_95, %c0_96, %c192], %480 {strides = array<i32>} : memref<1x4x256xf32, #tpu.memory_space<vmem>>, vector<1x4x32xf32>,
    %481 = vector.shape_cast %458 : vector<4x32xf32> to vector<4x1x32xf32>
    %482 = vector.broadcast %481 : vector<4x1x32xf32> to vector<4x8x32xf32>
    %483 = arith.mulf %482, %27 : vector<4x8x32xf32>
    %484 = vector.shape_cast %456 : vector<4x32xf32> to vector<4x1x32xf32>
    %485 = vector.broadcast %484 : vector<4x1x32xf32> to vector<4x8x32xf32>
    %486 = arith.mulf %485, %28 : vector<4x8x32xf32>
    %487 = arith.addf %483, %486 : vector<4x8x32xf32>
    %cst_97 = arith.constant dense<0.000000e+00> : vector<4x8xf32>
    %488 = vector.multi_reduction <add>, %487, %cst_97 [2] : vector<4x8x32xf32> to vector<4x8xf32>
    %cst_98 = arith.constant dense<0xFF800000> : vector<4xf32>
    %489 = vector.multi_reduction <maximumf>, %488, %cst_98 [1] : vector<4x8xf32> to vector<4xf32>
    %490 = vector.shape_cast %489 : vector<4xf32> to vector<4x1xf32>
    %491 = vector.broadcast %490 : vector<4x1xf32> to vector<4x8xf32>
    %492 = arith.subf %488, %491 : vector<4x8xf32>
    %493 = math.exp %492 : vector<4x8xf32>
    %cst_99 = arith.constant dense<0.000000e+00> : vector<4xf32>
    %494 = vector.multi_reduction <add>, %493, %cst_99 [1] : vector<4x8xf32> to vector<4xf32>
    %495 = vector.shape_cast %494 : vector<4xf32> to vector<4x1xf32>
    %cst_100 = arith.constant 1.000000e+00 : f32
    %496 = vector.broadcast %cst_100 : f32 to vector<4x1xf32>
    %497 = arith.divf %496, %495 : vector<4x1xf32>
    %498 = vector.broadcast %497 : vector<4x1xf32> to vector<4x8xf32>
    %499 = arith.mulf %493, %498 : vector<4x8xf32>
    %500 = vector.shape_cast %499 : vector<4x8xf32> to vector<4x8x1xf32>
    %501 = vector.broadcast %500 : vector<4x8x1xf32> to vector<4x8x16xf32>
    %502 = arith.mulf %501, %0 : vector<4x8x16xf32>
    %cst_101 = arith.constant dense<0.000000e+00> : vector<4x16xf32>
    %503 = vector.multi_reduction <add>, %502, %cst_101 [1] : vector<4x8x16xf32> to vector<4x16xf32>
    %504 = tpu.concatenate %503, %458 in 1 : vector<4x16xf32>, vector<4x32xf32> -> vector<4x48xf32>
    %cst_102 = arith.constant dense<0.000000e+00> : vector<4x128xf32>
    %505 = tpu.matmul %504, %2, %cst_102 {dimension_numbers = #tpu.dot_dimension_numbers<[1], [0], [0], [1], [0, 0, 1, 1], [], []>} : vector<4x48xf32>, vector<48x128xf32>, vector<4x128xf32> -> vector<4x128xf32>
    %506 = arith.addf %505, %6 : vector<4x128xf32>
    %507 = vector.extract_strided_slice %506 {offsets = [0, 0], sizes = [4, 96], strides = [1, 1]} : vector<4x128xf32> to vector<4x96xf32>
    %508 = arith.negf %507 : vector<4x96xf32>
    %509 = math.exp %508 : vector<4x96xf32>
    %cst_103 = arith.constant 1.000000e+00 : f32
    %510 = vector.broadcast %cst_103 : f32 to vector<4x96xf32>
    %511 = arith.addf %510, %509 : vector<4x96xf32>
    %512 = arith.divf %510, %511 : vector<4x96xf32>
    %513 = vector.extract_strided_slice %512 {offsets = [0, 0], sizes = [4, 32], strides = [1, 1]} : vector<4x96xf32> to vector<4x32xf32>
    %514 = vector.extract_strided_slice %512 {offsets = [0, 32], sizes = [4, 32], strides = [1, 1]} : vector<4x96xf32> to vector<4x32xf32>
    %515 = vector.extract_strided_slice %512 {offsets = [0, 64], sizes = [4, 32], strides = [1, 1]} : vector<4x96xf32> to vector<4x32xf32>
    %516 = vector.extract_strided_slice %506 {offsets = [0, 96], sizes = [4, 32], strides = [1, 1]} : vector<4x128xf32> to vector<4x32xf32>
    %517 = math.tanh %516 : vector<4x32xf32>
    %518 = arith.mulf %514, %456 : vector<4x32xf32>
    %519 = arith.mulf %513, %517 : vector<4x32xf32>
    %520 = arith.addf %518, %519 : vector<4x32xf32>
    %521 = math.tanh %520 : vector<4x32xf32>
    %522 = arith.mulf %515, %521 : vector<4x32xf32>
    %523 = tpu.concatenate %522, %477 in 1 : vector<4x32xf32>, vector<4x32xf32> -> vector<4x64xf32>
    %cst_104 = arith.constant dense<0.000000e+00> : vector<4x128xf32>
    %524 = tpu.matmul %523, %3, %cst_104 {dimension_numbers = #tpu.dot_dimension_numbers<[1], [0], [0], [1], [0, 0, 1, 1], [], []>} : vector<4x64xf32>, vector<64x128xf32>, vector<4x128xf32> -> vector<4x128xf32>
    %525 = arith.addf %524, %9 : vector<4x128xf32>
    %526 = vector.extract_strided_slice %525 {offsets = [0, 0], sizes = [4, 96], strides = [1, 1]} : vector<4x128xf32> to vector<4x96xf32>
    %527 = arith.negf %526 : vector<4x96xf32>
    %528 = math.exp %527 : vector<4x96xf32>
    %cst_105 = arith.constant 1.000000e+00 : f32
    %529 = vector.broadcast %cst_105 : f32 to vector<4x96xf32>
    %530 = arith.addf %529, %528 : vector<4x96xf32>
    %531 = arith.divf %529, %530 : vector<4x96xf32>
    %532 = vector.extract_strided_slice %531 {offsets = [0, 0], sizes = [4, 32], strides = [1, 1]} : vector<4x96xf32> to vector<4x32xf32>
    %533 = vector.extract_strided_slice %531 {offsets = [0, 32], sizes = [4, 32], strides = [1, 1]} : vector<4x96xf32> to vector<4x32xf32>
    %534 = vector.extract_strided_slice %531 {offsets = [0, 64], sizes = [4, 32], strides = [1, 1]} : vector<4x96xf32> to vector<4x32xf32>
    %535 = vector.extract_strided_slice %525 {offsets = [0, 96], sizes = [4, 32], strides = [1, 1]} : vector<4x128xf32> to vector<4x32xf32>
    %536 = math.tanh %535 : vector<4x32xf32>
    %537 = arith.mulf %533, %475 : vector<4x32xf32>
    %538 = arith.mulf %532, %536 : vector<4x32xf32>
    %539 = arith.addf %537, %538 : vector<4x32xf32>
    %540 = math.tanh %539 : vector<4x32xf32>
    %541 = arith.mulf %534, %540 : vector<4x32xf32>
    %c0_106 = arith.constant 0 : index
    %c0_107 = arith.constant 0 : index
    %c224 = arith.constant 224 : index
    %542 = vector.load %arg7[%c0_106, %c0_107, %c224] : memref<1x4x256xf32, #tpu.memory_space<vmem>>, vector<1x4x32xf32>
    %543 = vector.shape_cast %542 : vector<1x4x32xf32> to vector<4x32xf32>
    %544 = vector.shape_cast %541 : vector<4x32xf32> to vector<1x4x32xf32>
    tpu.vector_store %arg7[%c0_106, %c0_107, %c224], %544 {strides = array<i32>} : memref<1x4x256xf32, #tpu.memory_space<vmem>>, vector<1x4x32xf32>,
    return
  }
  func.func @transform_0(%arg0: i32) -> (i32, i32, i32) {
    %c0_i32 = arith.constant 0 : i32
    %c0_i32_0 = arith.constant 0 : i32
    %c0_i32_1 = arith.constant 0 : i32
    return %arg0, %c0_i32, %c0_i32_0 : i32, i32, i32
  }
  func.func @transform_1(%arg0: i32) -> (i32, i32) {
    %c0_i32 = arith.constant 0 : i32
    %c0_i32_0 = arith.constant 0 : i32
    %c0_i32_1 = arith.constant 0 : i32
    return %c0_i32, %c0_i32_0 : i32, i32
  }
  func.func @transform_2(%arg0: i32) -> (i32, i32) {
    %c0_i32 = arith.constant 0 : i32
    %c0_i32_0 = arith.constant 0 : i32
    %c0_i32_1 = arith.constant 0 : i32
    return %c0_i32, %c0_i32_0 : i32, i32
  }
  func.func @transform_3(%arg0: i32) -> (i32, i32) {
    %c0_i32 = arith.constant 0 : i32
    %c0_i32_0 = arith.constant 0 : i32
    %c0_i32_1 = arith.constant 0 : i32
    return %c0_i32, %c0_i32_0 : i32, i32
  }
  func.func @transform_4(%arg0: i32) -> (i32, i32) {
    %c0_i32 = arith.constant 0 : i32
    %c0_i32_0 = arith.constant 0 : i32
    %c0_i32_1 = arith.constant 0 : i32
    return %c0_i32, %c0_i32_0 : i32, i32
  }
  func.func @transform_5(%arg0: i32) -> (i32, i32) {
    %c0_i32 = arith.constant 0 : i32
    %c0_i32_0 = arith.constant 0 : i32
    %c0_i32_1 = arith.constant 0 : i32
    return %c0_i32, %c0_i32_0 : i32, i32
  }
  func.func @transform_6(%arg0: i32) -> (i32, i32, i32) {
    %c0_i32 = arith.constant 0 : i32
    %c0_i32_0 = arith.constant 0 : i32
    %c0_i32_1 = arith.constant 0 : i32
    return %arg0, %c0_i32, %c0_i32_0 : i32, i32, i32
  }
}

</mosaic_0001>

<llo_original>
// kernel: tpu_custom_call.1
$region0: #{tpu_custom_call.1}
  #allocation0 [shape = 'u32[]', space=smem, size = 0x4, offset = 0x4, fixed_abs, tag = 'smem constant byte address 0x4 - core index']
  #allocation1 [shape = 'u32[144,128]{1,0:T(1,128)}', space=vmem, size = 0x12000, scoped, tag = 'internal scratch']
  %s0 = inlined_call_operand.hbm [shape: f32[4,8,16], index: 0, kind: input, shape index: {}]
  %s1 = inlined_call_operand.hbm [shape: f32[16,64], index: 1, kind: input, shape index: {}]
  %s2 = inlined_call_operand.hbm [shape: f32[48,128], index: 2, kind: input, shape index: {}]
  %s3 = inlined_call_operand.vmem [shape: f32[1,128], index: 3, kind: input, shape index: {}]
  %s4 = inlined_call_operand.hbm [shape: f32[64,128], index: 4, kind: input, shape index: {}]
  %s5 = inlined_call_operand.vmem [shape: f32[1,128], index: 5, kind: input, shape index: {}]
  %s6 = inlined_call_operand.hbm [shape: f32[1,4,256], index: 6, kind: output, shape index: {}]
  %s7 = sld [smem:[#allocation0]]
  $region50: #{tpu_custom_call.1} parent=0
    _
  %s9 = ssub.s32 1, %s7
  %s10 = scalar_select 0, %s9, %s7
  $region1: #{tpu_custom_call.1} parent=0
    #allocation2 [shape = 'u8[16384]{0}', space=vmem, size = 0x4000, scoped, tag = 'input window, operand 0, single buffered']
    #allocation3 [shape = 's32[1]{0}', space=sflag, size = 0x4, scoped, tag = 'scoped memory for tpu_custom_call.1']
    #allocation4 [shape = 's32[1]{0}', space=sflag, size = 0x4, scoped, tag = 'scoped memory for tpu_custom_call.1']
    #allocation5 [shape = 'u8[8192]{0}', space=vmem, size = 0x2000, scoped, tag = 'input window, operand 1, single buffered']
    #allocation6 [shape = 's32[1]{0}', space=sflag, size = 0x4, scoped, tag = 'scoped memory for tpu_custom_call.1']
    #allocation7 [shape = 'u8[24576]{0}', space=vmem, size = 0x6000, scoped, tag = 'input window, operand 2, single buffered']
    #allocation8 [shape = 'u8[32768]{0}', space=vmem, size = 0x8000, scoped, tag = 'input window, operand 4, single buffered']
    #allocation9 [shape = 's32[1]{0}', space=sflag, size = 0x4, scoped, tag = 'scoped memory for tpu_custom_call.1']
    #allocation10 [shape = 'u8[4096]{0}', space=vmem, size = 0x1000, scoped, tag = 'output window, operand 0, single buffered']
    %11 = vsyncpa [#allocation3], 0
    %12 = vsyncpa [#allocation6], 0
    %13 = vsyncpa [#allocation9], 0
    %14 = vsyncpa [#allocation4], 0
    // Predicated region
    $region2: #{tpu_custom_call.1} parent=1 // pred_check
      _
    $region3: #{tpu_custom_call.1} parent=1 // pred_check_branch
      %16 = sbr.rel (0) target = $region5
    $region4: #{tpu_custom_call.1} parent=1 // pred_region
      %s18 = ssub.s32 512, 512
      %19 = vsyncadd [#allocation3], %s18
      %s20 = sshll.u32 [#allocation2], 4
      %s21 = int_to_ptr.vmem [resolvable:$true] %s20
      %26 = dma.hbm_to_vmem [thread:$0]  %s0, 512, %s21, [#allocation3], 128, 128, 8
    $region5: #{tpu_custom_call.1} parent=1 // pred_fallthru
      _
    // Predicated region
    $region6: #{tpu_custom_call.1} parent=1 // pred_check
      _
    $region7: #{tpu_custom_call.1} parent=1 // pred_check_branch
      %28 = sbr.rel (0) target = $region9
    $region8: #{tpu_custom_call.1} parent=1 // pred_region
      %s30 = ssub.s32 256, 256
      %31 = vsyncadd [#allocation6], %s30
      %s32 = sshll.u32 [#allocation5], 4
      %s33 = int_to_ptr.vmem [resolvable:$true] %s32
      %38 = dma.hbm_to_vmem [thread:$0]  %s1, 256, %s33, [#allocation6], 128, 128, 8
    $region9: #{tpu_custom_call.1} parent=1 // pred_fallthru
      _
    // Predicated region
    $region10: #{tpu_custom_call.1} parent=1 // pred_check
      _
    $region11: #{tpu_custom_call.1} parent=1 // pred_check_branch
      %40 = sbr.rel (0) target = $region13
    $region12: #{tpu_custom_call.1} parent=1 // pred_region
      %s42 = ssub.s32 768, 768
      %43 = vsyncadd [#allocation6], %s42
      %s44 = sshll.u32 [#allocation7], 4
      %s45 = int_to_ptr.vmem [resolvable:$true] %s44
      %50 = dma.hbm_to_vmem [thread:$0]  %s2, 768, %s45, [#allocation6], 128, 128, 8
    $region13: #{tpu_custom_call.1} parent=1 // pred_fallthru
      _
    // Predicated region
    $region14: #{tpu_custom_call.1} parent=1 // pred_check
      _
    $region15: #{tpu_custom_call.1} parent=1 // pred_check_branch
      %52 = sbr.rel (0) target = $region17
    $region16: #{tpu_custom_call.1} parent=1 // pred_region
      _
    $region17: #{tpu_custom_call.1} parent=1 // pred_fallthru
      _
    // Predicated region
    $region18: #{tpu_custom_call.1} parent=1 // pred_check
      _
    $region19: #{tpu_custom_call.1} parent=1 // pred_check_branch
      %54 = sbr.rel (0) target = $region21
    $region20: #{tpu_custom_call.1} parent=1 // pred_region
      %s56 = ssub.s32 1024, 1024
      %57 = vsyncadd [#allocation9], %s56
      %s58 = sshll.u32 [#allocation8], 4
      %s59 = int_to_ptr.vmem [resolvable:$true] %s58
      %64 = dma.hbm_to_vmem [thread:$0]  %s4, 1024, %s59, [#allocation9], 128, 128, 8
    $region21: #{tpu_custom_call.1} parent=1 // pred_fallthru
      _
    // Predicated region
    $region22: #{tpu_custom_call.1} parent=1 // pred_check
      _
    $region23: #{tpu_custom_call.1} parent=1 // pred_check_branch
      %66 = sbr.rel (0) target = $region25
    $region24: #{tpu_custom_call.1} parent=1 // pred_region
      _
    $region25: #{tpu_custom_call.1} parent=1 // pred_fallthru
      _
    // Predicated region
    $region26: #{tpu_custom_call.1} parent=1 // pred_check
      _
    $region27: #{tpu_custom_call.1} parent=1 // pred_check_branch
      %68 = sbr.rel (0) target = $region29
    $region28: #{tpu_custom_call.1} parent=1 // pred_region
      %69 = dma.done [#allocation3], 512
    $region29: #{tpu_custom_call.1} parent=1 // pred_fallthru
      _
    // Predicated region
    $region30: #{tpu_custom_call.1} parent=1 // pred_check
      _
    $region31: #{tpu_custom_call.1} parent=1 // pred_check_branch
      %71 = sbr.rel (0) target = $region33
    $region32: #{tpu_custom_call.1} parent=1 // pred_region
      %72 = dma.done [#allocation6], 256
    $region33: #{tpu_custom_call.1} parent=1 // pred_fallthru
      _
    // Predicated region
    $region34: #{tpu_custom_call.1} parent=1 // pred_check
      _
    $region35: #{tpu_custom_call.1} parent=1 // pred_check_branch
      %74 = sbr.rel (0) target = $region37
    $region36: #{tpu_custom_call.1} parent=1 // pred_region
      %75 = dma.done [#allocation6], 768
    $region37: #{tpu_custom_call.1} parent=1 // pred_fallthru
      _
    // Predicated region
    $region38: #{tpu_custom_call.1} parent=1 // pred_check
      _
    $region39: #{tpu_custom_call.1} parent=1 // pred_check_branch
      %77 = sbr.rel (0) target = $region41
    $region40: #{tpu_custom_call.1} parent=1 // pred_region
      %78 = dma.done [#allocation9], 1024
    $region41: #{tpu_custom_call.1} parent=1 // pred_fallthru
      _
    %v79 = vld [vmem:[#allocation2] sm:$0xff]
    %v80 = vld [vmem:[#allocation2 + $0x8] sm:$0xff]
    %v81 = vld [vmem:[#allocation2 + $0x10] sm:$0xff]
    %v82 = vld [vmem:[#allocation2 + $0x18] sm:$0xff]
    %v83 = vld [vmem:[#allocation5] sm:$0xff]
    %v84 = vld [vmem:[#allocation5 + $0x8] sm:$0xff]
    %v85 = vld [vmem:[#allocation7] sm:$0xff]
    %v86 = vld [vmem:[#allocation7 + $0x8] sm:$0xff]
    %v87 = vld [vmem:[#allocation7 + $0x10] sm:$0xff]
    %v88 = vld [vmem:[#allocation7 + $0x18] sm:$0xff]
    %v89 = vld [vmem:[#allocation7 + $0x20] sm:$0xff]
    %v90 = vld [vmem:[#allocation7 + $0x28] sm:$0xff]
    %v91 = vld [vmem:[#allocation8] sm:$0xff]
    %v92 = vld [vmem:[#allocation8 + $0x8] sm:$0xff]
    %v93 = vld [vmem:[#allocation8 + $0x10] sm:$0xff]
    %v94 = vld [vmem:[#allocation8 + $0x18] sm:$0xff]
    %v95 = vld [vmem:[#allocation8 + $0x20] sm:$0xff]
    %v96 = vld [vmem:[#allocation8 + $0x28] sm:$0xff]
    %v97 = vld [vmem:[#allocation8 + $0x30] sm:$0xff]
    %v98 = vld [vmem:[#allocation8 + $0x38] sm:$0xff]
    %v99 = vld [vmem:[%s3] sm:$0x1]
    %v101 = vlaneseq
    %v102 = vshrl.u32 %v101, 7
    %v103 = vsub.s32 0, %v102
    %v104 = vrot.slane %v99, %v103
    %v106 = vld [vmem:[%s5] sm:$0x1]
    %v108 = vlaneseq
    %v109 = vshrl.u32 %v108, 7
    %v110 = vsub.s32 0, %v109
    %v111 = vrot.slane %v106, %v110
    %vm113 = vcmask 130048
    %v115 = vsel %vm113, %v79, 0
    %117 = vmatprep.subr.mxu0 0.0
    %118 = vmatpush1.msra.mxu0 0.0
    %119 = vmatprep.subr.mxu0 0.0
    %120 = vmatpush1.msra.mxu0 0.0
    %121 = vmatprep.subr.mxu0 0.0
    %122 = vmatpush1.msra.mxu0 0.0
    %123 = vmatprep.subr.mxu0 0.0
    %124 = vmatpush1.msra.mxu0 0.0
    %125 = vmatprep.subr.mxu0 0.0
    %126 = vmatpush1.msra.mxu0 0.0
    %127 = vmatprep.subr.mxu0 0.0
    %128 = vmatpush1.msra.mxu0 0.0
    %129 = vmatprep.subr.mxu0 0.0
    %130 = vmatpush1.msra.mxu0 0.0
    %131 = vmatprep.subr.mxu0 0.0
    %132 = vmatpush1.msra.mxu0 0.0
    %133 = vmatprep.subr.mxu0 0.0
    %134 = vmatpush1.msra.mxu0 0.0
    %135 = vmatprep.subr.mxu0 0.0
    %136 = vmatpush1.msra.mxu0 0.0
    %137 = vmatprep.subr.mxu0 0.0
    %138 = vmatpush1.msra.mxu0 0.0
    %139 = vmatprep.subr.mxu0 0.0
    %140 = vmatpush1.msra.mxu0 0.0
    %141 = vmatprep.subr.mxu0 0.0
    %142 = vmatpush1.msra.mxu0 0.0
    %143 = vmatprep.subr.mxu0 0.0
    %144 = vmatpush1.msra.mxu0 0.0
    %145 = vmatprep.subr.mxu0 0.0
    %146 = vmatpush1.msra.mxu0 %v84
    %147 = vmatprep.subr.mxu0 0.0
    %148 = vmatpush1.msra.mxu0 %v83
    %149 = vmatprep.subr.mxu0 0.0
    %150 = vmatpush2.msra.mxu0 0.0
    %151 = vmatprep.subr.mxu0 0.0
    %152 = vmatpush2.msra.mxu0 0.0
    %153 = vmatprep.subr.mxu0 0.0
    %154 = vmatpush2.msra.mxu0 0.0
    %155 = vmatprep.subr.mxu0 0.0
    %156 = vmatpush2.msra.mxu0 0.0
    %157 = vmatprep.subr.mxu0 0.0
    %158 = vmatpush2.msra.mxu0 0.0
    %159 = vmatprep.subr.mxu0 0.0
    %160 = vmatpush2.msra.mxu0 0.0
    %161 = vmatprep.subr.mxu0 0.0
    %162 = vmatpush2.msra.mxu0 0.0
    %163 = vmatprep.subr.mxu0 0.0
    %164 = vmatpush2.msra.mxu0 0.0
    %165 = vmatprep.subr.mxu0 0.0
    %166 = vmatpush2.msra.mxu0 0.0
    %167 = vmatprep.subr.mxu0 0.0
    %168 = vmatpush2.msra.mxu0 0.0
    %169 = vmatprep.subr.mxu0 0.0
    %170 = vmatpush2.msra.mxu0 0.0
    %171 = vmatprep.subr.mxu0 0.0
    %172 = vmatpush2.msra.mxu0 0.0
    %173 = vmatprep.subr.mxu0 0.0
    %174 = vmatpush2.msra.mxu0 0.0
    %175 = vmatprep.subr.mxu0 0.0
    %176 = vmatpush2.msra.mxu0 0.0
    %177 = vmatprep.subr.mxu0 0.0
    %178 = vmatpush2.msra.mxu0 0.0
    %179 = vmatprep.subr.mxu0 0.0
    %180 = vmatpush2.msra.mxu0 0.0
    %181 = vmatprep.mubr.f32.mxu0 0.0
    %182 = vmatmul.mubr.f32.gmra.mxu0 %v115
    %v183 = vpop.f32.mrf.mxu0
    %v184 = vadd.f32 0.0, %v183
    %v185 = vpop.f32.mrf.mxu0
    %186 = vdwg.mxu0
    %v188 = vsel %vm113, %v80, 0
    %190 = vmatprep.subr.mxu0 0.0
    %191 = vmatpush1.msra.mxu0 0.0
    %192 = vmatprep.subr.mxu0 0.0
    %193 = vmatpush1.msra.mxu0 0.0
    %194 = vmatprep.subr.mxu0 0.0
    %195 = vmatpush1.msra.mxu0 0.0
    %196 = vmatprep.subr.mxu0 0.0
    %197 = vmatpush1.msra.mxu0 0.0
    %198 = vmatprep.subr.mxu0 0.0
    %199 = vmatpush1.msra.mxu0 0.0
    %200 = vmatprep.subr.mxu0 0.0
    %201 = vmatpush1.msra.mxu0 0.0
    %202 = vmatprep.subr.mxu0 0.0
    %203 = vmatpush1.msra.mxu0 0.0
    %204 = vmatprep.subr.mxu0 0.0
    %205 = vmatpush1.msra.mxu0 0.0
    %206 = vmatprep.subr.mxu0 0.0
    %207 = vmatpush1.msra.mxu0 0.0
    %208 = vmatprep.subr.mxu0 0.0
    %209 = vmatpush1.msra.mxu0 0.0
    %210 = vmatprep.subr.mxu0 0.0
    %211 = vmatpush1.msra.mxu0 0.0
    %212 = vmatprep.subr.mxu0 0.0
    %213 = vmatpush1.msra.mxu0 0.0
    %214 = vmatprep.subr.mxu0 0.0
    %215 = vmatpush1.msra.mxu0 0.0
    %216 = vmatprep.subr.mxu0 0.0
    %217 = vmatpush1.msra.mxu0 0.0
    %218 = vmatprep.subr.mxu0 0.0
    %219 = vmatpush1.msra.mxu0 %v84
    %220 = vmatprep.subr.mxu0 0.0
    %221 = vmatpush1.msra.mxu0 %v83
    %222 = vmatprep.subr.mxu0 0.0
    %223 = vmatpush2.msra.mxu0 0.0
    %224 = vmatprep.subr.mxu0 0.0
    %225 = vmatpush2.msra.mxu0 0.0
    %226 = vmatprep.subr.mxu0 0.0
    %227 = vmatpush2.msra.mxu0 0.0
    %228 = vmatprep.subr.mxu0 0.0
    %229 = vmatpush2.msra.mxu0 0.0
    %230 = vmatprep.subr.mxu0 0.0
    %231 = vmatpush2.msra.mxu0 0.0
    %232 = vmatprep.subr.mxu0 0.0
    %233 = vmatpush2.msra.mxu0 0.0
    %234 = vmatprep.subr.mxu0 0.0
    %235 = vmatpush2.msra.mxu0 0.0
    %236 = vmatprep.subr.mxu0 0.0
    %237 = vmatpush2.msra.mxu0 0.0
    %238 = vmatprep.subr.mxu0 0.0
    %239 = vmatpush2.msra.mxu0 0.0
    %240 = vmatprep.subr.mxu0 0.0
    %241 = vmatpush2.msra.mxu0 0.0
    %242 = vmatprep.subr.mxu0 0.0
    %243 = vmatpush2.msra.mxu0 0.0
    %244 = vmatprep.subr.mxu0 0.0
    %245 = vmatpush2.msra.mxu0 0.0
    %246 = vmatprep.subr.mxu0 0.0
    %247 = vmatpush2.msra.mxu0 0.0
    %248 = vmatprep.subr.mxu0 0.0
    %249 = vmatpush2.msra.mxu0 0.0
    %250 = vmatprep.subr.mxu0 0.0
    %251 = vmatpush2.msra.mxu0 0.0
    %252 = vmatprep.subr.mxu0 0.0
    %253 = vmatpush2.msra.mxu0 0.0
    %254 = vmatprep.mubr.f32.mxu0 0.0
    %255 = vmatmul.mubr.f32.gmra.mxu0 %v188
    %v256 = vpop.f32.mrf.mxu0
    %v257 = vadd.f32 0.0, %v256
    %v258 = vpop.f32.mrf.mxu0
    %259 = vdwg.mxu0
    %v261 = vsel %vm113, %v81, 0
    %263 = vmatprep.subr.mxu0 0.0
    %264 = vmatpush1.msra.mxu0 0.0
    %265 = vmatprep.subr.mxu0 0.0
    %266 = vmatpush1.msra.mxu0 0.0
    %267 = vmatprep.subr.mxu0 0.0
    %268 = vmatpush1.msra.mxu0 0.0
    %269 = vmatprep.subr.mxu0 0.0
    %270 = vmatpush1.msra.mxu0 0.0
    %271 = vmatprep.subr.mxu0 0.0
    %272 = vmatpush1.msra.mxu0 0.0
    %273 = vmatprep.subr.mxu0 0.0
    %274 = vmatpush1.msra.mxu0 0.0
    %275 = vmatprep.subr.mxu0 0.0
    %276 = vmatpush1.msra.mxu0 0.0
    %277 = vmatprep.subr.mxu0 0.0
    %278 = vmatpush1.msra.mxu0 0.0
    %279 = vmatprep.subr.mxu0 0.0
    %280 = vmatpush1.msra.mxu0 0.0
    %281 = vmatprep.subr.mxu0 0.0
    %282 = vmatpush1.msra.mxu0 0.0
    %283 = vmatprep.subr.mxu0 0.0
    %284 = vmatpush1.msra.mxu0 0.0
    %285 = vmatprep.subr.mxu0 0.0
    %286 = vmatpush1.msra.mxu0 0.0
    %287 = vmatprep.subr.mxu0 0.0
    %288 = vmatpush1.msra.mxu0 0.0
    %289 = vmatprep.subr.mxu0 0.0
    %290 = vmatpush1.msra.mxu0 0.0
    %291 = vmatprep.subr.mxu0 0.0
    %292 = vmatpush1.msra.mxu0 %v84
    %293 = vmatprep.subr.mxu0 0.0
    %294 = vmatpush1.msra.mxu0 %v83
    %295 = vmatprep.subr.mxu0 0.0
    %296 = vmatpush2.msra.mxu0 0.0
    %297 = vmatprep.subr.mxu0 0.0
    %298 = vmatpush2.msra.mxu0 0.0
    %299 = vmatprep.subr.mxu0 0.0
    %300 = vmatpush2.msra.mxu0 0.0
    %301 = vmatprep.subr.mxu0 0.0
    %302 = vmatpush2.msra.mxu0 0.0
    %303 = vmatprep.subr.mxu0 0.0
    %304 = vmatpush2.msra.mxu0 0.0
    %305 = vmatprep.subr.mxu0 0.0
    %306 = vmatpush2.msra.mxu0 0.0
    %307 = vmatprep.subr.mxu0 0.0
    %308 = vmatpush2.msra.mxu0 0.0
    %309 = vmatprep.subr.mxu0 0.0
    %310 = vmatpush2.msra.mxu0 0.0
    %311 = vmatprep.subr.mxu0 0.0
    %312 = vmatpush2.msra.mxu0 0.0
    %313 = vmatprep.subr.mxu0 0.0
    %314 = vmatpush2.msra.mxu0 0.0
    %315 = vmatprep.subr.mxu0 0.0
    %316 = vmatpush2.msra.mxu0 0.0
    %317 = vmatprep.subr.mxu0 0.0
    %318 = vmatpush2.msra.mxu0 0.0
    %319 = vmatprep.subr.mxu0 0.0
    %320 = vmatpush2.msra.mxu0 0.0
    %321 = vmatprep.subr.mxu0 0.0
    %322 = vmatpush2.msra.mxu0 0.0
    %323 = vmatprep.subr.mxu0 0.0
    %324 = vmatpush2.msra.mxu0 0.0
    %325 = vmatprep.subr.mxu0 0.0
    %326 = vmatpush2.msra.mxu0 0.0
    %327 = vmatprep.mubr.f32.mxu0 0.0
    %328 = vmatmul.mubr.f32.gmra.mxu0 %v261
    %v329 = vpop.f32.mrf.mxu0
    %v330 = vadd.f32 0.0, %v329
    %v331 = vpop.f32.mrf.mxu0
    %332 = vdwg.mxu0
    %v334 = vsel %vm113, %v82, 0
    %336 = vmatprep.subr.mxu0 0.0
    %337 = vmatpush1.msra.mxu0 0.0
    %338 = vmatprep.subr.mxu0 0.0
    %339 = vmatpush1.msra.mxu0 0.0
    %340 = vmatprep.subr.mxu0 0.0
    %341 = vmatpush1.msra.mxu0 0.0
    %342 = vmatprep.subr.mxu0 0.0
    %343 = vmatpush1.msra.mxu0 0.0
    %344 = vmatprep.subr.mxu0 0.0
    %345 = vmatpush1.msra.mxu0 0.0
    %346 = vmatprep.subr.mxu0 0.0
    %347 = vmatpush1.msra.mxu0 0.0
    %348 = vmatprep.subr.mxu0 0.0
    %349 = vmatpush1.msra.mxu0 0.0
    %350 = vmatprep.subr.mxu0 0.0
    %351 = vmatpush1.msra.mxu0 0.0
    %352 = vmatprep.subr.mxu0 0.0
    %353 = vmatpush1.msra.mxu0 0.0
    %354 = vmatprep.subr.mxu0 0.0
    %355 = vmatpush1.msra.mxu0 0.0
    %356 = vmatprep.subr.mxu0 0.0
    %357 = vmatpush1.msra.mxu0 0.0
    %358 = vmatprep.subr.mxu0 0.0
    %359 = vmatpush1.msra.mxu0 0.0
    %360 = vmatprep.subr.mxu0 0.0
    %361 = vmatpush1.msra.mxu0 0.0
    %362 = vmatprep.subr.mxu0 0.0
    %363 = vmatpush1.msra.mxu0 0.0
    %364 = vmatprep.subr.mxu0 0.0
    %365 = vmatpush1.msra.mxu0 %v84
    %366 = vmatprep.subr.mxu0 0.0
    %367 = vmatpush1.msra.mxu0 %v83
    %368 = vmatprep.subr.mxu0 0.0
    %369 = vmatpush2.msra.mxu0 0.0
    %370 = vmatprep.subr.mxu0 0.0
    %371 = vmatpush2.msra.mxu0 0.0
    %372 = vmatprep.subr.mxu0 0.0
    %373 = vmatpush2.msra.mxu0 0.0
    %374 = vmatprep.subr.mxu0 0.0
    %375 = vmatpush2.msra.mxu0 0.0
    %376 = vmatprep.subr.mxu0 0.0
    %377 = vmatpush2.msra.mxu0 0.0
    %378 = vmatprep.subr.mxu0 0.0
    %379 = vmatpush2.msra.mxu0 0.0
    %380 = vmatprep.subr.mxu0 0.0
    %381 = vmatpush2.msra.mxu0 0.0
    %382 = vmatprep.subr.mxu0 0.0
    %383 = vmatpush2.msra.mxu0 0.0
    %384 = vmatprep.subr.mxu0 0.0
    %385 = vmatpush2.msra.mxu0 0.0
    %386 = vmatprep.subr.mxu0 0.0
    %387 = vmatpush2.msra.mxu0 0.0
    %388 = vmatprep.subr.mxu0 0.0
    %389 = vmatpush2.msra.mxu0 0.0
    %390 = vmatprep.subr.mxu0 0.0
    %391 = vmatpush2.msra.mxu0 0.0
    %392 = vmatprep.subr.mxu0 0.0
    %393 = vmatpush2.msra.mxu0 0.0
    %394 = vmatprep.subr.mxu0 0.0
    %395 = vmatpush2.msra.mxu0 0.0
    %396 = vmatprep.subr.mxu0 0.0
    %397 = vmatpush2.msra.mxu0 0.0
    %398 = vmatprep.subr.mxu0 0.0
    %399 = vmatpush2.msra.mxu0 0.0
    %400 = vmatprep.mubr.f32.mxu0 0.0
    %401 = vmatmul.mubr.f32.gmra.mxu0 %v334
    %v402 = vpop.f32.mrf.mxu0
    %v403 = vadd.f32 0.0, %v402
    %v404 = vpop.f32.mrf.mxu0
    %405 = vdwg.mxu0
    %v406 = vmul.f32 %v184, 0.0
    %v407 = vmul.f32 %v257, 0.0
    %v408 = vmul.f32 %v330, 0.0
    %v409 = vmul.f32 %v403, 0.0
    %414 = vrot.lane.b32.xlu0 %v406, 96
    %v415 = vpop.permute.xlu0 %414
    %416 = vrot.lane.b32.xlu0 %v407, 96
    %v417 = vpop.permute.xlu0 %416
    %418 = vrot.lane.b32.xlu0 %v408, 96
    %v419 = vpop.permute.xlu0 %418
    %420 = vrot.lane.b32.xlu0 %v409, 96
    %v421 = vpop.permute.xlu0 %420
    %v426 = vadd.f32 %v406, %v415
    %v427 = vadd.f32 %v407, %v417
    %v428 = vadd.f32 %v408, %v419
    %v429 = vadd.f32 %v409, %v421
    %vm430 = vcmask 261120
    %v431 = vsel %vm430, %v426, 0.0
    %432 = vadd.xlane.f32.xlu0 %v431
    %v433 = vpop.xlane.xlu0 %432
    %v434 = vsel %vm430, %v427, 0.0
    %435 = vadd.xlane.f32.xlu0 %v434
    %v436 = vpop.xlane.xlu0 %435
    %v437 = vsel %vm430, %v428, 0.0
    %438 = vadd.xlane.f32.xlu0 %v437
    %v439 = vpop.xlane.xlu0 %438
    %v440 = vsel %vm430, %v429, 0.0
    %441 = vadd.xlane.f32.xlu0 %v440
    %v442 = vpop.xlane.xlu0 %441
    %v447 = vlaneseq
    %v448 = vand.u32 %v447, 127
    %v449 = vlaneseq
    %v450 = vshrl.u32 %v449, 7
    %v451 = vsub.s32 %v448, %v450
    %v452 = vrot.slane %v433, %v451
    %v453 = vlaneseq
    %v454 = vshrl.u32 %v453, 7
    %v455 = vsub.s32 %v448, %v454
    %v456 = vrot.slane %v436, %v455
    %v457 = vlaneseq
    %v458 = vshrl.u32 %v457, 7
    %v459 = vsub.s32 %v448, %v458
    %v460 = vrot.slane %v439, %v459
    %v461 = vlaneseq
    %v462 = vshrl.u32 %v461, 7
    %v463 = vsub.s32 %v448, %v462
    %v464 = vrot.slane %v442, %v463
    %vm465 = vcmask 1041409
    %v466 = vsel %vm465, %v456, %v452
    %vm467 = vcmask 1042434
    %v468 = vsel %vm467, %v460, %v466
    %vm469 = vcmask 1043459
    %v470 = vsel %vm469, %v464, %v468
    %vm472 = vcmask 60416
    %v473 = vsel %vm472, %v470, -inf
    %474 = vmax.xlane.f32.xlu0 %v473
    %v475 = vpop.xlane.xlu0 %474
    %v477 = vlaneseq
    %v478 = vshrl.u32 %v477, 7
    %v479 = vsub.s32 0, %v478
    %v480 = vrot.slane %v475, %v479
    %v481 = vlaneseq
    %v482 = vshrl.u32 %v481, 7
    %v483 = vsub.s32 1, %v482
    %v484 = vrot.slane %v475, %v483
    %v485 = vlaneseq
    %v486 = vshrl.u32 %v485, 7
    %v487 = vsub.s32 2, %v486
    %v488 = vrot.slane %v475, %v487
    %v489 = vlaneseq
    %v490 = vshrl.u32 %v489, 7
    %v491 = vsub.s32 3, %v490
    %v492 = vrot.slane %v475, %v491
    %v497 = vsub.f32 %v433, %v480
    %v498 = vsub.f32 %v436, %v484
    %v499 = vsub.f32 %v439, %v488
    %v500 = vsub.f32 %v442, %v492
    %v501 = vmul.f32 %v497, 1.442695
    %v502 = vpow.pop %v501
    %v503 = vmul.f32 %v498, 1.442695
    %v504 = vpow.pop %v503
    %v505 = vmul.f32 %v499, 1.442695
    %v506 = vpow.pop %v505
    %v507 = vmul.f32 %v500, 1.442695
    %v508 = vpow.pop %v507
    %513 = vset.pattern.permute.xlu0 0
    %514 = vperm.xlu0 %513, %v502
    %v515 = vpop.permute.xlu0 %514
    %516 = vset.pattern.permute.xlu0 0
    %517 = vperm.xlu0 %516, %v504
    %v518 = vpop.permute.xlu0 %517
    %519 = vset.pattern.permute.xlu0 0
    %520 = vperm.xlu0 %519, %v506
    %v521 = vpop.permute.xlu0 %520
    %522 = vset.pattern.permute.xlu0 0
    %523 = vperm.xlu0 %522, %v508
    %v524 = vpop.permute.xlu0 %523
    %v525 = vlaneseq
    %v526 = vshrl.u32 %v525, 7
    %v527 = vsub.s32 %v448, %v526
    %v528 = vrot.slane %v515, %v527
    %v529 = vlaneseq
    %v530 = vshrl.u32 %v529, 7
    %v531 = vsub.s32 %v448, %v530
    %v532 = vrot.slane %v518, %v531
    %v533 = vlaneseq
    %v534 = vshrl.u32 %v533, 7
    %v535 = vsub.s32 %v448, %v534
    %v536 = vrot.slane %v521, %v535
    %v537 = vlaneseq
    %v538 = vshrl.u32 %v537, 7
    %v539 = vsub.s32 %v448, %v538
    %v540 = vrot.slane %v524, %v539
    %v541 = vsel %vm465, %v532, %v528
    %v542 = vsel %vm467, %v536, %v541
    %v543 = vsel %vm469, %v540, %v542
    %v545 = vsel %vm472, %v543, 0.0
    %546 = vadd.xlane.f32.xlu0 %v545
    %v547 = vpop.xlane.xlu0 %546
    %v548 = vrcp.pop %v547
    %v549 = vmul.f32 1.0, %v548
    %v551 = vlaneseq
    %v552 = vshrl.u32 %v551, 7
    %v553 = vsub.s32 0, %v552
    %v554 = vrot.slane %v549, %v553
    %v555 = vlaneseq
    %v556 = vshrl.u32 %v555, 7
    %v557 = vsub.s32 1, %v556
    %v558 = vrot.slane %v549, %v557
    %v559 = vlaneseq
    %v560 = vshrl.u32 %v559, 7
    %v561 = vsub.s32 2, %v560
    %v562 = vrot.slane %v549, %v561
    %v563 = vlaneseq
    %v564 = vshrl.u32 %v563, 7
    %v565 = vsub.s32 3, %v564
    %v566 = vrot.slane %v549, %v565
    %v571 = vmul.f32 %v502, %v554
    %v572 = vmul.f32 %v504, %v558
    %v573 = vmul.f32 %v506, %v562
    %v574 = vmul.f32 %v508, %v566
    %576 = vset.pattern.permute.xlu0 0
    %577 = vperm.xlu0 %576, %v571
    %v578 = vpop.permute.xlu0 %577
    %581 = vset.pattern.permute.xlu0 0
    %582 = vperm.xlu0 %581, %v572
    %v583 = vpop.permute.xlu0 %582
    %586 = vset.pattern.permute.xlu0 0
    %587 = vperm.xlu0 %586, %v573
    %v588 = vpop.permute.xlu0 %587
    %591 = vset.pattern.permute.xlu0 0
    %592 = vperm.xlu0 %591, %v574
    %v593 = vpop.permute.xlu0 %592
    %v595 = vmul.f32 %v578, %v79
    %v596 = vmul.f32 %v583, %v80
    %v597 = vmul.f32 %v588, %v81
    %v598 = vmul.f32 %v593, %v82
    %v599 = vsel %vm113, %v595, 0.0
    %v600 = vrot.slane %v599, 4
    %v601 = vadd.f32 %v599, %v600
    %v602 = vrot.slane %v601, 2
    %v603 = vadd.f32 %v601, %v602
    %v604 = vrot.slane %v603, 1
    %v605 = vadd.f32 %v603, %v604
    %v606 = vsel %vm113, %v596, 0.0
    %v607 = vrot.slane %v606, 4
    %v608 = vadd.f32 %v606, %v607
    %v609 = vrot.slane %v608, 2
    %v610 = vadd.f32 %v608, %v609
    %v611 = vrot.slane %v610, 1
    %v612 = vadd.f32 %v610, %v611
    %v613 = vsel %vm113, %v597, 0.0
    %v614 = vrot.slane %v613, 4
    %v615 = vadd.f32 %v613, %v614
    %v616 = vrot.slane %v615, 2
    %v617 = vadd.f32 %v615, %v616
    %v618 = vrot.slane %v617, 1
    %v619 = vadd.f32 %v617, %v618
    %v620 = vsel %vm113, %v598, 0.0
    %v621 = vrot.slane %v620, 4
    %v622 = vadd.f32 %v620, %v621
    %v623 = vrot.slane %v622, 2
    %v624 = vadd.f32 %v622, %v623
    %v625 = vrot.slane %v624, 1
    %v626 = vadd.f32 %v624, %v625
    %v631 = vsel %vm465, %v612, %v605
    %v632 = vsel %vm467, %v619, %v631
    %v633 = vsel %vm469, %v626, %v632
    %v635 = vsel %vm113, %v633, 0.0
    %vm636 = vcmask 392192
    %v638 = vsel %vm636, %v635, 0
    %640 = vmatprep.subr.mxu0 0.0
    %641 = vmatpush1.msra.mxu0 0.0
    %642 = vmatprep.subr.mxu0 0.0
    %643 = vmatpush1.msra.mxu0 0.0
    %644 = vmatprep.subr.mxu0 0.0
    %645 = vmatpush1.msra.mxu0 0.0
    %646 = vmatprep.subr.mxu0 0.0
    %647 = vmatpush1.msra.mxu0 0.0
    %648 = vmatprep.subr.mxu0 0.0
    %649 = vmatpush1.msra.mxu0 0.0
    %650 = vmatprep.subr.mxu0 0.0
    %651 = vmatpush1.msra.mxu0 0.0
    %652 = vmatprep.subr.mxu0 0.0
    %653 = vmatpush1.msra.mxu0 0.0
    %654 = vmatprep.subr.mxu0 0.0
    %655 = vmatpush1.msra.mxu0 0.0
    %656 = vmatprep.subr.mxu0 0.0
    %657 = vmatpush1.msra.mxu0 0.0
    %658 = vmatprep.subr.mxu0 0.0
    %659 = vmatpush1.msra.mxu0 0.0
    %660 = vmatprep.subr.mxu0 0.0
    %661 = vmatpush1.msra.mxu0 %v90
    %662 = vmatprep.subr.mxu0 0.0
    %663 = vmatpush1.msra.mxu0 %v89
    %664 = vmatprep.subr.mxu0 0.0
    %665 = vmatpush1.msra.mxu0 %v88
    %666 = vmatprep.subr.mxu0 0.0
    %667 = vmatpush1.msra.mxu0 %v87
    %668 = vmatprep.subr.mxu0 0.0
    %669 = vmatpush1.msra.mxu0 %v86
    %670 = vmatprep.subr.mxu0 0.0
    %671 = vmatpush1.msra.mxu0 %v85
    %672 = vmatprep.subr.mxu0 0.0
    %673 = vmatpush2.msra.mxu0 0.0
    %674 = vmatprep.subr.mxu0 0.0
    %675 = vmatpush2.msra.mxu0 0.0
    %676 = vmatprep.subr.mxu0 0.0
    %677 = vmatpush2.msra.mxu0 0.0
    %678 = vmatprep.subr.mxu0 0.0
    %679 = vmatpush2.msra.mxu0 0.0
    %680 = vmatprep.subr.mxu0 0.0
    %681 = vmatpush2.msra.mxu0 0.0
    %682 = vmatprep.subr.mxu0 0.0
    %683 = vmatpush2.msra.mxu0 0.0
    %684 = vmatprep.subr.mxu0 0.0
    %685 = vmatpush2.msra.mxu0 0.0
    %686 = vmatprep.subr.mxu0 0.0
    %687 = vmatpush2.msra.mxu0 0.0
    %688 = vmatprep.subr.mxu0 0.0
    %689 = vmatpush2.msra.mxu0 0.0
    %690 = vmatprep.subr.mxu0 0.0
    %691 = vmatpush2.msra.mxu0 0.0
    %692 = vmatprep.subr.mxu0 0.0
    %693 = vmatpush2.msra.mxu0 0.0
    %694 = vmatprep.subr.mxu0 0.0
    %695 = vmatpush2.msra.mxu0 0.0
    %696 = vmatprep.subr.mxu0 0.0
    %697 = vmatpush2.msra.mxu0 0.0
    %698 = vmatprep.subr.mxu0 0.0
    %699 = vmatpush2.msra.mxu0 0.0
    %700 = vmatprep.subr.mxu0 0.0
    %701 = vmatpush2.msra.mxu0 0.0
    %702 = vmatprep.subr.mxu0 0.0
    %703 = vmatpush2.msra.mxu0 0.0
    %704 = vmatprep.mubr.f32.mxu0 0.0
    %705 = vmatmul.mubr.f32.gmra.mxu0 %v638
    %v706 = vpop.f32.mrf.mxu0
    %v707 = vadd.f32 %v104, %v706
    %v708 = vpop.f32.mrf.mxu0
    %709 = vdwg.mxu0
    %v710 = vxor.u32 %v707, 2147483648
    %v711 = vmul.f32 %v710, 1.442695
    %v712 = vpow.pop %v711
    %v713 = vadd.f32 %v712, 1.0
    %v714 = vrcp.pop %v713
    %v715 = vmul.f32 1.0, %v714
    %v716 = vtanh.pop %v707
    %v717 = vmul.f32 %v715, 0.0
    %719 = vrot.lane.b32.xlu0 %v716, 32
    %v720 = vpop.permute.xlu0 %719
    %v722 = vmul.f32 %v715, %v720
    %724 = vrot.lane.b32.xlu0 %v722, 32
    %v725 = vpop.permute.xlu0 %724
    %v727 = vadd.f32 %v717, %v725
    %v728 = vtanh.pop %v727
    %730 = vrot.lane.b32.xlu0 %v728, 32
    %v731 = vpop.permute.xlu0 %730
    %v733 = vmul.f32 %v715, %v731
    %735 = vrot.lane.b32.xlu0 %v733, 64
    %v736 = vpop.permute.xlu0 %735
    %v738 = vsel %vm430, %v736, 0.0
    %vm739 = vcmask 523264
    %v741 = vsel %vm739, %v738, 0
    %743 = vmatprep.subr.mxu0 0.0
    %744 = vmatpush1.msra.mxu0 0.0
    %745 = vmatprep.subr.mxu0 0.0
    %746 = vmatpush1.msra.mxu0 0.0
    %747 = vmatprep.subr.mxu0 0.0
    %748 = vmatpush1.msra.mxu0 0.0
    %749 = vmatprep.subr.mxu0 0.0
    %750 = vmatpush1.msra.mxu0 0.0
    %751 = vmatprep.subr.mxu0 0.0
    %752 = vmatpush1.msra.mxu0 0.0
    %753 = vmatprep.subr.mxu0 0.0
    %754 = vmatpush1.msra.mxu0 0.0
    %755 = vmatprep.subr.mxu0 0.0
    %756 = vmatpush1.msra.mxu0 0.0
    %757 = vmatprep.subr.mxu0 0.0
    %758 = vmatpush1.msra.mxu0 0.0
    %759 = vmatprep.subr.mxu0 0.0
    %760 = vmatpush1.msra.mxu0 %v98
    %761 = vmatprep.subr.mxu0 0.0
    %762 = vmatpush1.msra.mxu0 %v97
    %763 = vmatprep.subr.mxu0 0.0
    %764 = vmatpush1.msra.mxu0 %v96
    %765 = vmatprep.subr.mxu0 0.0
    %766 = vmatpush1.msra.mxu0 %v95
    %767 = vmatprep.subr.mxu0 0.0
    %768 = vmatpush1.msra.mxu0 %v94
    %769 = vmatprep.subr.mxu0 0.0
    %770 = vmatpush1.msra.mxu0 %v93
    %771 = vmatprep.subr.mxu0 0.0
    %772 = vmatpush1.msra.mxu0 %v92
    %773 = vmatprep.subr.mxu0 0.0
    %774 = vmatpush1.msra.mxu0 %v91
    %775 = vmatprep.subr.mxu0 0.0
    %776 = vmatpush2.msra.mxu0 0.0
    %777 = vmatprep.subr.mxu0 0.0
    %778 = vmatpush2.msra.mxu0 0.0
    %779 = vmatprep.subr.mxu0 0.0
    %780 = vmatpush2.msra.mxu0 0.0
    %781 = vmatprep.subr.mxu0 0.0
    %782 = vmatpush2.msra.mxu0 0.0
    %783 = vmatprep.subr.mxu0 0.0
    %784 = vmatpush2.msra.mxu0 0.0
    %785 = vmatprep.subr.mxu0 0.0
    %786 = vmatpush2.msra.mxu0 0.0
    %787 = vmatprep.subr.mxu0 0.0
    %788 = vmatpush2.msra.mxu0 0.0
    %789 = vmatprep.subr.mxu0 0.0
    %790 = vmatpush2.msra.mxu0 0.0
    %791 = vmatprep.subr.mxu0 0.0
    %792 = vmatpush2.msra.mxu0 0.0
    %793 = vmatprep.subr.mxu0 0.0
    %794 = vmatpush2.msra.mxu0 0.0
    %795 = vmatprep.subr.mxu0 0.0
    %796 = vmatpush2.msra.mxu0 0.0
    %797 = vmatprep.subr.mxu0 0.0
    %798 = vmatpush2.msra.mxu0 0.0
    %799 = vmatprep.subr.mxu0 0.0
    %800 = vmatpush2.msra.mxu0 0.0
    %801 = vmatprep.subr.mxu0 0.0
    %802 = vmatpush2.msra.mxu0 0.0
    %803 = vmatprep.subr.mxu0 0.0
    %804 = vmatpush2.msra.mxu0 0.0
    %805 = vmatprep.subr.mxu0 0.0
    %806 = vmatpush2.msra.mxu0 0.0
    %807 = vmatprep.mubr.f32.mxu0 0.0
    %808 = vmatmul.mubr.f32.gmra.mxu0 %v741
    %v809 = vpop.f32.mrf.mxu0
    %v810 = vadd.f32 %v111, %v809
    %v811 = vpop.f32.mrf.mxu0
    %812 = vdwg.mxu0
    %v813 = vxor.u32 %v810, 2147483648
    %v814 = vmul.f32 %v813, 1.442695
    %v815 = vpow.pop %v814
    %v816 = vadd.f32 %v815, 1.0
    %v817 = vrcp.pop %v816
    %v818 = vmul.f32 1.0, %v817
    %v819 = vtanh.pop %v810
    %v820 = vmul.f32 %v818, 0.0
    %822 = vrot.lane.b32.xlu0 %v819, 32
    %v823 = vpop.permute.xlu0 %822
    %v825 = vmul.f32 %v818, %v823
    %827 = vrot.lane.b32.xlu0 %v825, 32
    %v828 = vpop.permute.xlu0 %827
    %v830 = vadd.f32 %v820, %v828
    %v831 = vtanh.pop %v830
    %833 = vrot.lane.b32.xlu0 %v831, 32
    %v834 = vpop.permute.xlu0 %833
    %v836 = vmul.f32 %v818, %v834
    %838 = vrot.lane.b32.xlu0 %v836, 64
    %v839 = vpop.permute.xlu0 %838
    %vm841 = vcmask 257024
    %842 = vst.msk [vmem:[#allocation10] sm:$0xf] %vm841, %v839
    %v844 = vunpack.c.l.s4 1966171168
    %v845 = vunpack.c.0.s8 %v844
    %v846 = vlaneseq
    %v847 = vshrl.u32 %v846, 7
    %v848 = vsub.s32 %v845, %v847
    %v849 = vrot.slane %v733, %v848
    %v850 = vcombine.high %v849, %v849
    %v852 = vunpack.c.l.s4 1966171168
    %v853 = vunpack.c.0.s8 %v852
    %v854 = vlaneseq
    %v855 = vshrl.u32 %v854, 7
    %v856 = vsub.s32 %v853, %v855
    %v857 = vrot.slane %v849, %v856
    %v859 = vunpack.c.l.s4 1966171168
    %v860 = vunpack.c.0.s8 %v859
    %v861 = vlaneseq
    %v862 = vshrl.u32 %v861, 7
    %v863 = vsub.s32 %v860, %v862
    %v864 = vrot.slane %v850, %v863
    %v865 = vcombine.high %v857, %v857
    %v866 = vcombine.high %v864, %v864
    %v867 = vlaneseq
    %v868 = vshrl.u32 %v867, 7
    %v869 = vsub.s32 0, %v868
    %v870 = vrot.slane %v857, %v869
    %v871 = vlaneseq
    %v872 = vshrl.u32 %v871, 7
    %v873 = vsub.s32 0, %v872
    %v874 = vrot.slane %v864, %v873
    %v875 = vlaneseq
    %v876 = vshrl.u32 %v875, 7
    %v877 = vsub.s32 0, %v876
    %v878 = vrot.slane %v865, %v877
    %v879 = vlaneseq
    %v880 = vshrl.u32 %v879, 7
    %v881 = vsub.s32 0, %v880
    %v882 = vrot.slane %v866, %v881
    %891 = vrot.lane.b32.xlu0 %v184, 64
    %v892 = vpop.permute.xlu0 %891
    %893 = vrot.lane.b32.xlu0 %v257, 64
    %v894 = vpop.permute.xlu0 %893
    %895 = vrot.lane.b32.xlu0 %v330, 64
    %v896 = vpop.permute.xlu0 %895
    %897 = vrot.lane.b32.xlu0 %v403, 64
    %v898 = vpop.permute.xlu0 %897
    %v903 = vmul.f32 %v870, %v892
    %v904 = vmul.f32 %v874, %v894
    %v905 = vmul.f32 %v878, %v896
    %v906 = vmul.f32 %v882, %v898
    %v909 = vunpack.c.l.s4 1966171168
    %v910 = vunpack.c.0.s8 %v909
    %v911 = vlaneseq
    %v912 = vshrl.u32 %v911, 7
    %v913 = vsub.s32 %v910, %v912
    %v914 = vrot.slane %v727, %v913
    %v915 = vcombine.high %v914, %v914
    %v917 = vunpack.c.l.s4 1966171168
    %v918 = vunpack.c.0.s8 %v917
    %v919 = vlaneseq
    %v920 = vshrl.u32 %v919, 7
    %v921 = vsub.s32 %v918, %v920
    %v922 = vrot.slane %v914, %v921
    %v924 = vunpack.c.l.s4 1966171168
    %v925 = vunpack.c.0.s8 %v924
    %v926 = vlaneseq
    %v927 = vshrl.u32 %v926, 7
    %v928 = vsub.s32 %v925, %v927
    %v929 = vrot.slane %v915, %v928
    %v930 = vcombine.high %v922, %v922
    %v931 = vcombine.high %v929, %v929
    %v932 = vlaneseq
    %v933 = vshrl.u32 %v932, 7
    %v934 = vsub.s32 0, %v933
    %v935 = vrot.slane %v922, %v934
    %v936 = vlaneseq
    %v937 = vshrl.u32 %v936, 7
    %v938 = vsub.s32 0, %v937
    %v939 = vrot.slane %v929, %v938
    %v940 = vlaneseq
    %v941 = vshrl.u32 %v940, 7
    %v942 = vsub.s32 0, %v941
    %v943 = vrot.slane %v930, %v942
    %v944 = vlaneseq
    %v945 = vshrl.u32 %v944, 7
    %v946 = vsub.s32 0, %v945
    %v947 = vrot.slane %v931, %v946
    %v952 = vmul.f32 %v935, %v184
    %v953 = vmul.f32 %v939, %v257
    %v954 = vmul.f32 %v943, %v330
    %v955 = vmul.f32 %v947, %v403
    %960 = vrot.lane.b32.xlu0 %v952, 32
    %v961 = vpop.permute.xlu0 %960
    %962 = vrot.lane.b32.xlu0 %v953, 32
    %v963 = vpop.permute.xlu0 %962
    %964 = vrot.lane.b32.xlu0 %v954, 32
    %v965 = vpop.permute.xlu0 %964
    %966 = vrot.lane.b32.xlu0 %v955, 32
    %v967 = vpop.permute.xlu0 %966
    %v972 = vadd.f32 %v903, %v961
    %v973 = vadd.f32 %v904, %v963
    %v974 = vadd.f32 %v905, %v965
    %v975 = vadd.f32 %v906, %v967
    %980 = vrot.lane.b32.xlu0 %v972, 64
    %v981 = vpop.permute.xlu0 %980
    %982 = vrot.lane.b32.xlu0 %v973, 64
    %v983 = vpop.permute.xlu0 %982
    %984 = vrot.lane.b32.xlu0 %v974, 64
    %v985 = vpop.permute.xlu0 %984
    %986 = vrot.lane.b32.xlu0 %v975, 64
    %v987 = vpop.permute.xlu0 %986
    %v992 = vsel %vm430, %v981, 0.0
    %993 = vadd.xlane.f32.xlu0 %v992
    %v994 = vpop.xlane.xlu0 %993
    %v995 = vsel %vm430, %v983, 0.0
    %996 = vadd.xlane.f32.xlu0 %v995
    %v997 = vpop.xlane.xlu0 %996
    %v998 = vsel %vm430, %v985, 0.0
    %999 = vadd.xlane.f32.xlu0 %v998
    %v1000 = vpop.xlane.xlu0 %999
    %v1001 = vsel %vm430, %v987, 0.0
    %1002 = vadd.xlane.f32.xlu0 %v1001
    %v1003 = vpop.xlane.xlu0 %1002
    %v1008 = vlaneseq
    %v1009 = vshrl.u32 %v1008, 7
    %v1010 = vsub.s32 %v448, %v1009
    %v1011 = vrot.slane %v994, %v1010
    %v1012 = vlaneseq
    %v1013 = vshrl.u32 %v1012, 7
    %v1014 = vsub.s32 %v448, %v1013
    %v1015 = vrot.slane %v997, %v1014
    %v1016 = vlaneseq
    %v1017 = vshrl.u32 %v1016, 7
    %v1018 = vsub.s32 %v448, %v1017
    %v1019 = vrot.slane %v1000, %v1018
    %v1020 = vlaneseq
    %v1021 = vshrl.u32 %v1020, 7
    %v1022 = vsub.s32 %v448, %v1021
    %v1023 = vrot.slane %v1003, %v1022
    %v1024 = vsel %vm465, %v1015, %v1011
    %v1025 = vsel %vm467, %v1019, %v1024
    %v1026 = vsel %vm469, %v1023, %v1025
    %v1028 = vsel %vm472, %v1026, -inf
    %1029 = vmax.xlane.f32.xlu0 %v1028
    %v1030 = vpop.xlane.xlu0 %1029
    %v1032 = vlaneseq
    %v1033 = vshrl.u32 %v1032, 7
    %v1034 = vsub.s32 0, %v1033
    %v1035 = vrot.slane %v1030, %v1034
    %v1036 = vlaneseq
    %v1037 = vshrl.u32 %v1036, 7
    %v1038 = vsub.s32 1, %v1037
    %v1039 = vrot.slane %v1030, %v1038
    %v1040 = vlaneseq
    %v1041 = vshrl.u32 %v1040, 7
    %v1042 = vsub.s32 2, %v1041
    %v1043 = vrot.slane %v1030, %v1042
    %v1044 = vlaneseq
    %v1045 = vshrl.u32 %v1044, 7
    %v1046 = vsub.s32 3, %v1045
    %v1047 = vrot.slane %v1030, %v1046
    %v1052 = vsub.f32 %v994, %v1035
    %v1053 = vsub.f32 %v997, %v1039
    %v1054 = vsub.f32 %v1000, %v1043
    %v1055 = vsub.f32 %v1003, %v1047
    %v1056 = vmul.f32 %v1052, 1.442695
    %v1057 = vpow.pop %v1056
    %v1058 = vmul.f32 %v1053, 1.442695
    %v1059 = vpow.pop %v1058
    %v1060 = vmul.f32 %v1054, 1.442695
    %v1061 = vpow.pop %v1060
    %v1062 = vmul.f32 %v1055, 1.442695
    %v1063 = vpow.pop %v1062
    %1068 = vset.pattern.permute.xlu0 0
    %1069 = vperm.xlu0 %1068, %v1057
    %v1070 = vpop.permute.xlu0 %1069
    %1071 = vset.pattern.permute.xlu0 0
    %1072 = vperm.xlu0 %1071, %v1059
    %v1073 = vpop.permute.xlu0 %1072
    %1074 = vset.pattern.permute.xlu0 0
    %1075 = vperm.xlu0 %1074, %v1061
    %v1076 = vpop.permute.xlu0 %1075
    %1077 = vset.pattern.permute.xlu0 0
    %1078 = vperm.xlu0 %1077, %v1063
    %v1079 = vpop.permute.xlu0 %1078
    %v1080 = vlaneseq
    %v1081 = vshrl.u32 %v1080, 7
    %v1082 = vsub.s32 %v448, %v1081
    %v1083 = vrot.slane %v1070, %v1082
    %v1084 = vlaneseq
    %v1085 = vshrl.u32 %v1084, 7
    %v1086 = vsub.s32 %v448, %v1085
    %v1087 = vrot.slane %v1073, %v1086
    %v1088 = vlaneseq
    %v1089 = vshrl.u32 %v1088, 7
    %v1090 = vsub.s32 %v448, %v1089
    %v1091 = vrot.slane %v1076, %v1090
    %v1092 = vlaneseq
    %v1093 = vshrl.u32 %v1092, 7
    %v1094 = vsub.s32 %v448, %v1093
    %v1095 = vrot.slane %v1079, %v1094
    %v1096 = vsel %vm465, %v1087, %v1083
    %v1097 = vsel %vm467, %v1091, %v1096
    %v1098 = vsel %vm469, %v1095, %v1097
    %v1100 = vsel %vm472, %v1098, 0.0
    %1101 = vadd.xlane.f32.xlu0 %v1100
    %v1102 = vpop.xlane.xlu0 %1101
    %v1103 = vrcp.pop %v1102
    %v1104 = vmul.f32 1.0, %v1103
    %v1106 = vlaneseq
    %v1107 = vshrl.u32 %v1106, 7
    %v1108 = vsub.s32 0, %v1107
    %v1109 = vrot.slane %v1104, %v1108
    %v1110 = vlaneseq
    %v1111 = vshrl.u32 %v1110, 7
    %v1112 = vsub.s32 1, %v1111
    %v1113 = vrot.slane %v1104, %v1112
    %v1114 = vlaneseq
    %v1115 = vshrl.u32 %v1114, 7
    %v1116 = vsub.s32 2, %v1115
    %v1117 = vrot.slane %v1104, %v1116
    %v1118 = vlaneseq
    %v1119 = vshrl.u32 %v1118, 7
    %v1120 = vsub.s32 3, %v1119
    %v1121 = vrot.slane %v1104, %v1120
    %v1126 = vmul.f32 %v1057, %v1109
    %v1127 = vmul.f32 %v1059, %v1113
    %v1128 = vmul.f32 %v1061, %v1117
    %v1129 = vmul.f32 %v1063, %v1121
    %1131 = vset.pattern.permute.xlu0 0
    %1132 = vperm.xlu0 %1131, %v1126
    %v1133 = vpop.permute.xlu0 %1132
    %1136 = vset.pattern.permute.xlu0 0
    %1137 = vperm.xlu0 %1136, %v1127
    %v1138 = vpop.permute.xlu0 %1137
    %1141 = vset.pattern.permute.xlu0 0
    %1142 = vperm.xlu0 %1141, %v1128
    %v1143 = vpop.permute.xlu0 %1142
    %1146 = vset.pattern.permute.xlu0 0
    %1147 = vperm.xlu0 %1146, %v1129
    %v1148 = vpop.permute.xlu0 %1147
    %v1150 = vmul.f32 %v1133, %v79
    %v1151 = vmul.f32 %v1138, %v80
    %v1152 = vmul.f32 %v1143, %v81
    %v1153 = vmul.f32 %v1148, %v82
    %v1154 = vsel %vm113, %v1150, 0.0
    %v1155 = vrot.slane %v1154, 4
    %v1156 = vadd.f32 %v1154, %v1155
    %v1157 = vrot.slane %v1156, 2
    %v1158 = vadd.f32 %v1156, %v1157
    %v1159 = vrot.slane %v1158, 1
    %v1160 = vadd.f32 %v1158, %v1159
    %v1161 = vsel %vm113, %v1151, 0.0
    %v1162 = vrot.slane %v1161, 4
    %v1163 = vadd.f32 %v1161, %v1162
    %v1164 = vrot.slane %v1163, 2
    %v1165 = vadd.f32 %v1163, %v1164
    %v1166 = vrot.slane %v1165, 1
    %v1167 = vadd.f32 %v1165, %v1166
    %v1168 = vsel %vm113, %v1152, 0.0
    %v1169 = vrot.slane %v1168, 4
    %v1170 = vadd.f32 %v1168, %v1169
    %v1171 = vrot.slane %v1170, 2
    %v1172 = vadd.f32 %v1170, %v1171
    %v1173 = vrot.slane %v1172, 1
    %v1174 = vadd.f32 %v1172, %v1173
    %v1175 = vsel %vm113, %v1153, 0.0
    %v1176 = vrot.slane %v1175, 4
    %v1177 = vadd.f32 %v1175, %v1176
    %v1178 = vrot.slane %v1177, 2
    %v1179 = vadd.f32 %v1177, %v1178
    %v1180 = vrot.slane %v1179, 1
    %v1181 = vadd.f32 %v1179, %v1180
    %v1186 = vsel %vm465, %v1167, %v1160
    %v1187 = vsel %vm467, %v1174, %v1186
    %v1188 = vsel %vm469, %v1181, %v1187
    %1190 = vrot.lane.b32.xlu0 %v733, 80
    %v1191 = vpop.permute.xlu0 %1190
    %v1193 = vsel %vm113, %v1188, %v1191
    %v1195 = vsel %vm636, %v1193, 0
    %1197 = vmatprep.subr.mxu0 0.0
    %1198 = vmatpush1.msra.mxu0 0.0
    %1199 = vmatprep.subr.mxu0 0.0
    %1200 = vmatpush1.msra.mxu0 0.0
    %1201 = vmatprep.subr.mxu0 0.0
    %1202 = vmatpush1.msra.mxu0 0.0
    %1203 = vmatprep.subr.mxu0 0.0
    %1204 = vmatpush1.msra.mxu0 0.0
    %1205 = vmatprep.subr.mxu0 0.0
    %1206 = vmatpush1.msra.mxu0 0.0
    %1207 = vmatprep.subr.mxu0 0.0
    %1208 = vmatpush1.msra.mxu0 0.0
    %1209 = vmatprep.subr.mxu0 0.0
    %1210 = vmatpush1.msra.mxu0 0.0
    %1211 = vmatprep.subr.mxu0 0.0
    %1212 = vmatpush1.msra.mxu0 0.0
    %1213 = vmatprep.subr.mxu0 0.0
    %1214 = vmatpush1.msra.mxu0 0.0
    %1215 = vmatprep.subr.mxu0 0.0
    %1216 = vmatpush1.msra.mxu0 0.0
    %1217 = vmatprep.subr.mxu0 0.0
    %1218 = vmatpush1.msra.mxu0 %v90
    %1219 = vmatprep.subr.mxu0 0.0
    %1220 = vmatpush1.msra.mxu0 %v89
    %1221 = vmatprep.subr.mxu0 0.0
    %1222 = vmatpush1.msra.mxu0 %v88
    %1223 = vmatprep.subr.mxu0 0.0
    %1224 = vmatpush1.msra.mxu0 %v87
    %1225 = vmatprep.subr.mxu0 0.0
    %1226 = vmatpush1.msra.mxu0 %v86
    %1227 = vmatprep.subr.mxu0 0.0
    %1228 = vmatpush1.msra.mxu0 %v85
    %1229 = vmatprep.subr.mxu0 0.0
    %1230 = vmatpush2.msra.mxu0 0.0
    %1231 = vmatprep.subr.mxu0 0.0
    %1232 = vmatpush2.msra.mxu0 0.0
    %1233 = vmatprep.subr.mxu0 0.0
    %1234 = vmatpush2.msra.mxu0 0.0
    %1235 = vmatprep.subr.mxu0 0.0
    %1236 = vmatpush2.msra.mxu0 0.0
    %1237 = vmatprep.subr.mxu0 0.0
    %1238 = vmatpush2.msra.mxu0 0.0
    %1239 = vmatprep.subr.mxu0 0.0
    %1240 = vmatpush2.msra.mxu0 0.0
    %1241 = vmatprep.subr.mxu0 0.0
    %1242 = vmatpush2.msra.mxu0 0.0
    %1243 = vmatprep.subr.mxu0 0.0
    %1244 = vmatpush2.msra.mxu0 0.0
    %1245 = vmatprep.subr.mxu0 0.0
    %1246 = vmatpush2.msra.mxu0 0.0
    %1247 = vmatprep.subr.mxu0 0.0
    %1248 = vmatpush2.msra.mxu0 0.0
    %1249 = vmatprep.subr.mxu0 0.0
    %1250 = vmatpush2.msra.mxu0 0.0
    %1251 = vmatprep.subr.mxu0 0.0
    %1252 = vmatpush2.msra.mxu0 0.0
    %1253 = vmatprep.subr.mxu0 0.0
    %1254 = vmatpush2.msra.mxu0 0.0
    %1255 = vmatprep.subr.mxu0 0.0
    %1256 = vmatpush2.msra.mxu0 0.0
    %1257 = vmatprep.subr.mxu0 0.0
    %1258 = vmatpush2.msra.mxu0 0.0
    %1259 = vmatprep.subr.mxu0 0.0
    %1260 = vmatpush2.msra.mxu0 0.0
    %1261 = vmatprep.mubr.f32.mxu0 0.0
    %1262 = vmatmul.mubr.f32.gmra.mxu0 %v1195
    %v1263 = vpop.f32.mrf.mxu0
    %v1264 = vadd.f32 %v104, %v1263
    %v1265 = vpop.f32.mrf.mxu0
    %1266 = vdwg.mxu0
    %v1267 = vxor.u32 %v1264, 2147483648
    %v1268 = vmul.f32 %v1267, 1.442695
    %v1269 = vpow.pop %v1268
    %v1270 = vadd.f32 %v1269, 1.0
    %v1271 = vrcp.pop %v1270
    %v1272 = vmul.f32 1.0, %v1271
    %v1273 = vtanh.pop %v1264
    %v1274 = vmul.f32 %v1272, %v727
    %1276 = vrot.lane.b32.xlu0 %v1273, 32
    %v1277 = vpop.permute.xlu0 %1276
    %v1279 = vmul.f32 %v1272, %v1277
    %1281 = vrot.lane.b32.xlu0 %v1279, 32
    %v1282 = vpop.permute.xlu0 %1281
    %v1284 = vadd.f32 %v1274, %v1282
    %v1285 = vtanh.pop %v1284
    %1287 = vrot.lane.b32.xlu0 %v1285, 32
    %v1288 = vpop.permute.xlu0 %1287
    %v1290 = vmul.f32 %v1272, %v1288
    %1292 = vrot.lane.b32.xlu0 %v1290, 64
    %v1293 = vpop.permute.xlu0 %1292
    %1295 = vrot.lane.b32.xlu0 %v836, 96
    %v1296 = vpop.permute.xlu0 %1295
    %v1298 = vsel %vm430, %v1293, %v1296
    %v1300 = vsel %vm739, %v1298, 0
    %1302 = vmatprep.subr.mxu0 0.0
    %1303 = vmatpush1.msra.mxu0 0.0
    %1304 = vmatprep.subr.mxu0 0.0
    %1305 = vmatpush1.msra.mxu0 0.0
    %1306 = vmatprep.subr.mxu0 0.0
    %1307 = vmatpush1.msra.mxu0 0.0
    %1308 = vmatprep.subr.mxu0 0.0
    %1309 = vmatpush1.msra.mxu0 0.0
    %1310 = vmatprep.subr.mxu0 0.0
    %1311 = vmatpush1.msra.mxu0 0.0
    %1312 = vmatprep.subr.mxu0 0.0
    %1313 = vmatpush1.msra.mxu0 0.0
    %1314 = vmatprep.subr.mxu0 0.0
    %1315 = vmatpush1.msra.mxu0 0.0
    %1316 = vmatprep.subr.mxu0 0.0
    %1317 = vmatpush1.msra.mxu0 0.0
    %1318 = vmatprep.subr.mxu0 0.0
    %1319 = vmatpush1.msra.mxu0 %v98
    %1320 = vmatprep.subr.mxu0 0.0
    %1321 = vmatpush1.msra.mxu0 %v97
    %1322 = vmatprep.subr.mxu0 0.0
    %1323 = vmatpush1.msra.mxu0 %v96
    %1324 = vmatprep.subr.mxu0 0.0
    %1325 = vmatpush1.msra.mxu0 %v95
    %1326 = vmatprep.subr.mxu0 0.0
    %1327 = vmatpush1.msra.mxu0 %v94
    %1328 = vmatprep.subr.mxu0 0.0
    %1329 = vmatpush1.msra.mxu0 %v93
    %1330 = vmatprep.subr.mxu0 0.0
    %1331 = vmatpush1.msra.mxu0 %v92
    %1332 = vmatprep.subr.mxu0 0.0
    %1333 = vmatpush1.msra.mxu0 %v91
    %1334 = vmatprep.subr.mxu0 0.0
    %1335 = vmatpush2.msra.mxu0 0.0
    %1336 = vmatprep.subr.mxu0 0.0
    %1337 = vmatpush2.msra.mxu0 0.0
    %1338 = vmatprep.subr.mxu0 0.0
    %1339 = vmatpush2.msra.mxu0 0.0
    %1340 = vmatprep.subr.mxu0 0.0
    %1341 = vmatpush2.msra.mxu0 0.0
    %1342 = vmatprep.subr.mxu0 0.0
    %1343 = vmatpush2.msra.mxu0 0.0
    %1344 = vmatprep.subr.mxu0 0.0
    %1345 = vmatpush2.msra.mxu0 0.0
    %1346 = vmatprep.subr.mxu0 0.0
    %1347 = vmatpush2.msra.mxu0 0.0
    %1348 = vmatprep.subr.mxu0 0.0
    %1349 = vmatpush2.msra.mxu0 0.0
    %1350 = vmatprep.subr.mxu0 0.0
    %1351 = vmatpush2.msra.mxu0 0.0
    %1352 = vmatprep.subr.mxu0 0.0
    %1353 = vmatpush2.msra.mxu0 0.0
    %1354 = vmatprep.subr.mxu0 0.0
    %1355 = vmatpush2.msra.mxu0 0.0
    %1356 = vmatprep.subr.mxu0 0.0
    %1357 = vmatpush2.msra.mxu0 0.0
    %1358 = vmatprep.subr.mxu0 0.0
    %1359 = vmatpush2.msra.mxu0 0.0
    %1360 = vmatprep.subr.mxu0 0.0
    %1361 = vmatpush2.msra.mxu0 0.0
    %1362 = vmatprep.subr.mxu0 0.0
    %1363 = vmatpush2.msra.mxu0 0.0
    %1364 = vmatprep.subr.mxu0 0.0
    %1365 = vmatpush2.msra.mxu0 0.0
    %1366 = vmatprep.mubr.f32.mxu0 0.0
    %1367 = vmatmul.mubr.f32.gmra.mxu0 %v1300
    %v1368 = vpop.f32.mrf.mxu0
    %v1369 = vadd.f32 %v111, %v1368
    %v1370 = vpop.f32.mrf.mxu0
    %1371 = vdwg.mxu0
    %v1372 = vxor.u32 %v1369, 2147483648
    %v1373 = vmul.f32 %v1372, 1.442695
    %v1374 = vpow.pop %v1373
    %v1375 = vadd.f32 %v1374, 1.0
    %v1376 = vrcp.pop %v1375
    %v1377 = vmul.f32 1.0, %v1376
    %v1378 = vtanh.pop %v1369
    %v1379 = vmul.f32 %v1377, %v830
    %1381 = vrot.lane.b32.xlu0 %v1378, 32
    %v1382 = vpop.permute.xlu0 %1381
    %v1384 = vmul.f32 %v1377, %v1382
    %1386 = vrot.lane.b32.xlu0 %v1384, 32
    %v1387 = vpop.permute.xlu0 %1386
    %v1389 = vadd.f32 %v1379, %v1387
    %v1390 = vtanh.pop %v1389
    %1392 = vrot.lane.b32.xlu0 %v1390, 32
    %v1393 = vpop.permute.xlu0 %1392
    %v1395 = vmul.f32 %v1377, %v1393
    %1397 = vrot.lane.b32.xlu0 %v1395, 96
    %v1398 = vpop.permute.xlu0 %1397
    %vm1400 = vcmask 519424
    %1401 = vst.msk [vmem:[#allocation10] sm:$0xf] %vm1400, %v1398
    %v1403 = vunpack.c.l.s4 1966171168
    %v1404 = vunpack.c.0.s8 %v1403
    %v1405 = vlaneseq
    %v1406 = vshrl.u32 %v1405, 7
    %v1407 = vsub.s32 %v1404, %v1406
    %v1408 = vrot.slane %v1290, %v1407
    %v1409 = vcombine.high %v1408, %v1408
    %v1411 = vunpack.c.l.s4 1966171168
    %v1412 = vunpack.c.0.s8 %v1411
    %v1413 = vlaneseq
    %v1414 = vshrl.u32 %v1413, 7
    %v1415 = vsub.s32 %v1412, %v1414
    %v1416 = vrot.slane %v1408, %v1415
    %v1418 = vunpack.c.l.s4 1966171168
    %v1419 = vunpack.c.0.s8 %v1418
    %v1420 = vlaneseq
    %v1421 = vshrl.u32 %v1420, 7
    %v1422 = vsub.s32 %v1419, %v1421
    %v1423 = vrot.slane %v1409, %v1422
    %v1424 = vcombine.high %v1416, %v1416
    %v1425 = vcombine.high %v1423, %v1423
    %v1426 = vlaneseq
    %v1427 = vshrl.u32 %v1426, 7
    %v1428 = vsub.s32 0, %v1427
    %v1429 = vrot.slane %v1416, %v1428
    %v1430 = vlaneseq
    %v1431 = vshrl.u32 %v1430, 7
    %v1432 = vsub.s32 0, %v1431
    %v1433 = vrot.slane %v1423, %v1432
    %v1434 = vlaneseq
    %v1435 = vshrl.u32 %v1434, 7
    %v1436 = vsub.s32 0, %v1435
    %v1437 = vrot.slane %v1424, %v1436
    %v1438 = vlaneseq
    %v1439 = vshrl.u32 %v1438, 7
    %v1440 = vsub.s32 0, %v1439
    %v1441 = vrot.slane %v1425, %v1440
    %v1446 = vmul.f32 %v1429, %v892
    %v1447 = vmul.f32 %v1433, %v894
    %v1448 = vmul.f32 %v1437, %v896
    %v1449 = vmul.f32 %v1441, %v898
    %v1452 = vunpack.c.l.s4 1966171168
    %v1453 = vunpack.c.0.s8 %v1452
    %v1454 = vlaneseq
    %v1455 = vshrl.u32 %v1454, 7
    %v1456 = vsub.s32 %v1453, %v1455
    %v1457 = vrot.slane %v1284, %v1456
    %v1458 = vcombine.high %v1457, %v1457
    %v1460 = vunpack.c.l.s4 1966171168
    %v1461 = vunpack.c.0.s8 %v1460
    %v1462 = vlaneseq
    %v1463 = vshrl.u32 %v1462, 7
    %v1464 = vsub.s32 %v1461, %v1463
    %v1465 = vrot.slane %v1457, %v1464
    %v1467 = vunpack.c.l.s4 1966171168
    %v1468 = vunpack.c.0.s8 %v1467
    %v1469 = vlaneseq
    %v1470 = vshrl.u32 %v1469, 7
    %v1471 = vsub.s32 %v1468, %v1470
    %v1472 = vrot.slane %v1458, %v1471
    %v1473 = vcombine.high %v1465, %v1465
    %v1474 = vcombine.high %v1472, %v1472
    %v1475 = vlaneseq
    %v1476 = vshrl.u32 %v1475, 7
    %v1477 = vsub.s32 0, %v1476
    %v1478 = vrot.slane %v1465, %v1477
    %v1479 = vlaneseq
    %v1480 = vshrl.u32 %v1479, 7
    %v1481 = vsub.s32 0, %v1480
    %v1482 = vrot.slane %v1472, %v1481
    %v1483 = vlaneseq
    %v1484 = vshrl.u32 %v1483, 7
    %v1485 = vsub.s32 0, %v1484
    %v1486 = vrot.slane %v1473, %v1485
    %v1487 = vlaneseq
    %v1488 = vshrl.u32 %v1487, 7
    %v1489 = vsub.s32 0, %v1488
    %v1490 = vrot.slane %v1474, %v1489
    %v1495 = vmul.f32 %v1478, %v184
    %v1496 = vmul.f32 %v1482, %v257
    %v1497 = vmul.f32 %v1486, %v330
    %v1498 = vmul.f32 %v1490, %v403
    %1503 = vrot.lane.b32.xlu0 %v1495, 32
    %v1504 = vpop.permute.xlu0 %1503
    %1505 = vrot.lane.b32.xlu0 %v1496, 32
    %v1506 = vpop.permute.xlu0 %1505
    %1507 = vrot.lane.b32.xlu0 %v1497, 32
    %v1508 = vpop.permute.xlu0 %1507
    %1509 = vrot.lane.b32.xlu0 %v1498, 32
    %v1510 = vpop.permute.xlu0 %1509
    %v1515 = vadd.f32 %v1446, %v1504
    %v1516 = vadd.f32 %v1447, %v1506
    %v1517 = vadd.f32 %v1448, %v1508
    %v1518 = vadd.f32 %v1449, %v1510
    %1523 = vrot.lane.b32.xlu0 %v1515, 64
    %v1524 = vpop.permute.xlu0 %1523
    %1525 = vrot.lane.b32.xlu0 %v1516, 64
    %v1526 = vpop.permute.xlu0 %1525
    %1527 = vrot.lane.b32.xlu0 %v1517, 64
    %v1528 = vpop.permute.xlu0 %1527
    %1529 = vrot.lane.b32.xlu0 %v1518, 64
    %v1530 = vpop.permute.xlu0 %1529
    %v1535 = vsel %vm430, %v1524, 0.0
    %1536 = vadd.xlane.f32.xlu0 %v1535
    %v1537 = vpop.xlane.xlu0 %1536
    %v1538 = vsel %vm430, %v1526, 0.0
    %1539 = vadd.xlane.f32.xlu0 %v1538
    %v1540 = vpop.xlane.xlu0 %1539
    %v1541 = vsel %vm430, %v1528, 0.0
    %1542 = vadd.xlane.f32.xlu0 %v1541
    %v1543 = vpop.xlane.xlu0 %1542
    %v1544 = vsel %vm430, %v1530, 0.0
    %1545 = vadd.xlane.f32.xlu0 %v1544
    %v1546 = vpop.xlane.xlu0 %1545
    %v1551 = vlaneseq
    %v1552 = vshrl.u32 %v1551, 7
    %v1553 = vsub.s32 %v448, %v1552
    %v1554 = vrot.slane %v1537, %v1553
    %v1555 = vlaneseq
    %v1556 = vshrl.u32 %v1555, 7
    %v1557 = vsub.s32 %v448, %v1556
    %v1558 = vrot.slane %v1540, %v1557
    %v1559 = vlaneseq
    %v1560 = vshrl.u32 %v1559, 7
    %v1561 = vsub.s32 %v448, %v1560
    %v1562 = vrot.slane %v1543, %v1561
    %v1563 = vlaneseq
    %v1564 = vshrl.u32 %v1563, 7
    %v1565 = vsub.s32 %v448, %v1564
    %v1566 = vrot.slane %v1546, %v1565
    %v1567 = vsel %vm465, %v1558, %v1554
    %v1568 = vsel %vm467, %v1562, %v1567
    %v1569 = vsel %vm469, %v1566, %v1568
    %v1571 = vsel %vm472, %v1569, -inf
    %1572 = vmax.xlane.f32.xlu0 %v1571
    %v1573 = vpop.xlane.xlu0 %1572
    %v1575 = vlaneseq
    %v1576 = vshrl.u32 %v1575, 7
    %v1577 = vsub.s32 0, %v1576
    %v1578 = vrot.slane %v1573, %v1577
    %v1579 = vlaneseq
    %v1580 = vshrl.u32 %v1579, 7
    %v1581 = vsub.s32 1, %v1580
    %v1582 = vrot.slane %v1573, %v1581
    %v1583 = vlaneseq
    %v1584 = vshrl.u32 %v1583, 7
    %v1585 = vsub.s32 2, %v1584
    %v1586 = vrot.slane %v1573, %v1585
    %v1587 = vlaneseq
    %v1588 = vshrl.u32 %v1587, 7
    %v1589 = vsub.s32 3, %v1588
    %v1590 = vrot.slane %v1573, %v1589
    %v1595 = vsub.f32 %v1537, %v1578
    %v1596 = vsub.f32 %v1540, %v1582
    %v1597 = vsub.f32 %v1543, %v1586
    %v1598 = vsub.f32 %v1546, %v1590
    %v1599 = vmul.f32 %v1595, 1.442695
    %v1600 = vpow.pop %v1599
    %v1601 = vmul.f32 %v1596, 1.442695
    %v1602 = vpow.pop %v1601
    %v1603 = vmul.f32 %v1597, 1.442695
    %v1604 = vpow.pop %v1603
    %v1605 = vmul.f32 %v1598, 1.442695
    %v1606 = vpow.pop %v1605
    %1611 = vset.pattern.permute.xlu0 0
    %1612 = vperm.xlu0 %1611, %v1600
    %v1613 = vpop.permute.xlu0 %1612
    %1614 = vset.pattern.permute.xlu0 0
    %1615 = vperm.xlu0 %1614, %v1602
    %v1616 = vpop.permute.xlu0 %1615
    %1617 = vset.pattern.permute.xlu0 0
    %1618 = vperm.xlu0 %1617, %v1604
    %v1619 = vpop.permute.xlu0 %1618
    %1620 = vset.pattern.permute.xlu0 0
    %1621 = vperm.xlu0 %1620, %v1606
    %v1622 = vpop.permute.xlu0 %1621
    %v1623 = vlaneseq
    %v1624 = vshrl.u32 %v1623, 7
    %v1625 = vsub.s32 %v448, %v1624
    %v1626 = vrot.slane %v1613, %v1625
    %v1627 = vlaneseq
    %v1628 = vshrl.u32 %v1627, 7
    %v1629 = vsub.s32 %v448, %v1628
    %v1630 = vrot.slane %v1616, %v1629
    %v1631 = vlaneseq
    %v1632 = vshrl.u32 %v1631, 7
    %v1633 = vsub.s32 %v448, %v1632
    %v1634 = vrot.slane %v1619, %v1633
    %v1635 = vlaneseq
    %v1636 = vshrl.u32 %v1635, 7
    %v1637 = vsub.s32 %v448, %v1636
    %v1638 = vrot.slane %v1622, %v1637
    %v1639 = vsel %vm465, %v1630, %v1626
    %v1640 = vsel %vm467, %v1634, %v1639
    %v1641 = vsel %vm469, %v1638, %v1640
    %v1643 = vsel %vm472, %v1641, 0.0
    %1644 = vadd.xlane.f32.xlu0 %v1643
    %v1645 = vpop.xlane.xlu0 %1644
    %v1646 = vrcp.pop %v1645
    %v1647 = vmul.f32 1.0, %v1646
    %v1649 = vlaneseq
    %v1650 = vshrl.u32 %v1649, 7
    %v1651 = vsub.s32 0, %v1650
    %v1652 = vrot.slane %v1647, %v1651
    %v1653 = vlaneseq
    %v1654 = vshrl.u32 %v1653, 7
    %v1655 = vsub.s32 1, %v1654
    %v1656 = vrot.slane %v1647, %v1655
    %v1657 = vlaneseq
    %v1658 = vshrl.u32 %v1657, 7
    %v1659 = vsub.s32 2, %v1658
    %v1660 = vrot.slane %v1647, %v1659
    %v1661 = vlaneseq
    %v1662 = vshrl.u32 %v1661, 7
    %v1663 = vsub.s32 3, %v1662
    %v1664 = vrot.slane %v1647, %v1663
    %v1669 = vmul.f32 %v1600, %v1652
    %v1670 = vmul.f32 %v1602, %v1656
    %v1671 = vmul.f32 %v1604, %v1660
    %v1672 = vmul.f32 %v1606, %v1664
    %1674 = vset.pattern.permute.xlu0 0
    %1675 = vperm.xlu0 %1674, %v1669
    %v1676 = vpop.permute.xlu0 %1675
    %1679 = vset.pattern.permute.xlu0 0
    %1680 = vperm.xlu0 %1679, %v1670
    %v1681 = vpop.permute.xlu0 %1680
    %1684 = vset.pattern.permute.xlu0 0
    %1685 = vperm.xlu0 %1684, %v1671
    %v1686 = vpop.permute.xlu0 %1685
    %1689 = vset.pattern.permute.xlu0 0
    %1690 = vperm.xlu0 %1689, %v1672
    %v1691 = vpop.permute.xlu0 %1690
    %v1693 = vmul.f32 %v1676, %v79
    %v1694 = vmul.f32 %v1681, %v80
    %v1695 = vmul.f32 %v1686, %v81
    %v1696 = vmul.f32 %v1691, %v82
    %v1697 = vsel %vm113, %v1693, 0.0
    %v1698 = vrot.slane %v1697, 4
    %v1699 = vadd.f32 %v1697, %v1698
    %v1700 = vrot.slane %v1699, 2
    %v1701 = vadd.f32 %v1699, %v1700
    %v1702 = vrot.slane %v1701, 1
    %v1703 = vadd.f32 %v1701, %v1702
    %v1704 = vsel %vm113, %v1694, 0.0
    %v1705 = vrot.slane %v1704, 4
    %v1706 = vadd.f32 %v1704, %v1705
    %v1707 = vrot.slane %v1706, 2
    %v1708 = vadd.f32 %v1706, %v1707
    %v1709 = vrot.slane %v1708, 1
    %v1710 = vadd.f32 %v1708, %v1709
    %v1711 = vsel %vm113, %v1695, 0.0
    %v1712 = vrot.slane %v1711, 4
    %v1713 = vadd.f32 %v1711, %v1712
    %v1714 = vrot.slane %v1713, 2
    %v1715 = vadd.f32 %v1713, %v1714
    %v1716 = vrot.slane %v1715, 1
    %v1717 = vadd.f32 %v1715, %v1716
    %v1718 = vsel %vm113, %v1696, 0.0
    %v1719 = vrot.slane %v1718, 4
    %v1720 = vadd.f32 %v1718, %v1719
    %v1721 = vrot.slane %v1720, 2
    %v1722 = vadd.f32 %v1720, %v1721
    %v1723 = vrot.slane %v1722, 1
    %v1724 = vadd.f32 %v1722, %v1723
    %v1729 = vsel %vm465, %v1710, %v1703
    %v1730 = vsel %vm467, %v1717, %v1729
    %v1731 = vsel %vm469, %v1724, %v1730
    %1733 = vrot.lane.b32.xlu0 %v1290, 80
    %v1734 = vpop.permute.xlu0 %1733
    %v1736 = vsel %vm113, %v1731, %v1734
    %v1738 = vsel %vm636, %v1736, 0
    %1740 = vmatprep.subr.mxu0 0.0
    %1741 = vmatpush1.msra.mxu0 0.0
    %1742 = vmatprep.subr.mxu0 0.0
    %1743 = vmatpush1.msra.mxu0 0.0
    %1744 = vmatprep.subr.mxu0 0.0
    %1745 = vmatpush1.msra.mxu0 0.0
    %1746 = vmatprep.subr.mxu0 0.0
    %1747 = vmatpush1.msra.mxu0 0.0
    %1748 = vmatprep.subr.mxu0 0.0
    %1749 = vmatpush1.msra.mxu0 0.0
    %1750 = vmatprep.subr.mxu0 0.0
    %1751 = vmatpush1.msra.mxu0 0.0
    %1752 = vmatprep.subr.mxu0 0.0
    %1753 = vmatpush1.msra.mxu0 0.0
    %1754 = vmatprep.subr.mxu0 0.0
    %1755 = vmatpush1.msra.mxu0 0.0
    %1756 = vmatprep.subr.mxu0 0.0
    %1757 = vmatpush1.msra.mxu0 0.0
    %1758 = vmatprep.subr.mxu0 0.0
    %1759 = vmatpush1.msra.mxu0 0.0
    %1760 = vmatprep.subr.mxu0 0.0
    %1761 = vmatpush1.msra.mxu0 %v90
    %1762 = vmatprep.subr.mxu0 0.0
    %1763 = vmatpush1.msra.mxu0 %v89
    %1764 = vmatprep.subr.mxu0 0.0
    %1765 = vmatpush1.msra.mxu0 %v88
    %1766 = vmatprep.subr.mxu0 0.0
    %1767 = vmatpush1.msra.mxu0 %v87
    %1768 = vmatprep.subr.mxu0 0.0
    %1769 = vmatpush1.msra.mxu0 %v86
    %1770 = vmatprep.subr.mxu0 0.0
    %1771 = vmatpush1.msra.mxu0 %v85
    %1772 = vmatprep.subr.mxu0 0.0
    %1773 = vmatpush2.msra.mxu0 0.0
    %1774 = vmatprep.subr.mxu0 0.0
    %1775 = vmatpush2.msra.mxu0 0.0
    %1776 = vmatprep.subr.mxu0 0.0
    %1777 = vmatpush2.msra.mxu0 0.0
    %1778 = vmatprep.subr.mxu0 0.0
    %1779 = vmatpush2.msra.mxu0 0.0
    %1780 = vmatprep.subr.mxu0 0.0
    %1781 = vmatpush2.msra.mxu0 0.0
    %1782 = vmatprep.subr.mxu0 0.0
    %1783 = vmatpush2.msra.mxu0 0.0
    %1784 = vmatprep.subr.mxu0 0.0
    %1785 = vmatpush2.msra.mxu0 0.0
    %1786 = vmatprep.subr.mxu0 0.0
    %1787 = vmatpush2.msra.mxu0 0.0
    %1788 = vmatprep.subr.mxu0 0.0
    %1789 = vmatpush2.msra.mxu0 0.0
    %1790 = vmatprep.subr.mxu0 0.0
    %1791 = vmatpush2.msra.mxu0 0.0
    %1792 = vmatprep.subr.mxu0 0.0
    %1793 = vmatpush2.msra.mxu0 0.0
    %1794 = vmatprep.subr.mxu0 0.0
    %1795 = vmatpush2.msra.mxu0 0.0
    %1796 = vmatprep.subr.mxu0 0.0
    %1797 = vmatpush2.msra.mxu0 0.0
    %1798 = vmatprep.subr.mxu0 0.0
    %1799 = vmatpush2.msra.mxu0 0.0
    %1800 = vmatprep.subr.mxu0 0.0
    %1801 = vmatpush2.msra.mxu0 0.0
    %1802 = vmatprep.subr.mxu0 0.0
    %1803 = vmatpush2.msra.mxu0 0.0
    %1804 = vmatprep.mubr.f32.mxu0 0.0
    %1805 = vmatmul.mubr.f32.gmra.mxu0 %v1738
    %v1806 = vpop.f32.mrf.mxu0
    %v1807 = vadd.f32 %v104, %v1806
    %v1808 = vpop.f32.mrf.mxu0
    %1809 = vdwg.mxu0
    %v1810 = vxor.u32 %v1807, 2147483648
    %v1811 = vmul.f32 %v1810, 1.442695
    %v1812 = vpow.pop %v1811
    %v1813 = vadd.f32 %v1812, 1.0
    %v1814 = vrcp.pop %v1813
    %v1815 = vmul.f32 1.0, %v1814
    %v1816 = vtanh.pop %v1807
    %v1817 = vmul.f32 %v1815, %v1284
    %1819 = vrot.lane.b32.xlu0 %v1816, 32
    %v1820 = vpop.permute.xlu0 %1819
    %v1822 = vmul.f32 %v1815, %v1820
    %1824 = vrot.lane.b32.xlu0 %v1822, 32
    %v1825 = vpop.permute.xlu0 %1824
    %v1827 = vadd.f32 %v1817, %v1825
    %v1828 = vtanh.pop %v1827
    %1830 = vrot.lane.b32.xlu0 %v1828, 32
    %v1831 = vpop.permute.xlu0 %1830
    %v1833 = vmul.f32 %v1815, %v1831
    %1835 = vrot.lane.b32.xlu0 %v1833, 64
    %v1836 = vpop.permute.xlu0 %1835
    %v1838 = vsel %vm430, %v1836, %v1398
    %v1840 = vsel %vm739, %v1838, 0
    %1842 = vmatprep.subr.mxu0 0.0
    %1843 = vmatpush1.msra.mxu0 0.0
    %1844 = vmatprep.subr.mxu0 0.0
    %1845 = vmatpush1.msra.mxu0 0.0
    %1846 = vmatprep.subr.mxu0 0.0
    %1847 = vmatpush1.msra.mxu0 0.0
    %1848 = vmatprep.subr.mxu0 0.0
    %1849 = vmatpush1.msra.mxu0 0.0
    %1850 = vmatprep.subr.mxu0 0.0
    %1851 = vmatpush1.msra.mxu0 0.0
    %1852 = vmatprep.subr.mxu0 0.0
    %1853 = vmatpush1.msra.mxu0 0.0
    %1854 = vmatprep.subr.mxu0 0.0
    %1855 = vmatpush1.msra.mxu0 0.0
    %1856 = vmatprep.subr.mxu0 0.0
    %1857 = vmatpush1.msra.mxu0 0.0
    %1858 = vmatprep.subr.mxu0 0.0
    %1859 = vmatpush1.msra.mxu0 %v98
    %1860 = vmatprep.subr.mxu0 0.0
    %1861 = vmatpush1.msra.mxu0 %v97
    %1862 = vmatprep.subr.mxu0 0.0
    %1863 = vmatpush1.msra.mxu0 %v96
    %1864 = vmatprep.subr.mxu0 0.0
    %1865 = vmatpush1.msra.mxu0 %v95
    %1866 = vmatprep.subr.mxu0 0.0
    %1867 = vmatpush1.msra.mxu0 %v94
    %1868 = vmatprep.subr.mxu0 0.0
    %1869 = vmatpush1.msra.mxu0 %v93
    %1870 = vmatprep.subr.mxu0 0.0
    %1871 = vmatpush1.msra.mxu0 %v92
    %1872 = vmatprep.subr.mxu0 0.0
    %1873 = vmatpush1.msra.mxu0 %v91
    %1874 = vmatprep.subr.mxu0 0.0
    %1875 = vmatpush2.msra.mxu0 0.0
    %1876 = vmatprep.subr.mxu0 0.0
    %1877 = vmatpush2.msra.mxu0 0.0
    %1878 = vmatprep.subr.mxu0 0.0
    %1879 = vmatpush2.msra.mxu0 0.0
    %1880 = vmatprep.subr.mxu0 0.0
    %1881 = vmatpush2.msra.mxu0 0.0
    %1882 = vmatprep.subr.mxu0 0.0
    %1883 = vmatpush2.msra.mxu0 0.0
    %1884 = vmatprep.subr.mxu0 0.0
    %1885 = vmatpush2.msra.mxu0 0.0
    %1886 = vmatprep.subr.mxu0 0.0
    %1887 = vmatpush2.msra.mxu0 0.0
    %1888 = vmatprep.subr.mxu0 0.0
    %1889 = vmatpush2.msra.mxu0 0.0
    %1890 = vmatprep.subr.mxu0 0.0
    %1891 = vmatpush2.msra.mxu0 0.0
    %1892 = vmatprep.subr.mxu0 0.0
    %1893 = vmatpush2.msra.mxu0 0.0
    %1894 = vmatprep.subr.mxu0 0.0
    %1895 = vmatpush2.msra.mxu0 0.0
    %1896 = vmatprep.subr.mxu0 0.0
    %1897 = vmatpush2.msra.mxu0 0.0
    %1898 = vmatprep.subr.mxu0 0.0
    %1899 = vmatpush2.msra.mxu0 0.0
    %1900 = vmatprep.subr.mxu0 0.0
    %1901 = vmatpush2.msra.mxu0 0.0
    %1902 = vmatprep.subr.mxu0 0.0
    %1903 = vmatpush2.msra.mxu0 0.0
    %1904 = vmatprep.subr.mxu0 0.0
    %1905 = vmatpush2.msra.mxu0 0.0
    %1906 = vmatprep.mubr.f32.mxu0 0.0
    %1907 = vmatmul.mubr.f32.gmra.mxu0 %v1840
    %v1908 = vpop.f32.mrf.mxu0
    %v1909 = vadd.f32 %v111, %v1908
    %v1910 = vpop.f32.mrf.mxu0
    %1911 = vdwg.mxu0
    %v1912 = vxor.u32 %v1909, 2147483648
    %v1913 = vmul.f32 %v1912, 1.442695
    %v1914 = vpow.pop %v1913
    %v1915 = vadd.f32 %v1914, 1.0
    %v1916 = vrcp.pop %v1915
    %v1917 = vmul.f32 1.0, %v1916
    %v1918 = vtanh.pop %v1909
    %v1919 = vmul.f32 %v1917, %v1389
    %1921 = vrot.lane.b32.xlu0 %v1918, 32
    %v1922 = vpop.permute.xlu0 %1921
    %v1924 = vmul.f32 %v1917, %v1922
    %1926 = vrot.lane.b32.xlu0 %v1924, 32
    %v1927 = vpop.permute.xlu0 %1926
    %v1929 = vadd.f32 %v1919, %v1927
    %v1930 = vtanh.pop %v1929
    %1932 = vrot.lane.b32.xlu0 %v1930, 32
    %v1933 = vpop.permute.xlu0 %1932
    %v1935 = vmul.f32 %v1917, %v1933
    %vm1936 = vcmask 781824
    %1937 = vst.msk [vmem:[#allocation10] sm:$0xf] %vm1936, %v1935
    %v1939 = vunpack.c.l.s4 1966171168
    %v1940 = vunpack.c.0.s8 %v1939
    %v1941 = vlaneseq
    %v1942 = vshrl.u32 %v1941, 7
    %v1943 = vsub.s32 %v1940, %v1942
    %v1944 = vrot.slane %v1833, %v1943
    %v1945 = vcombine.high %v1944, %v1944
    %v1947 = vunpack.c.l.s4 1966171168
    %v1948 = vunpack.c.0.s8 %v1947
    %v1949 = vlaneseq
    %v1950 = vshrl.u32 %v1949, 7
    %v1951 = vsub.s32 %v1948, %v1950
    %v1952 = vrot.slane %v1944, %v1951
    %v1954 = vunpack.c.l.s4 1966171168
    %v1955 = vunpack.c.0.s8 %v1954
    %v1956 = vlaneseq
    %v1957 = vshrl.u32 %v1956, 7
    %v1958 = vsub.s32 %v1955, %v1957
    %v1959 = vrot.slane %v1945, %v1958
    %v1960 = vcombine.high %v1952, %v1952
    %v1961 = vcombine.high %v1959, %v1959
    %v1962 = vlaneseq
    %v1963 = vshrl.u32 %v1962, 7
    %v1964 = vsub.s32 0, %v1963
    %v1965 = vrot.slane %v1952, %v1964
    %v1966 = vlaneseq
    %v1967 = vshrl.u32 %v1966, 7
    %v1968 = vsub.s32 0, %v1967
    %v1969 = vrot.slane %v1959, %v1968
    %v1970 = vlaneseq
    %v1971 = vshrl.u32 %v1970, 7
    %v1972 = vsub.s32 0, %v1971
    %v1973 = vrot.slane %v1960, %v1972
    %v1974 = vlaneseq
    %v1975 = vshrl.u32 %v1974, 7
    %v1976 = vsub.s32 0, %v1975
    %v1977 = vrot.slane %v1961, %v1976
    %v1982 = vmul.f32 %v1965, %v892
    %v1983 = vmul.f32 %v1969, %v894
    %v1984 = vmul.f32 %v1973, %v896
    %v1985 = vmul.f32 %v1977, %v898
    %v1988 = vunpack.c.l.s4 1966171168
    %v1989 = vunpack.c.0.s8 %v1988
    %v1990 = vlaneseq
    %v1991 = vshrl.u32 %v1990, 7
    %v1992 = vsub.s32 %v1989, %v1991
    %v1993 = vrot.slane %v1827, %v1992
    %v1994 = vcombine.high %v1993, %v1993
    %v1996 = vunpack.c.l.s4 1966171168
    %v1997 = vunpack.c.0.s8 %v1996
    %v1998 = vlaneseq
    %v1999 = vshrl.u32 %v1998, 7
    %v2000 = vsub.s32 %v1997, %v1999
    %v2001 = vrot.slane %v1993, %v2000
    %v2003 = vunpack.c.l.s4 1966171168
    %v2004 = vunpack.c.0.s8 %v2003
    %v2005 = vlaneseq
    %v2006 = vshrl.u32 %v2005, 7
    %v2007 = vsub.s32 %v2004, %v2006
    %v2008 = vrot.slane %v1994, %v2007
    %v2009 = vcombine.high %v2001, %v2001
    %v2010 = vcombine.high %v2008, %v2008
    %v2011 = vlaneseq
    %v2012 = vshrl.u32 %v2011, 7
    %v2013 = vsub.s32 0, %v2012
    %v2014 = vrot.slane %v2001, %v2013
    %v2015 = vlaneseq
    %v2016 = vshrl.u32 %v2015, 7
    %v2017 = vsub.s32 0, %v2016
    %v2018 = vrot.slane %v2008, %v2017
    %v2019 = vlaneseq
    %v2020 = vshrl.u32 %v2019, 7
    %v2021 = vsub.s32 0, %v2020
    %v2022 = vrot.slane %v2009, %v2021
    %v2023 = vlaneseq
    %v2024 = vshrl.u32 %v2023, 7
    %v2025 = vsub.s32 0, %v2024
    %v2026 = vrot.slane %v2010, %v2025
    %v2031 = vmul.f32 %v2014, %v184
    %v2032 = vmul.f32 %v2018, %v257
    %v2033 = vmul.f32 %v2022, %v330
    %v2034 = vmul.f32 %v2026, %v403
    %2039 = vrot.lane.b32.xlu0 %v2031, 32
    %v2040 = vpop.permute.xlu0 %2039
    %2041 = vrot.lane.b32.xlu0 %v2032, 32
    %v2042 = vpop.permute.xlu0 %2041
    %2043 = vrot.lane.b32.xlu0 %v2033, 32
    %v2044 = vpop.permute.xlu0 %2043
    %2045 = vrot.lane.b32.xlu0 %v2034, 32
    %v2046 = vpop.permute.xlu0 %2045
    %v2051 = vadd.f32 %v1982, %v2040
    %v2052 = vadd.f32 %v1983, %v2042
    %v2053 = vadd.f32 %v1984, %v2044
    %v2054 = vadd.f32 %v1985, %v2046
    %2059 = vrot.lane.b32.xlu0 %v2051, 64
    %v2060 = vpop.permute.xlu0 %2059
    %2061 = vrot.lane.b32.xlu0 %v2052, 64
    %v2062 = vpop.permute.xlu0 %2061
    %2063 = vrot.lane.b32.xlu0 %v2053, 64
    %v2064 = vpop.permute.xlu0 %2063
    %2065 = vrot.lane.b32.xlu0 %v2054, 64
    %v2066 = vpop.permute.xlu0 %2065
    %v2071 = vsel %vm430, %v2060, 0.0
    %2072 = vadd.xlane.f32.xlu0 %v2071
    %v2073 = vpop.xlane.xlu0 %2072
    %v2074 = vsel %vm430, %v2062, 0.0
    %2075 = vadd.xlane.f32.xlu0 %v2074
    %v2076 = vpop.xlane.xlu0 %2075
    %v2077 = vsel %vm430, %v2064, 0.0
    %2078 = vadd.xlane.f32.xlu0 %v2077
    %v2079 = vpop.xlane.xlu0 %2078
    %v2080 = vsel %vm430, %v2066, 0.0
    %2081 = vadd.xlane.f32.xlu0 %v2080
    %v2082 = vpop.xlane.xlu0 %2081
    %v2087 = vlaneseq
    %v2088 = vshrl.u32 %v2087, 7
    %v2089 = vsub.s32 %v448, %v2088
    %v2090 = vrot.slane %v2073, %v2089
    %v2091 = vlaneseq
    %v2092 = vshrl.u32 %v2091, 7
    %v2093 = vsub.s32 %v448, %v2092
    %v2094 = vrot.slane %v2076, %v2093
    %v2095 = vlaneseq
    %v2096 = vshrl.u32 %v2095, 7
    %v2097 = vsub.s32 %v448, %v2096
    %v2098 = vrot.slane %v2079, %v2097
    %v2099 = vlaneseq
    %v2100 = vshrl.u32 %v2099, 7
    %v2101 = vsub.s32 %v448, %v2100
    %v2102 = vrot.slane %v2082, %v2101
    %v2103 = vsel %vm465, %v2094, %v2090
    %v2104 = vsel %vm467, %v2098, %v2103
    %v2105 = vsel %vm469, %v2102, %v2104
    %v2107 = vsel %vm472, %v2105, -inf
    %2108 = vmax.xlane.f32.xlu0 %v2107
    %v2109 = vpop.xlane.xlu0 %2108
    %v2111 = vlaneseq
    %v2112 = vshrl.u32 %v2111, 7
    %v2113 = vsub.s32 0, %v2112
    %v2114 = vrot.slane %v2109, %v2113
    %v2115 = vlaneseq
    %v2116 = vshrl.u32 %v2115, 7
    %v2117 = vsub.s32 1, %v2116
    %v2118 = vrot.slane %v2109, %v2117
    %v2119 = vlaneseq
    %v2120 = vshrl.u32 %v2119, 7
    %v2121 = vsub.s32 2, %v2120
    %v2122 = vrot.slane %v2109, %v2121
    %v2123 = vlaneseq
    %v2124 = vshrl.u32 %v2123, 7
    %v2125 = vsub.s32 3, %v2124
    %v2126 = vrot.slane %v2109, %v2125
    %v2131 = vsub.f32 %v2073, %v2114
    %v2132 = vsub.f32 %v2076, %v2118
    %v2133 = vsub.f32 %v2079, %v2122
    %v2134 = vsub.f32 %v2082, %v2126
    %v2135 = vmul.f32 %v2131, 1.442695
    %v2136 = vpow.pop %v2135
    %v2137 = vmul.f32 %v2132, 1.442695
    %v2138 = vpow.pop %v2137
    %v2139 = vmul.f32 %v2133, 1.442695
    %v2140 = vpow.pop %v2139
    %v2141 = vmul.f32 %v2134, 1.442695
    %v2142 = vpow.pop %v2141
    %2147 = vset.pattern.permute.xlu0 0
    %2148 = vperm.xlu0 %2147, %v2136
    %v2149 = vpop.permute.xlu0 %2148
    %2150 = vset.pattern.permute.xlu0 0
    %2151 = vperm.xlu0 %2150, %v2138
    %v2152 = vpop.permute.xlu0 %2151
    %2153 = vset.pattern.permute.xlu0 0
    %2154 = vperm.xlu0 %2153, %v2140
    %v2155 = vpop.permute.xlu0 %2154
    %2156 = vset.pattern.permute.xlu0 0
    %2157 = vperm.xlu0 %2156, %v2142
    %v2158 = vpop.permute.xlu0 %2157
    %v2159 = vlaneseq
    %v2160 = vshrl.u32 %v2159, 7
    %v2161 = vsub.s32 %v448, %v2160
    %v2162 = vrot.slane %v2149, %v2161
    %v2163 = vlaneseq
    %v2164 = vshrl.u32 %v2163, 7
    %v2165 = vsub.s32 %v448, %v2164
    %v2166 = vrot.slane %v2152, %v2165
    %v2167 = vlaneseq
    %v2168 = vshrl.u32 %v2167, 7
    %v2169 = vsub.s32 %v448, %v2168
    %v2170 = vrot.slane %v2155, %v2169
    %v2171 = vlaneseq
    %v2172 = vshrl.u32 %v2171, 7
    %v2173 = vsub.s32 %v448, %v2172
    %v2174 = vrot.slane %v2158, %v2173
    %v2175 = vsel %vm465, %v2166, %v2162
    %v2176 = vsel %vm467, %v2170, %v2175
    %v2177 = vsel %vm469, %v2174, %v2176
    %v2179 = vsel %vm472, %v2177, 0.0
    %2180 = vadd.xlane.f32.xlu0 %v2179
    %v2181 = vpop.xlane.xlu0 %2180
    %v2182 = vrcp.pop %v2181
    %v2183 = vmul.f32 1.0, %v2182
    %v2185 = vlaneseq
    %v2186 = vshrl.u32 %v2185, 7
    %v2187 = vsub.s32 0, %v2186
    %v2188 = vrot.slane %v2183, %v2187
    %v2189 = vlaneseq
    %v2190 = vshrl.u32 %v2189, 7
    %v2191 = vsub.s32 1, %v2190
    %v2192 = vrot.slane %v2183, %v2191
    %v2193 = vlaneseq
    %v2194 = vshrl.u32 %v2193, 7
    %v2195 = vsub.s32 2, %v2194
    %v2196 = vrot.slane %v2183, %v2195
    %v2197 = vlaneseq
    %v2198 = vshrl.u32 %v2197, 7
    %v2199 = vsub.s32 3, %v2198
    %v2200 = vrot.slane %v2183, %v2199
    %v2205 = vmul.f32 %v2136, %v2188
    %v2206 = vmul.f32 %v2138, %v2192
    %v2207 = vmul.f32 %v2140, %v2196
    %v2208 = vmul.f32 %v2142, %v2200
    %2210 = vset.pattern.permute.xlu0 0
    %2211 = vperm.xlu0 %2210, %v2205
    %v2212 = vpop.permute.xlu0 %2211
    %2215 = vset.pattern.permute.xlu0 0
    %2216 = vperm.xlu0 %2215, %v2206
    %v2217 = vpop.permute.xlu0 %2216
    %2220 = vset.pattern.permute.xlu0 0
    %2221 = vperm.xlu0 %2220, %v2207
    %v2222 = vpop.permute.xlu0 %2221
    %2225 = vset.pattern.permute.xlu0 0
    %2226 = vperm.xlu0 %2225, %v2208
    %v2227 = vpop.permute.xlu0 %2226
    %v2229 = vmul.f32 %v2212, %v79
    %v2230 = vmul.f32 %v2217, %v80
    %v2231 = vmul.f32 %v2222, %v81
    %v2232 = vmul.f32 %v2227, %v82
    %v2233 = vsel %vm113, %v2229, 0.0
    %v2234 = vrot.slane %v2233, 4
    %v2235 = vadd.f32 %v2233, %v2234
    %v2236 = vrot.slane %v2235, 2
    %v2237 = vadd.f32 %v2235, %v2236
    %v2238 = vrot.slane %v2237, 1
    %v2239 = vadd.f32 %v2237, %v2238
    %v2240 = vsel %vm113, %v2230, 0.0
    %v2241 = vrot.slane %v2240, 4
    %v2242 = vadd.f32 %v2240, %v2241
    %v2243 = vrot.slane %v2242, 2
    %v2244 = vadd.f32 %v2242, %v2243
    %v2245 = vrot.slane %v2244, 1
    %v2246 = vadd.f32 %v2244, %v2245
    %v2247 = vsel %vm113, %v2231, 0.0
    %v2248 = vrot.slane %v2247, 4
    %v2249 = vadd.f32 %v2247, %v2248
    %v2250 = vrot.slane %v2249, 2
    %v2251 = vadd.f32 %v2249, %v2250
    %v2252 = vrot.slane %v2251, 1
    %v2253 = vadd.f32 %v2251, %v2252
    %v2254 = vsel %vm113, %v2232, 0.0
    %v2255 = vrot.slane %v2254, 4
    %v2256 = vadd.f32 %v2254, %v2255
    %v2257 = vrot.slane %v2256, 2
    %v2258 = vadd.f32 %v2256, %v2257
    %v2259 = vrot.slane %v2258, 1
    %v2260 = vadd.f32 %v2258, %v2259
    %v2265 = vsel %vm465, %v2246, %v2239
    %v2266 = vsel %vm467, %v2253, %v2265
    %v2267 = vsel %vm469, %v2260, %v2266
    %2269 = vrot.lane.b32.xlu0 %v1833, 80
    %v2270 = vpop.permute.xlu0 %2269
    %v2272 = vsel %vm113, %v2267, %v2270
    %v2274 = vsel %vm636, %v2272, 0
    %2276 = vmatprep.subr.mxu0 0.0
    %2277 = vmatpush1.msra.mxu0 0.0
    %2278 = vmatprep.subr.mxu0 0.0
    %2279 = vmatpush1.msra.mxu0 0.0
    %2280 = vmatprep.subr.mxu0 0.0
    %2281 = vmatpush1.msra.mxu0 0.0
    %2282 = vmatprep.subr.mxu0 0.0
    %2283 = vmatpush1.msra.mxu0 0.0
    %2284 = vmatprep.subr.mxu0 0.0
    %2285 = vmatpush1.msra.mxu0 0.0
    %2286 = vmatprep.subr.mxu0 0.0
    %2287 = vmatpush1.msra.mxu0 0.0
    %2288 = vmatprep.subr.mxu0 0.0
    %2289 = vmatpush1.msra.mxu0 0.0
    %2290 = vmatprep.subr.mxu0 0.0
    %2291 = vmatpush1.msra.mxu0 0.0
    %2292 = vmatprep.subr.mxu0 0.0
    %2293 = vmatpush1.msra.mxu0 0.0
    %2294 = vmatprep.subr.mxu0 0.0
    %2295 = vmatpush1.msra.mxu0 0.0
    %2296 = vmatprep.subr.mxu0 0.0
    %2297 = vmatpush1.msra.mxu0 %v90
    %2298 = vmatprep.subr.mxu0 0.0
    %2299 = vmatpush1.msra.mxu0 %v89
    %2300 = vmatprep.subr.mxu0 0.0
    %2301 = vmatpush1.msra.mxu0 %v88
    %2302 = vmatprep.subr.mxu0 0.0
    %2303 = vmatpush1.msra.mxu0 %v87
    %2304 = vmatprep.subr.mxu0 0.0
    %2305 = vmatpush1.msra.mxu0 %v86
    %2306 = vmatprep.subr.mxu0 0.0
    %2307 = vmatpush1.msra.mxu0 %v85
    %2308 = vmatprep.subr.mxu0 0.0
    %2309 = vmatpush2.msra.mxu0 0.0
    %2310 = vmatprep.subr.mxu0 0.0
    %2311 = vmatpush2.msra.mxu0 0.0
    %2312 = vmatprep.subr.mxu0 0.0
    %2313 = vmatpush2.msra.mxu0 0.0
    %2314 = vmatprep.subr.mxu0 0.0
    %2315 = vmatpush2.msra.mxu0 0.0
    %2316 = vmatprep.subr.mxu0 0.0
    %2317 = vmatpush2.msra.mxu0 0.0
    %2318 = vmatprep.subr.mxu0 0.0
    %2319 = vmatpush2.msra.mxu0 0.0
    %2320 = vmatprep.subr.mxu0 0.0
    %2321 = vmatpush2.msra.mxu0 0.0
    %2322 = vmatprep.subr.mxu0 0.0
    %2323 = vmatpush2.msra.mxu0 0.0
    %2324 = vmatprep.subr.mxu0 0.0
    %2325 = vmatpush2.msra.mxu0 0.0
    %2326 = vmatprep.subr.mxu0 0.0
    %2327 = vmatpush2.msra.mxu0 0.0
    %2328 = vmatprep.subr.mxu0 0.0
    %2329 = vmatpush2.msra.mxu0 0.0
    %2330 = vmatprep.subr.mxu0 0.0
    %2331 = vmatpush2.msra.mxu0 0.0
    %2332 = vmatprep.subr.mxu0 0.0
    %2333 = vmatpush2.msra.mxu0 0.0
    %2334 = vmatprep.subr.mxu0 0.0
    %2335 = vmatpush2.msra.mxu0 0.0
    %2336 = vmatprep.subr.mxu0 0.0
    %2337 = vmatpush2.msra.mxu0 0.0
    %2338 = vmatprep.subr.mxu0 0.0
    %2339 = vmatpush2.msra.mxu0 0.0
    %2340 = vmatprep.mubr.f32.mxu0 0.0
    %2341 = vmatmul.mubr.f32.gmra.mxu0 %v2274
    %v2342 = vpop.f32.mrf.mxu0
    %v2343 = vadd.f32 %v104, %v2342
    %v2344 = vpop.f32.mrf.mxu0
    %2345 = vdwg.mxu0
    %v2346 = vxor.u32 %v2343, 2147483648
    %v2347 = vmul.f32 %v2346, 1.442695
    %v2348 = vpow.pop %v2347
    %v2349 = vadd.f32 %v2348, 1.0
    %v2350 = vrcp.pop %v2349
    %v2351 = vmul.f32 1.0, %v2350
    %v2352 = vtanh.pop %v2343
    %v2353 = vmul.f32 %v2351, %v1827
    %2355 = vrot.lane.b32.xlu0 %v2352, 32
    %v2356 = vpop.permute.xlu0 %2355
    %v2358 = vmul.f32 %v2351, %v2356
    %2360 = vrot.lane.b32.xlu0 %v2358, 32
    %v2361 = vpop.permute.xlu0 %2360
    %v2363 = vadd.f32 %v2353, %v2361
    %v2364 = vtanh.pop %v2363
    %2366 = vrot.lane.b32.xlu0 %v2364, 32
    %v2367 = vpop.permute.xlu0 %2366
    %v2369 = vmul.f32 %v2351, %v2367
    %2371 = vrot.lane.b32.xlu0 %v2369, 64
    %v2372 = vpop.permute.xlu0 %2371
    %2375 = vrot.lane.b32.xlu0 %v1935, 96
    %v2376 = vpop.permute.xlu0 %2375
    %v2378 = vsel %vm430, %v2372, %v2376
    %v2380 = vsel %vm739, %v2378, 0
    %2382 = vmatprep.subr.mxu0 0.0
    %2383 = vmatpush1.msra.mxu0 0.0
    %2384 = vmatprep.subr.mxu0 0.0
    %2385 = vmatpush1.msra.mxu0 0.0
    %2386 = vmatprep.subr.mxu0 0.0
    %2387 = vmatpush1.msra.mxu0 0.0
    %2388 = vmatprep.subr.mxu0 0.0
    %2389 = vmatpush1.msra.mxu0 0.0
    %2390 = vmatprep.subr.mxu0 0.0
    %2391 = vmatpush1.msra.mxu0 0.0
    %2392 = vmatprep.subr.mxu0 0.0
    %2393 = vmatpush1.msra.mxu0 0.0
    %2394 = vmatprep.subr.mxu0 0.0
    %2395 = vmatpush1.msra.mxu0 0.0
    %2396 = vmatprep.subr.mxu0 0.0
    %2397 = vmatpush1.msra.mxu0 0.0
    %2398 = vmatprep.subr.mxu0 0.0
    %2399 = vmatpush1.msra.mxu0 %v98
    %2400 = vmatprep.subr.mxu0 0.0
    %2401 = vmatpush1.msra.mxu0 %v97
    %2402 = vmatprep.subr.mxu0 0.0
    %2403 = vmatpush1.msra.mxu0 %v96
    %2404 = vmatprep.subr.mxu0 0.0
    %2405 = vmatpush1.msra.mxu0 %v95
    %2406 = vmatprep.subr.mxu0 0.0
    %2407 = vmatpush1.msra.mxu0 %v94
    %2408 = vmatprep.subr.mxu0 0.0
    %2409 = vmatpush1.msra.mxu0 %v93
    %2410 = vmatprep.subr.mxu0 0.0
    %2411 = vmatpush1.msra.mxu0 %v92
    %2412 = vmatprep.subr.mxu0 0.0
    %2413 = vmatpush1.msra.mxu0 %v91
    %2414 = vmatprep.subr.mxu0 0.0
    %2415 = vmatpush2.msra.mxu0 0.0
    %2416 = vmatprep.subr.mxu0 0.0
    %2417 = vmatpush2.msra.mxu0 0.0
    %2418 = vmatprep.subr.mxu0 0.0
    %2419 = vmatpush2.msra.mxu0 0.0
    %2420 = vmatprep.subr.mxu0 0.0
    %2421 = vmatpush2.msra.mxu0 0.0
    %2422 = vmatprep.subr.mxu0 0.0
    %2423 = vmatpush2.msra.mxu0 0.0
    %2424 = vmatprep.subr.mxu0 0.0
    %2425 = vmatpush2.msra.mxu0 0.0
    %2426 = vmatprep.subr.mxu0 0.0
    %2427 = vmatpush2.msra.mxu0 0.0
    %2428 = vmatprep.subr.mxu0 0.0
    %2429 = vmatpush2.msra.mxu0 0.0
    %2430 = vmatprep.subr.mxu0 0.0
    %2431 = vmatpush2.msra.mxu0 0.0
    %2432 = vmatprep.subr.mxu0 0.0
    %2433 = vmatpush2.msra.mxu0 0.0
    %2434 = vmatprep.subr.mxu0 0.0
    %2435 = vmatpush2.msra.mxu0 0.0
    %2436 = vmatprep.subr.mxu0 0.0
    %2437 = vmatpush2.msra.mxu0 0.0
    %2438 = vmatprep.subr.mxu0 0.0
    %2439 = vmatpush2.msra.mxu0 0.0
    %2440 = vmatprep.subr.mxu0 0.0
    %2441 = vmatpush2.msra.mxu0 0.0
    %2442 = vmatprep.subr.mxu0 0.0
    %2443 = vmatpush2.msra.mxu0 0.0
    %2444 = vmatprep.subr.mxu0 0.0
    %2445 = vmatpush2.msra.mxu0 0.0
    %2446 = vmatprep.mubr.f32.mxu0 0.0
    %2447 = vmatmul.mubr.f32.gmra.mxu0 %v2380
    %v2448 = vpop.f32.mrf.mxu0
    %v2449 = vadd.f32 %v111, %v2448
    %v2450 = vpop.f32.mrf.mxu0
    %2451 = vdwg.mxu0
    %v2452 = vxor.u32 %v2449, 2147483648
    %v2453 = vmul.f32 %v2452, 1.442695
    %v2454 = vpow.pop %v2453
    %v2455 = vadd.f32 %v2454, 1.0
    %v2456 = vrcp.pop %v2455
    %v2457 = vmul.f32 1.0, %v2456
    %v2458 = vtanh.pop %v2449
    %v2459 = vmul.f32 %v2457, %v1929
    %2461 = vrot.lane.b32.xlu0 %v2458, 32
    %v2462 = vpop.permute.xlu0 %2461
    %v2464 = vmul.f32 %v2457, %v2462
    %2466 = vrot.lane.b32.xlu0 %v2464, 32
    %v2467 = vpop.permute.xlu0 %2466
    %v2469 = vadd.f32 %v2459, %v2467
    %v2470 = vtanh.pop %v2469
    %2472 = vrot.lane.b32.xlu0 %v2470, 32
    %v2473 = vpop.permute.xlu0 %2472
    %v2475 = vmul.f32 %v2457, %v2473
    %2477 = vrot.lane.b32.xlu0 %v2475, 32
    %v2478 = vpop.permute.xlu0 %2477
    %vm2480 = vcmask 1044224
    %2481 = vst.msk [vmem:[#allocation10] sm:$0xf] %vm2480, %v2478
    %v2483 = vunpack.c.l.s4 1966171168
    %v2484 = vunpack.c.0.s8 %v2483
    %v2485 = vlaneseq
    %v2486 = vshrl.u32 %v2485, 7
    %v2487 = vsub.s32 %v2484, %v2486
    %v2488 = vrot.slane %v2369, %v2487
    %v2489 = vcombine.high %v2488, %v2488
    %v2491 = vunpack.c.l.s4 1966171168
    %v2492 = vunpack.c.0.s8 %v2491
    %v2493 = vlaneseq
    %v2494 = vshrl.u32 %v2493, 7
    %v2495 = vsub.s32 %v2492, %v2494
    %v2496 = vrot.slane %v2488, %v2495
    %v2498 = vunpack.c.l.s4 1966171168
    %v2499 = vunpack.c.0.s8 %v2498
    %v2500 = vlaneseq
    %v2501 = vshrl.u32 %v2500, 7
    %v2502 = vsub.s32 %v2499, %v2501
    %v2503 = vrot.slane %v2489, %v2502
    %v2504 = vcombine.high %v2496, %v2496
    %v2505 = vcombine.high %v2503, %v2503
    %v2506 = vlaneseq
    %v2507 = vshrl.u32 %v2506, 7
    %v2508 = vsub.s32 0, %v2507
    %v2509 = vrot.slane %v2496, %v2508
    %v2510 = vlaneseq
    %v2511 = vshrl.u32 %v2510, 7
    %v2512 = vsub.s32 0, %v2511
    %v2513 = vrot.slane %v2503, %v2512
    %v2514 = vlaneseq
    %v2515 = vshrl.u32 %v2514, 7
    %v2516 = vsub.s32 0, %v2515
    %v2517 = vrot.slane %v2504, %v2516
    %v2518 = vlaneseq
    %v2519 = vshrl.u32 %v2518, 7
    %v2520 = vsub.s32 0, %v2519
    %v2521 = vrot.slane %v2505, %v2520
    %v2526 = vmul.f32 %v2509, %v892
    %v2527 = vmul.f32 %v2513, %v894
    %v2528 = vmul.f32 %v2517, %v896
    %v2529 = vmul.f32 %v2521, %v898
    %v2532 = vunpack.c.l.s4 1966171168
    %v2533 = vunpack.c.0.s8 %v2532
    %v2534 = vlaneseq
    %v2535 = vshrl.u32 %v2534, 7
    %v2536 = vsub.s32 %v2533, %v2535
    %v2537 = vrot.slane %v2363, %v2536
    %v2538 = vcombine.high %v2537, %v2537
    %v2540 = vunpack.c.l.s4 1966171168
    %v2541 = vunpack.c.0.s8 %v2540
    %v2542 = vlaneseq
    %v2543 = vshrl.u32 %v2542, 7
    %v2544 = vsub.s32 %v2541, %v2543
    %v2545 = vrot.slane %v2537, %v2544
    %v2547 = vunpack.c.l.s4 1966171168
    %v2548 = vunpack.c.0.s8 %v2547
    %v2549 = vlaneseq
    %v2550 = vshrl.u32 %v2549, 7
    %v2551 = vsub.s32 %v2548, %v2550
    %v2552 = vrot.slane %v2538, %v2551
    %v2553 = vcombine.high %v2545, %v2545
    %v2554 = vcombine.high %v2552, %v2552
    %v2555 = vlaneseq
    %v2556 = vshrl.u32 %v2555, 7
    %v2557 = vsub.s32 0, %v2556
    %v2558 = vrot.slane %v2545, %v2557
    %v2559 = vlaneseq
    %v2560 = vshrl.u32 %v2559, 7
    %v2561 = vsub.s32 0, %v2560
    %v2562 = vrot.slane %v2552, %v2561
    %v2563 = vlaneseq
    %v2564 = vshrl.u32 %v2563, 7
    %v2565 = vsub.s32 0, %v2564
    %v2566 = vrot.slane %v2553, %v2565
    %v2567 = vlaneseq
    %v2568 = vshrl.u32 %v2567, 7
    %v2569 = vsub.s32 0, %v2568
    %v2570 = vrot.slane %v2554, %v2569
    %v2575 = vmul.f32 %v2558, %v184
    %v2576 = vmul.f32 %v2562, %v257
    %v2577 = vmul.f32 %v2566, %v330
    %v2578 = vmul.f32 %v2570, %v403
    %2583 = vrot.lane.b32.xlu0 %v2575, 32
    %v2584 = vpop.permute.xlu0 %2583
    %2585 = vrot.lane.b32.xlu0 %v2576, 32
    %v2586 = vpop.permute.xlu0 %2585
    %2587 = vrot.lane.b32.xlu0 %v2577, 32
    %v2588 = vpop.permute.xlu0 %2587
    %2589 = vrot.lane.b32.xlu0 %v2578, 32
    %v2590 = vpop.permute.xlu0 %2589
    %v2595 = vadd.f32 %v2526, %v2584
    %v2596 = vadd.f32 %v2527, %v2586
    %v2597 = vadd.f32 %v2528, %v2588
    %v2598 = vadd.f32 %v2529, %v2590
    %2603 = vrot.lane.b32.xlu0 %v2595, 64
    %v2604 = vpop.permute.xlu0 %2603
    %2605 = vrot.lane.b32.xlu0 %v2596, 64
    %v2606 = vpop.permute.xlu0 %2605
    %2607 = vrot.lane.b32.xlu0 %v2597, 64
    %v2608 = vpop.permute.xlu0 %2607
    %2609 = vrot.lane.b32.xlu0 %v2598, 64
    %v2610 = vpop.permute.xlu0 %2609
    %v2615 = vsel %vm430, %v2604, 0.0
    %2616 = vadd.xlane.f32.xlu0 %v2615
    %v2617 = vpop.xlane.xlu0 %2616
    %v2618 = vsel %vm430, %v2606, 0.0
    %2619 = vadd.xlane.f32.xlu0 %v2618
    %v2620 = vpop.xlane.xlu0 %2619
    %v2621 = vsel %vm430, %v2608, 0.0
    %2622 = vadd.xlane.f32.xlu0 %v2621
    %v2623 = vpop.xlane.xlu0 %2622
    %v2624 = vsel %vm430, %v2610, 0.0
    %2625 = vadd.xlane.f32.xlu0 %v2624
    %v2626 = vpop.xlane.xlu0 %2625
    %v2631 = vlaneseq
    %v2632 = vshrl.u32 %v2631, 7
    %v2633 = vsub.s32 %v448, %v2632
    %v2634 = vrot.slane %v2617, %v2633
    %v2635 = vlaneseq
    %v2636 = vshrl.u32 %v2635, 7
    %v2637 = vsub.s32 %v448, %v2636
    %v2638 = vrot.slane %v2620, %v2637
    %v2639 = vlaneseq
    %v2640 = vshrl.u32 %v2639, 7
    %v2641 = vsub.s32 %v448, %v2640
    %v2642 = vrot.slane %v2623, %v2641
    %v2643 = vlaneseq
    %v2644 = vshrl.u32 %v2643, 7
    %v2645 = vsub.s32 %v448, %v2644
    %v2646 = vrot.slane %v2626, %v2645
    %v2647 = vsel %vm465, %v2638, %v2634
    %v2648 = vsel %vm467, %v2642, %v2647
    %v2649 = vsel %vm469, %v2646, %v2648
    %v2651 = vsel %vm472, %v2649, -inf
    %2652 = vmax.xlane.f32.xlu0 %v2651
    %v2653 = vpop.xlane.xlu0 %2652
    %v2655 = vlaneseq
    %v2656 = vshrl.u32 %v2655, 7
    %v2657 = vsub.s32 0, %v2656
    %v2658 = vrot.slane %v2653, %v2657
    %v2659 = vlaneseq
    %v2660 = vshrl.u32 %v2659, 7
    %v2661 = vsub.s32 1, %v2660
    %v2662 = vrot.slane %v2653, %v2661
    %v2663 = vlaneseq
    %v2664 = vshrl.u32 %v2663, 7
    %v2665 = vsub.s32 2, %v2664
    %v2666 = vrot.slane %v2653, %v2665
    %v2667 = vlaneseq
    %v2668 = vshrl.u32 %v2667, 7
    %v2669 = vsub.s32 3, %v2668
    %v2670 = vrot.slane %v2653, %v2669
    %v2675 = vsub.f32 %v2617, %v2658
    %v2676 = vsub.f32 %v2620, %v2662
    %v2677 = vsub.f32 %v2623, %v2666
    %v2678 = vsub.f32 %v2626, %v2670
    %v2679 = vmul.f32 %v2675, 1.442695
    %v2680 = vpow.pop %v2679
    %v2681 = vmul.f32 %v2676, 1.442695
    %v2682 = vpow.pop %v2681
    %v2683 = vmul.f32 %v2677, 1.442695
    %v2684 = vpow.pop %v2683
    %v2685 = vmul.f32 %v2678, 1.442695
    %v2686 = vpow.pop %v2685
    %2691 = vset.pattern.permute.xlu0 0
    %2692 = vperm.xlu0 %2691, %v2680
    %v2693 = vpop.permute.xlu0 %2692
    %2694 = vset.pattern.permute.xlu0 0
    %2695 = vperm.xlu0 %2694, %v2682
    %v2696 = vpop.permute.xlu0 %2695
    %2697 = vset.pattern.permute.xlu0 0
    %2698 = vperm.xlu0 %2697, %v2684
    %v2699 = vpop.permute.xlu0 %2698
    %2700 = vset.pattern.permute.xlu0 0
    %2701 = vperm.xlu0 %2700, %v2686
    %v2702 = vpop.permute.xlu0 %2701
    %v2703 = vlaneseq
    %v2704 = vshrl.u32 %v2703, 7
    %v2705 = vsub.s32 %v448, %v2704
    %v2706 = vrot.slane %v2693, %v2705
    %v2707 = vlaneseq
    %v2708 = vshrl.u32 %v2707, 7
    %v2709 = vsub.s32 %v448, %v2708
    %v2710 = vrot.slane %v2696, %v2709
    %v2711 = vlaneseq
    %v2712 = vshrl.u32 %v2711, 7
    %v2713 = vsub.s32 %v448, %v2712
    %v2714 = vrot.slane %v2699, %v2713
    %v2715 = vlaneseq
    %v2716 = vshrl.u32 %v2715, 7
    %v2717 = vsub.s32 %v448, %v2716
    %v2718 = vrot.slane %v2702, %v2717
    %v2719 = vsel %vm465, %v2710, %v2706
    %v2720 = vsel %vm467, %v2714, %v2719
    %v2721 = vsel %vm469, %v2718, %v2720
    %v2723 = vsel %vm472, %v2721, 0.0
    %2724 = vadd.xlane.f32.xlu0 %v2723
    %v2725 = vpop.xlane.xlu0 %2724
    %v2726 = vrcp.pop %v2725
    %v2727 = vmul.f32 1.0, %v2726
    %v2729 = vlaneseq
    %v2730 = vshrl.u32 %v2729, 7
    %v2731 = vsub.s32 0, %v2730
    %v2732 = vrot.slane %v2727, %v2731
    %v2733 = vlaneseq
    %v2734 = vshrl.u32 %v2733, 7
    %v2735 = vsub.s32 1, %v2734
    %v2736 = vrot.slane %v2727, %v2735
    %v2737 = vlaneseq
    %v2738 = vshrl.u32 %v2737, 7
    %v2739 = vsub.s32 2, %v2738
    %v2740 = vrot.slane %v2727, %v2739
    %v2741 = vlaneseq
    %v2742 = vshrl.u32 %v2741, 7
    %v2743 = vsub.s32 3, %v2742
    %v2744 = vrot.slane %v2727, %v2743
    %v2749 = vmul.f32 %v2680, %v2732
    %v2750 = vmul.f32 %v2682, %v2736
    %v2751 = vmul.f32 %v2684, %v2740
    %v2752 = vmul.f32 %v2686, %v2744
    %2754 = vset.pattern.permute.xlu0 0
    %2755 = vperm.xlu0 %2754, %v2749
    %v2756 = vpop.permute.xlu0 %2755
    %2759 = vset.pattern.permute.xlu0 0
    %2760 = vperm.xlu0 %2759, %v2750
    %v2761 = vpop.permute.xlu0 %2760
    %2764 = vset.pattern.permute.xlu0 0
    %2765 = vperm.xlu0 %2764, %v2751
    %v2766 = vpop.permute.xlu0 %2765
    %2769 = vset.pattern.permute.xlu0 0
    %2770 = vperm.xlu0 %2769, %v2752
    %v2771 = vpop.permute.xlu0 %2770
    %v2773 = vmul.f32 %v2756, %v79
    %v2774 = vmul.f32 %v2761, %v80
    %v2775 = vmul.f32 %v2766, %v81
    %v2776 = vmul.f32 %v2771, %v82
    %v2777 = vsel %vm113, %v2773, 0.0
    %v2778 = vrot.slane %v2777, 4
    %v2779 = vadd.f32 %v2777, %v2778
    %v2780 = vrot.slane %v2779, 2
    %v2781 = vadd.f32 %v2779, %v2780
    %v2782 = vrot.slane %v2781, 1
    %v2783 = vadd.f32 %v2781, %v2782
    %v2784 = vsel %vm113, %v2774, 0.0
    %v2785 = vrot.slane %v2784, 4
    %v2786 = vadd.f32 %v2784, %v2785
    %v2787 = vrot.slane %v2786, 2
    %v2788 = vadd.f32 %v2786, %v2787
    %v2789 = vrot.slane %v2788, 1
    %v2790 = vadd.f32 %v2788, %v2789
    %v2791 = vsel %vm113, %v2775, 0.0
    %v2792 = vrot.slane %v2791, 4
    %v2793 = vadd.f32 %v2791, %v2792
    %v2794 = vrot.slane %v2793, 2
    %v2795 = vadd.f32 %v2793, %v2794
    %v2796 = vrot.slane %v2795, 1
    %v2797 = vadd.f32 %v2795, %v2796
    %v2798 = vsel %vm113, %v2776, 0.0
    %v2799 = vrot.slane %v2798, 4
    %v2800 = vadd.f32 %v2798, %v2799
    %v2801 = vrot.slane %v2800, 2
    %v2802 = vadd.f32 %v2800, %v2801
    %v2803 = vrot.slane %v2802, 1
    %v2804 = vadd.f32 %v2802, %v2803
    %v2809 = vsel %vm465, %v2790, %v2783
    %v2810 = vsel %vm467, %v2797, %v2809
    %v2811 = vsel %vm469, %v2804, %v2810
    %2813 = vrot.lane.b32.xlu0 %v2369, 80
    %v2814 = vpop.permute.xlu0 %2813
    %v2816 = vsel %vm113, %v2811, %v2814
    %v2818 = vsel %vm636, %v2816, 0
    %2820 = vmatprep.subr.mxu0 0.0
    %2821 = vmatpush1.msra.mxu0 0.0
    %2822 = vmatprep.subr.mxu0 0.0
    %2823 = vmatpush1.msra.mxu0 0.0
    %2824 = vmatprep.subr.mxu0 0.0
    %2825 = vmatpush1.msra.mxu0 0.0
    %2826 = vmatprep.subr.mxu0 0.0
    %2827 = vmatpush1.msra.mxu0 0.0
    %2828 = vmatprep.subr.mxu0 0.0
    %2829 = vmatpush1.msra.mxu0 0.0
    %2830 = vmatprep.subr.mxu0 0.0
    %2831 = vmatpush1.msra.mxu0 0.0
    %2832 = vmatprep.subr.mxu0 0.0
    %2833 = vmatpush1.msra.mxu0 0.0
    %2834 = vmatprep.subr.mxu0 0.0
    %2835 = vmatpush1.msra.mxu0 0.0
    %2836 = vmatprep.subr.mxu0 0.0
    %2837 = vmatpush1.msra.mxu0 0.0
    %2838 = vmatprep.subr.mxu0 0.0
    %2839 = vmatpush1.msra.mxu0 0.0
    %2840 = vmatprep.subr.mxu0 0.0
    %2841 = vmatpush1.msra.mxu0 %v90
    %2842 = vmatprep.subr.mxu0 0.0
    %2843 = vmatpush1.msra.mxu0 %v89
    %2844 = vmatprep.subr.mxu0 0.0
    %2845 = vmatpush1.msra.mxu0 %v88
    %2846 = vmatprep.subr.mxu0 0.0
    %2847 = vmatpush1.msra.mxu0 %v87
    %2848 = vmatprep.subr.mxu0 0.0
    %2849 = vmatpush1.msra.mxu0 %v86
    %2850 = vmatprep.subr.mxu0 0.0
    %2851 = vmatpush1.msra.mxu0 %v85
    %2852 = vmatprep.subr.mxu0 0.0
    %2853 = vmatpush2.msra.mxu0 0.0
    %2854 = vmatprep.subr.mxu0 0.0
    %2855 = vmatpush2.msra.mxu0 0.0
    %2856 = vmatprep.subr.mxu0 0.0
    %2857 = vmatpush2.msra.mxu0 0.0
    %2858 = vmatprep.subr.mxu0 0.0
    %2859 = vmatpush2.msra.mxu0 0.0
    %2860 = vmatprep.subr.mxu0 0.0
    %2861 = vmatpush2.msra.mxu0 0.0
    %2862 = vmatprep.subr.mxu0 0.0
    %2863 = vmatpush2.msra.mxu0 0.0
    %2864 = vmatprep.subr.mxu0 0.0
    %2865 = vmatpush2.msra.mxu0 0.0
    %2866 = vmatprep.subr.mxu0 0.0
    %2867 = vmatpush2.msra.mxu0 0.0
    %2868 = vmatprep.subr.mxu0 0.0
    %2869 = vmatpush2.msra.mxu0 0.0
    %2870 = vmatprep.subr.mxu0 0.0
    %2871 = vmatpush2.msra.mxu0 0.0
    %2872 = vmatprep.subr.mxu0 0.0
    %2873 = vmatpush2.msra.mxu0 0.0
    %2874 = vmatprep.subr.mxu0 0.0
    %2875 = vmatpush2.msra.mxu0 0.0
    %2876 = vmatprep.subr.mxu0 0.0
    %2877 = vmatpush2.msra.mxu0 0.0
    %2878 = vmatprep.subr.mxu0 0.0
    %2879 = vmatpush2.msra.mxu0 0.0
    %2880 = vmatprep.subr.mxu0 0.0
    %2881 = vmatpush2.msra.mxu0 0.0
    %2882 = vmatprep.subr.mxu0 0.0
    %2883 = vmatpush2.msra.mxu0 0.0
    %2884 = vmatprep.mubr.f32.mxu0 0.0
    %2885 = vmatmul.mubr.f32.gmra.mxu0 %v2818
    %v2886 = vpop.f32.mrf.mxu0
    %v2887 = vadd.f32 %v104, %v2886
    %v2888 = vpop.f32.mrf.mxu0
    %2889 = vdwg.mxu0
    %v2890 = vxor.u32 %v2887, 2147483648
    %v2891 = vmul.f32 %v2890, 1.442695
    %v2892 = vpow.pop %v2891
    %v2893 = vadd.f32 %v2892, 1.0
    %v2894 = vrcp.pop %v2893
    %v2895 = vmul.f32 1.0, %v2894
    %v2896 = vtanh.pop %v2887
    %v2897 = vmul.f32 %v2895, %v2363
    %2899 = vrot.lane.b32.xlu0 %v2896, 32
    %v2900 = vpop.permute.xlu0 %2899
    %v2902 = vmul.f32 %v2895, %v2900
    %2904 = vrot.lane.b32.xlu0 %v2902, 32
    %v2905 = vpop.permute.xlu0 %2904
    %v2907 = vadd.f32 %v2897, %v2905
    %v2908 = vtanh.pop %v2907
    %2910 = vrot.lane.b32.xlu0 %v2908, 32
    %v2911 = vpop.permute.xlu0 %2910
    %v2913 = vmul.f32 %v2895, %v2911
    %2915 = vrot.lane.b32.xlu0 %v2913, 64
    %v2916 = vpop.permute.xlu0 %2915
    %2918 = vrot.lane.b32.xlu0 %v2475, 96
    %v2919 = vpop.permute.xlu0 %2918
    %v2921 = vsel %vm430, %v2916, %v2919
    %v2923 = vsel %vm739, %v2921, 0
    %2925 = vmatprep.subr.mxu0 0.0
    %2926 = vmatpush1.msra.mxu0 0.0
    %2927 = vmatprep.subr.mxu0 0.0
    %2928 = vmatpush1.msra.mxu0 0.0
    %2929 = vmatprep.subr.mxu0 0.0
    %2930 = vmatpush1.msra.mxu0 0.0
    %2931 = vmatprep.subr.mxu0 0.0
    %2932 = vmatpush1.msra.mxu0 0.0
    %2933 = vmatprep.subr.mxu0 0.0
    %2934 = vmatpush1.msra.mxu0 0.0
    %2935 = vmatprep.subr.mxu0 0.0
    %2936 = vmatpush1.msra.mxu0 0.0
    %2937 = vmatprep.subr.mxu0 0.0
    %2938 = vmatpush1.msra.mxu0 0.0
    %2939 = vmatprep.subr.mxu0 0.0
    %2940 = vmatpush1.msra.mxu0 0.0
    %2941 = vmatprep.subr.mxu0 0.0
    %2942 = vmatpush1.msra.mxu0 %v98
    %2943 = vmatprep.subr.mxu0 0.0
    %2944 = vmatpush1.msra.mxu0 %v97
    %2945 = vmatprep.subr.mxu0 0.0
    %2946 = vmatpush1.msra.mxu0 %v96
    %2947 = vmatprep.subr.mxu0 0.0
    %2948 = vmatpush1.msra.mxu0 %v95
    %2949 = vmatprep.subr.mxu0 0.0
    %2950 = vmatpush1.msra.mxu0 %v94
    %2951 = vmatprep.subr.mxu0 0.0
    %2952 = vmatpush1.msra.mxu0 %v93
    %2953 = vmatprep.subr.mxu0 0.0
    %2954 = vmatpush1.msra.mxu0 %v92
    %2955 = vmatprep.subr.mxu0 0.0
    %2956 = vmatpush1.msra.mxu0 %v91
    %2957 = vmatprep.subr.mxu0 0.0
    %2958 = vmatpush2.msra.mxu0 0.0
    %2959 = vmatprep.subr.mxu0 0.0
    %2960 = vmatpush2.msra.mxu0 0.0
    %2961 = vmatprep.subr.mxu0 0.0
    %2962 = vmatpush2.msra.mxu0 0.0
    %2963 = vmatprep.subr.mxu0 0.0
    %2964 = vmatpush2.msra.mxu0 0.0
    %2965 = vmatprep.subr.mxu0 0.0
    %2966 = vmatpush2.msra.mxu0 0.0
    %2967 = vmatprep.subr.mxu0 0.0
    %2968 = vmatpush2.msra.mxu0 0.0
    %2969 = vmatprep.subr.mxu0 0.0
    %2970 = vmatpush2.msra.mxu0 0.0
    %2971 = vmatprep.subr.mxu0 0.0
    %2972 = vmatpush2.msra.mxu0 0.0
    %2973 = vmatprep.subr.mxu0 0.0
    %2974 = vmatpush2.msra.mxu0 0.0
    %2975 = vmatprep.subr.mxu0 0.0
    %2976 = vmatpush2.msra.mxu0 0.0
    %2977 = vmatprep.subr.mxu0 0.0
    %2978 = vmatpush2.msra.mxu0 0.0
    %2979 = vmatprep.subr.mxu0 0.0
    %2980 = vmatpush2.msra.mxu0 0.0
    %2981 = vmatprep.subr.mxu0 0.0
    %2982 = vmatpush2.msra.mxu0 0.0
    %2983 = vmatprep.subr.mxu0 0.0
    %2984 = vmatpush2.msra.mxu0 0.0
    %2985 = vmatprep.subr.mxu0 0.0
    %2986 = vmatpush2.msra.mxu0 0.0
    %2987 = vmatprep.subr.mxu0 0.0
    %2988 = vmatpush2.msra.mxu0 0.0
    %2989 = vmatprep.mubr.f32.mxu0 0.0
    %2990 = vmatmul.mubr.f32.gmra.mxu0 %v2923
    %v2991 = vpop.f32.mrf.mxu0
    %v2992 = vadd.f32 %v111, %v2991
    %v2993 = vpop.f32.mrf.mxu0
    %2994 = vdwg.mxu0
    %v2995 = vxor.u32 %v2992, 2147483648
    %v2996 = vmul.f32 %v2995, 1.442695
    %v2997 = vpow.pop %v2996
    %v2998 = vadd.f32 %v2997, 1.0
    %v2999 = vrcp.pop %v2998
    %v3000 = vmul.f32 1.0, %v2999
    %v3001 = vtanh.pop %v2992
    %v3002 = vmul.f32 %v3000, %v2469
    %3004 = vrot.lane.b32.xlu0 %v3001, 32
    %v3005 = vpop.permute.xlu0 %3004
    %v3007 = vmul.f32 %v3000, %v3005
    %3009 = vrot.lane.b32.xlu0 %v3007, 32
    %v3010 = vpop.permute.xlu0 %3009
    %v3012 = vadd.f32 %v3002, %v3010
    %v3013 = vtanh.pop %v3012
    %3015 = vrot.lane.b32.xlu0 %v3013, 32
    %v3016 = vpop.permute.xlu0 %3015
    %v3018 = vmul.f32 %v3000, %v3016
    %3020 = vrot.lane.b32.xlu0 %v3018, 64
    %v3021 = vpop.permute.xlu0 %3020
    %3023 = vst.msk [vmem:[#allocation10 + $0x4] sm:$0xf] %vm841, %v3021
    %v3025 = vunpack.c.l.s4 1966171168
    %v3026 = vunpack.c.0.s8 %v3025
    %v3027 = vlaneseq
    %v3028 = vshrl.u32 %v3027, 7
    %v3029 = vsub.s32 %v3026, %v3028
    %v3030 = vrot.slane %v2913, %v3029
    %v3031 = vcombine.high %v3030, %v3030
    %v3033 = vunpack.c.l.s4 1966171168
    %v3034 = vunpack.c.0.s8 %v3033
    %v3035 = vlaneseq
    %v3036 = vshrl.u32 %v3035, 7
    %v3037 = vsub.s32 %v3034, %v3036
    %v3038 = vrot.slane %v3030, %v3037
    %v3040 = vunpack.c.l.s4 1966171168
    %v3041 = vunpack.c.0.s8 %v3040
    %v3042 = vlaneseq
    %v3043 = vshrl.u32 %v3042, 7
    %v3044 = vsub.s32 %v3041, %v3043
    %v3045 = vrot.slane %v3031, %v3044
    %v3046 = vcombine.high %v3038, %v3038
    %v3047 = vcombine.high %v3045, %v3045
    %v3048 = vlaneseq
    %v3049 = vshrl.u32 %v3048, 7
    %v3050 = vsub.s32 0, %v3049
    %v3051 = vrot.slane %v3038, %v3050
    %v3052 = vlaneseq
    %v3053 = vshrl.u32 %v3052, 7
    %v3054 = vsub.s32 0, %v3053
    %v3055 = vrot.slane %v3045, %v3054
    %v3056 = vlaneseq
    %v3057 = vshrl.u32 %v3056, 7
    %v3058 = vsub.s32 0, %v3057
    %v3059 = vrot.slane %v3046, %v3058
    %v3060 = vlaneseq
    %v3061 = vshrl.u32 %v3060, 7
    %v3062 = vsub.s32 0, %v3061
    %v3063 = vrot.slane %v3047, %v3062
    %v3068 = vmul.f32 %v3051, %v892
    %v3069 = vmul.f32 %v3055, %v894
    %v3070 = vmul.f32 %v3059, %v896
    %v3071 = vmul.f32 %v3063, %v898
    %v3074 = vunpack.c.l.s4 1966171168
    %v3075 = vunpack.c.0.s8 %v3074
    %v3076 = vlaneseq
    %v3077 = vshrl.u32 %v3076, 7
    %v3078 = vsub.s32 %v3075, %v3077
    %v3079 = vrot.slane %v2907, %v3078
    %v3080 = vcombine.high %v3079, %v3079
    %v3082 = vunpack.c.l.s4 1966171168
    %v3083 = vunpack.c.0.s8 %v3082
    %v3084 = vlaneseq
    %v3085 = vshrl.u32 %v3084, 7
    %v3086 = vsub.s32 %v3083, %v3085
    %v3087 = vrot.slane %v3079, %v3086
    %v3089 = vunpack.c.l.s4 1966171168
    %v3090 = vunpack.c.0.s8 %v3089
    %v3091 = vlaneseq
    %v3092 = vshrl.u32 %v3091, 7
    %v3093 = vsub.s32 %v3090, %v3092
    %v3094 = vrot.slane %v3080, %v3093
    %v3095 = vcombine.high %v3087, %v3087
    %v3096 = vcombine.high %v3094, %v3094
    %v3097 = vlaneseq
    %v3098 = vshrl.u32 %v3097, 7
    %v3099 = vsub.s32 0, %v3098
    %v3100 = vrot.slane %v3087, %v3099
    %v3101 = vlaneseq
    %v3102 = vshrl.u32 %v3101, 7
    %v3103 = vsub.s32 0, %v3102
    %v3104 = vrot.slane %v3094, %v3103
    %v3105 = vlaneseq
    %v3106 = vshrl.u32 %v3105, 7
    %v3107 = vsub.s32 0, %v3106
    %v3108 = vrot.slane %v3095, %v3107
    %v3109 = vlaneseq
    %v3110 = vshrl.u32 %v3109, 7
    %v3111 = vsub.s32 0, %v3110
    %v3112 = vrot.slane %v3096, %v3111
    %v3117 = vmul.f32 %v3100, %v184
    %v3118 = vmul.f32 %v3104, %v257
    %v3119 = vmul.f32 %v3108, %v330
    %v3120 = vmul.f32 %v3112, %v403
    %3125 = vrot.lane.b32.xlu0 %v3117, 32
    %v3126 = vpop.permute.xlu0 %3125
    %3127 = vrot.lane.b32.xlu0 %v3118, 32
    %v3128 = vpop.permute.xlu0 %3127
    %3129 = vrot.lane.b32.xlu0 %v3119, 32
    %v3130 = vpop.permute.xlu0 %3129
    %3131 = vrot.lane.b32.xlu0 %v3120, 32
    %v3132 = vpop.permute.xlu0 %3131
    %v3137 = vadd.f32 %v3068, %v3126
    %v3138 = vadd.f32 %v3069, %v3128
    %v3139 = vadd.f32 %v3070, %v3130
    %v3140 = vadd.f32 %v3071, %v3132
    %3145 = vrot.lane.b32.xlu0 %v3137, 64
    %v3146 = vpop.permute.xlu0 %3145
    %3147 = vrot.lane.b32.xlu0 %v3138, 64
    %v3148 = vpop.permute.xlu0 %3147
    %3149 = vrot.lane.b32.xlu0 %v3139, 64
    %v3150 = vpop.permute.xlu0 %3149
    %3151 = vrot.lane.b32.xlu0 %v3140, 64
    %v3152 = vpop.permute.xlu0 %3151
    %v3157 = vsel %vm430, %v3146, 0.0
    %3158 = vadd.xlane.f32.xlu0 %v3157
    %v3159 = vpop.xlane.xlu0 %3158
    %v3160 = vsel %vm430, %v3148, 0.0
    %3161 = vadd.xlane.f32.xlu0 %v3160
    %v3162 = vpop.xlane.xlu0 %3161
    %v3163 = vsel %vm430, %v3150, 0.0
    %3164 = vadd.xlane.f32.xlu0 %v3163
    %v3165 = vpop.xlane.xlu0 %3164
    %v3166 = vsel %vm430, %v3152, 0.0
    %3167 = vadd.xlane.f32.xlu0 %v3166
    %v3168 = vpop.xlane.xlu0 %3167
    %v3173 = vlaneseq
    %v3174 = vshrl.u32 %v3173, 7
    %v3175 = vsub.s32 %v448, %v3174
    %v3176 = vrot.slane %v3159, %v3175
    %v3177 = vlaneseq
    %v3178 = vshrl.u32 %v3177, 7
    %v3179 = vsub.s32 %v448, %v3178
    %v3180 = vrot.slane %v3162, %v3179
    %v3181 = vlaneseq
    %v3182 = vshrl.u32 %v3181, 7
    %v3183 = vsub.s32 %v448, %v3182
    %v3184 = vrot.slane %v3165, %v3183
    %v3185 = vlaneseq
    %v3186 = vshrl.u32 %v3185, 7
    %v3187 = vsub.s32 %v448, %v3186
    %v3188 = vrot.slane %v3168, %v3187
    %v3189 = vsel %vm465, %v3180, %v3176
    %v3190 = vsel %vm467, %v3184, %v3189
    %v3191 = vsel %vm469, %v3188, %v3190
    %v3193 = vsel %vm472, %v3191, -inf
    %3194 = vmax.xlane.f32.xlu0 %v3193
    %v3195 = vpop.xlane.xlu0 %3194
    %v3197 = vlaneseq
    %v3198 = vshrl.u32 %v3197, 7
    %v3199 = vsub.s32 0, %v3198
    %v3200 = vrot.slane %v3195, %v3199
    %v3201 = vlaneseq
    %v3202 = vshrl.u32 %v3201, 7
    %v3203 = vsub.s32 1, %v3202
    %v3204 = vrot.slane %v3195, %v3203
    %v3205 = vlaneseq
    %v3206 = vshrl.u32 %v3205, 7
    %v3207 = vsub.s32 2, %v3206
    %v3208 = vrot.slane %v3195, %v3207
    %v3209 = vlaneseq
    %v3210 = vshrl.u32 %v3209, 7
    %v3211 = vsub.s32 3, %v3210
    %v3212 = vrot.slane %v3195, %v3211
    %v3217 = vsub.f32 %v3159, %v3200
    %v3218 = vsub.f32 %v3162, %v3204
    %v3219 = vsub.f32 %v3165, %v3208
    %v3220 = vsub.f32 %v3168, %v3212
    %v3221 = vmul.f32 %v3217, 1.442695
    %v3222 = vpow.pop %v3221
    %v3223 = vmul.f32 %v3218, 1.442695
    %v3224 = vpow.pop %v3223
    %v3225 = vmul.f32 %v3219, 1.442695
    %v3226 = vpow.pop %v3225
    %v3227 = vmul.f32 %v3220, 1.442695
    %v3228 = vpow.pop %v3227
    %3233 = vset.pattern.permute.xlu0 0
    %3234 = vperm.xlu0 %3233, %v3222
    %v3235 = vpop.permute.xlu0 %3234
    %3236 = vset.pattern.permute.xlu0 0
    %3237 = vperm.xlu0 %3236, %v3224
    %v3238 = vpop.permute.xlu0 %3237
    %3239 = vset.pattern.permute.xlu0 0
    %3240 = vperm.xlu0 %3239, %v3226
    %v3241 = vpop.permute.xlu0 %3240
    %3242 = vset.pattern.permute.xlu0 0
    %3243 = vperm.xlu0 %3242, %v3228
    %v3244 = vpop.permute.xlu0 %3243
    %v3245 = vlaneseq
    %v3246 = vshrl.u32 %v3245, 7
    %v3247 = vsub.s32 %v448, %v3246
    %v3248 = vrot.slane %v3235, %v3247
    %v3249 = vlaneseq
    %v3250 = vshrl.u32 %v3249, 7
    %v3251 = vsub.s32 %v448, %v3250
    %v3252 = vrot.slane %v3238, %v3251
    %v3253 = vlaneseq
    %v3254 = vshrl.u32 %v3253, 7
    %v3255 = vsub.s32 %v448, %v3254
    %v3256 = vrot.slane %v3241, %v3255
    %v3257 = vlaneseq
    %v3258 = vshrl.u32 %v3257, 7
    %v3259 = vsub.s32 %v448, %v3258
    %v3260 = vrot.slane %v3244, %v3259
    %v3261 = vsel %vm465, %v3252, %v3248
    %v3262 = vsel %vm467, %v3256, %v3261
    %v3263 = vsel %vm469, %v3260, %v3262
    %v3265 = vsel %vm472, %v3263, 0.0
    %3266 = vadd.xlane.f32.xlu0 %v3265
    %v3267 = vpop.xlane.xlu0 %3266
    %v3268 = vrcp.pop %v3267
    %v3269 = vmul.f32 1.0, %v3268
    %v3271 = vlaneseq
    %v3272 = vshrl.u32 %v3271, 7
    %v3273 = vsub.s32 0, %v3272
    %v3274 = vrot.slane %v3269, %v3273
    %v3275 = vlaneseq
    %v3276 = vshrl.u32 %v3275, 7
    %v3277 = vsub.s32 1, %v3276
    %v3278 = vrot.slane %v3269, %v3277
    %v3279 = vlaneseq
    %v3280 = vshrl.u32 %v3279, 7
    %v3281 = vsub.s32 2, %v3280
    %v3282 = vrot.slane %v3269, %v3281
    %v3283 = vlaneseq
    %v3284 = vshrl.u32 %v3283, 7
    %v3285 = vsub.s32 3, %v3284
    %v3286 = vrot.slane %v3269, %v3285
    %v3291 = vmul.f32 %v3222, %v3274
    %v3292 = vmul.f32 %v3224, %v3278
    %v3293 = vmul.f32 %v3226, %v3282
    %v3294 = vmul.f32 %v3228, %v3286
    %3296 = vset.pattern.permute.xlu0 0
    %3297 = vperm.xlu0 %3296, %v3291
    %v3298 = vpop.permute.xlu0 %3297
    %3301 = vset.pattern.permute.xlu0 0
    %3302 = vperm.xlu0 %3301, %v3292
    %v3303 = vpop.permute.xlu0 %3302
    %3306 = vset.pattern.permute.xlu0 0
    %3307 = vperm.xlu0 %3306, %v3293
    %v3308 = vpop.permute.xlu0 %3307
    %3311 = vset.pattern.permute.xlu0 0
    %3312 = vperm.xlu0 %3311, %v3294
    %v3313 = vpop.permute.xlu0 %3312
    %v3315 = vmul.f32 %v3298, %v79
    %v3316 = vmul.f32 %v3303, %v80
    %v3317 = vmul.f32 %v3308, %v81
    %v3318 = vmul.f32 %v3313, %v82
    %v3319 = vsel %vm113, %v3315, 0.0
    %v3320 = vrot.slane %v3319, 4
    %v3321 = vadd.f32 %v3319, %v3320
    %v3322 = vrot.slane %v3321, 2
    %v3323 = vadd.f32 %v3321, %v3322
    %v3324 = vrot.slane %v3323, 1
    %v3325 = vadd.f32 %v3323, %v3324
    %v3326 = vsel %vm113, %v3316, 0.0
    %v3327 = vrot.slane %v3326, 4
    %v3328 = vadd.f32 %v3326, %v3327
    %v3329 = vrot.slane %v3328, 2
    %v3330 = vadd.f32 %v3328, %v3329
    %v3331 = vrot.slane %v3330, 1
    %v3332 = vadd.f32 %v3330, %v3331
    %v3333 = vsel %vm113, %v3317, 0.0
    %v3334 = vrot.slane %v3333, 4
    %v3335 = vadd.f32 %v3333, %v3334
    %v3336 = vrot.slane %v3335, 2
    %v3337 = vadd.f32 %v3335, %v3336
    %v3338 = vrot.slane %v3337, 1
    %v3339 = vadd.f32 %v3337, %v3338
    %v3340 = vsel %vm113, %v3318, 0.0
    %v3341 = vrot.slane %v3340, 4
    %v3342 = vadd.f32 %v3340, %v3341
    %v3343 = vrot.slane %v3342, 2
    %v3344 = vadd.f32 %v3342, %v3343
    %v3345 = vrot.slane %v3344, 1
    %v3346 = vadd.f32 %v3344, %v3345
    %v3351 = vsel %vm465, %v3332, %v3325
    %v3352 = vsel %vm467, %v3339, %v3351
    %v3353 = vsel %vm469, %v3346, %v3352
    %3355 = vrot.lane.b32.xlu0 %v2913, 80
    %v3356 = vpop.permute.xlu0 %3355
    %v3358 = vsel %vm113, %v3353, %v3356
    %v3360 = vsel %vm636, %v3358, 0
    %3362 = vmatprep.subr.mxu0 0.0
    %3363 = vmatpush1.msra.mxu0 0.0
    %3364 = vmatprep.subr.mxu0 0.0
    %3365 = vmatpush1.msra.mxu0 0.0
    %3366 = vmatprep.subr.mxu0 0.0
    %3367 = vmatpush1.msra.mxu0 0.0
    %3368 = vmatprep.subr.mxu0 0.0
    %3369 = vmatpush1.msra.mxu0 0.0
    %3370 = vmatprep.subr.mxu0 0.0
    %3371 = vmatpush1.msra.mxu0 0.0
    %3372 = vmatprep.subr.mxu0 0.0
    %3373 = vmatpush1.msra.mxu0 0.0
    %3374 = vmatprep.subr.mxu0 0.0
    %3375 = vmatpush1.msra.mxu0 0.0
    %3376 = vmatprep.subr.mxu0 0.0
    %3377 = vmatpush1.msra.mxu0 0.0
    %3378 = vmatprep.subr.mxu0 0.0
    %3379 = vmatpush1.msra.mxu0 0.0
    %3380 = vmatprep.subr.mxu0 0.0
    %3381 = vmatpush1.msra.mxu0 0.0
    %3382 = vmatprep.subr.mxu0 0.0
    %3383 = vmatpush1.msra.mxu0 %v90
    %3384 = vmatprep.subr.mxu0 0.0
    %3385 = vmatpush1.msra.mxu0 %v89
    %3386 = vmatprep.subr.mxu0 0.0
    %3387 = vmatpush1.msra.mxu0 %v88
    %3388 = vmatprep.subr.mxu0 0.0
    %3389 = vmatpush1.msra.mxu0 %v87
    %3390 = vmatprep.subr.mxu0 0.0
    %3391 = vmatpush1.msra.mxu0 %v86
    %3392 = vmatprep.subr.mxu0 0.0
    %3393 = vmatpush1.msra.mxu0 %v85
    %3394 = vmatprep.subr.mxu0 0.0
    %3395 = vmatpush2.msra.mxu0 0.0
    %3396 = vmatprep.subr.mxu0 0.0
    %3397 = vmatpush2.msra.mxu0 0.0
    %3398 = vmatprep.subr.mxu0 0.0
    %3399 = vmatpush2.msra.mxu0 0.0
    %3400 = vmatprep.subr.mxu0 0.0
    %3401 = vmatpush2.msra.mxu0 0.0
    %3402 = vmatprep.subr.mxu0 0.0
    %3403 = vmatpush2.msra.mxu0 0.0
    %3404 = vmatprep.subr.mxu0 0.0
    %3405 = vmatpush2.msra.mxu0 0.0
    %3406 = vmatprep.subr.mxu0 0.0
    %3407 = vmatpush2.msra.mxu0 0.0
    %3408 = vmatprep.subr.mxu0 0.0
    %3409 = vmatpush2.msra.mxu0 0.0
    %3410 = vmatprep.subr.mxu0 0.0
    %3411 = vmatpush2.msra.mxu0 0.0
    %3412 = vmatprep.subr.mxu0 0.0
    %3413 = vmatpush2.msra.mxu0 0.0
    %3414 = vmatprep.subr.mxu0 0.0
    %3415 = vmatpush2.msra.mxu0 0.0
    %3416 = vmatprep.subr.mxu0 0.0
    %3417 = vmatpush2.msra.mxu0 0.0
    %3418 = vmatprep.subr.mxu0 0.0
    %3419 = vmatpush2.msra.mxu0 0.0
    %3420 = vmatprep.subr.mxu0 0.0
    %3421 = vmatpush2.msra.mxu0 0.0
    %3422 = vmatprep.subr.mxu0 0.0
    %3423 = vmatpush2.msra.mxu0 0.0
    %3424 = vmatprep.subr.mxu0 0.0
    %3425 = vmatpush2.msra.mxu0 0.0
    %3426 = vmatprep.mubr.f32.mxu0 0.0
    %3427 = vmatmul.mubr.f32.gmra.mxu0 %v3360
    %v3428 = vpop.f32.mrf.mxu0
    %v3429 = vadd.f32 %v104, %v3428
    %v3430 = vpop.f32.mrf.mxu0
    %3431 = vdwg.mxu0
    %v3432 = vxor.u32 %v3429, 2147483648
    %v3433 = vmul.f32 %v3432, 1.442695
    %v3434 = vpow.pop %v3433
    %v3435 = vadd.f32 %v3434, 1.0
    %v3436 = vrcp.pop %v3435
    %v3437 = vmul.f32 1.0, %v3436
    %v3438 = vtanh.pop %v3429
    %v3439 = vmul.f32 %v3437, %v2907
    %3441 = vrot.lane.b32.xlu0 %v3438, 32
    %v3442 = vpop.permute.xlu0 %3441
    %v3444 = vmul.f32 %v3437, %v3442
    %3446 = vrot.lane.b32.xlu0 %v3444, 32
    %v3447 = vpop.permute.xlu0 %3446
    %v3449 = vadd.f32 %v3439, %v3447
    %v3450 = vtanh.pop %v3449
    %3452 = vrot.lane.b32.xlu0 %v3450, 32
    %v3453 = vpop.permute.xlu0 %3452
    %v3455 = vmul.f32 %v3437, %v3453
    %3457 = vrot.lane.b32.xlu0 %v3455, 64
    %v3458 = vpop.permute.xlu0 %3457
    %3460 = vrot.lane.b32.xlu0 %v3018, 96
    %v3461 = vpop.permute.xlu0 %3460
    %v3463 = vsel %vm430, %v3458, %v3461
    %v3465 = vsel %vm739, %v3463, 0
    %3467 = vmatprep.subr.mxu0 0.0
    %3468 = vmatpush1.msra.mxu0 0.0
    %3469 = vmatprep.subr.mxu0 0.0
    %3470 = vmatpush1.msra.mxu0 0.0
    %3471 = vmatprep.subr.mxu0 0.0
    %3472 = vmatpush1.msra.mxu0 0.0
    %3473 = vmatprep.subr.mxu0 0.0
    %3474 = vmatpush1.msra.mxu0 0.0
    %3475 = vmatprep.subr.mxu0 0.0
    %3476 = vmatpush1.msra.mxu0 0.0
    %3477 = vmatprep.subr.mxu0 0.0
    %3478 = vmatpush1.msra.mxu0 0.0
    %3479 = vmatprep.subr.mxu0 0.0
    %3480 = vmatpush1.msra.mxu0 0.0
    %3481 = vmatprep.subr.mxu0 0.0
    %3482 = vmatpush1.msra.mxu0 0.0
    %3483 = vmatprep.subr.mxu0 0.0
    %3484 = vmatpush1.msra.mxu0 %v98
    %3485 = vmatprep.subr.mxu0 0.0
    %3486 = vmatpush1.msra.mxu0 %v97
    %3487 = vmatprep.subr.mxu0 0.0
    %3488 = vmatpush1.msra.mxu0 %v96
    %3489 = vmatprep.subr.mxu0 0.0
    %3490 = vmatpush1.msra.mxu0 %v95
    %3491 = vmatprep.subr.mxu0 0.0
    %3492 = vmatpush1.msra.mxu0 %v94
    %3493 = vmatprep.subr.mxu0 0.0
    %3494 = vmatpush1.msra.mxu0 %v93
    %3495 = vmatprep.subr.mxu0 0.0
    %3496 = vmatpush1.msra.mxu0 %v92
    %3497 = vmatprep.subr.mxu0 0.0
    %3498 = vmatpush1.msra.mxu0 %v91
    %3499 = vmatprep.subr.mxu0 0.0
    %3500 = vmatpush2.msra.mxu0 0.0
    %3501 = vmatprep.subr.mxu0 0.0
    %3502 = vmatpush2.msra.mxu0 0.0
    %3503 = vmatprep.subr.mxu0 0.0
    %3504 = vmatpush2.msra.mxu0 0.0
    %3505 = vmatprep.subr.mxu0 0.0
    %3506 = vmatpush2.msra.mxu0 0.0
    %3507 = vmatprep.subr.mxu0 0.0
    %3508 = vmatpush2.msra.mxu0 0.0
    %3509 = vmatprep.subr.mxu0 0.0
    %3510 = vmatpush2.msra.mxu0 0.0
    %3511 = vmatprep.subr.mxu0 0.0
    %3512 = vmatpush2.msra.mxu0 0.0
    %3513 = vmatprep.subr.mxu0 0.0
    %3514 = vmatpush2.msra.mxu0 0.0
    %3515 = vmatprep.subr.mxu0 0.0
    %3516 = vmatpush2.msra.mxu0 0.0
    %3517 = vmatprep.subr.mxu0 0.0
    %3518 = vmatpush2.msra.mxu0 0.0
    %3519 = vmatprep.subr.mxu0 0.0
    %3520 = vmatpush2.msra.mxu0 0.0
    %3521 = vmatprep.subr.mxu0 0.0
    %3522 = vmatpush2.msra.mxu0 0.0
    %3523 = vmatprep.subr.mxu0 0.0
    %3524 = vmatpush2.msra.mxu0 0.0
    %3525 = vmatprep.subr.mxu0 0.0
    %3526 = vmatpush2.msra.mxu0 0.0
    %3527 = vmatprep.subr.mxu0 0.0
    %3528 = vmatpush2.msra.mxu0 0.0
    %3529 = vmatprep.subr.mxu0 0.0
    %3530 = vmatpush2.msra.mxu0 0.0
    %3531 = vmatprep.mubr.f32.mxu0 0.0
    %3532 = vmatmul.mubr.f32.gmra.mxu0 %v3465
    %v3533 = vpop.f32.mrf.mxu0
    %v3534 = vadd.f32 %v111, %v3533
    %v3535 = vpop.f32.mrf.mxu0
    %3536 = vdwg.mxu0
    %v3537 = vxor.u32 %v3534, 2147483648
    %v3538 = vmul.f32 %v3537, 1.442695
    %v3539 = vpow.pop %v3538
    %v3540 = vadd.f32 %v3539, 1.0
    %v3541 = vrcp.pop %v3540
    %v3542 = vmul.f32 1.0, %v3541
    %v3543 = vtanh.pop %v3534
    %v3544 = vmul.f32 %v3542, %v3012
    %3546 = vrot.lane.b32.xlu0 %v3543, 32
    %v3547 = vpop.permute.xlu0 %3546
    %v3549 = vmul.f32 %v3542, %v3547
    %3551 = vrot.lane.b32.xlu0 %v3549, 32
    %v3552 = vpop.permute.xlu0 %3551
    %v3554 = vadd.f32 %v3544, %v3552
    %v3555 = vtanh.pop %v3554
    %3557 = vrot.lane.b32.xlu0 %v3555, 32
    %v3558 = vpop.permute.xlu0 %3557
    %v3560 = vmul.f32 %v3542, %v3558
    %3562 = vrot.lane.b32.xlu0 %v3560, 96
    %v3563 = vpop.permute.xlu0 %3562
    %3565 = vst.msk [vmem:[#allocation10 + $0x4] sm:$0xf] %vm1400, %v3563
    %v3567 = vunpack.c.l.s4 1966171168
    %v3568 = vunpack.c.0.s8 %v3567
    %v3569 = vlaneseq
    %v3570 = vshrl.u32 %v3569, 7
    %v3571 = vsub.s32 %v3568, %v3570
    %v3572 = vrot.slane %v3455, %v3571
    %v3573 = vcombine.high %v3572, %v3572
    %v3575 = vunpack.c.l.s4 1966171168
    %v3576 = vunpack.c.0.s8 %v3575
    %v3577 = vlaneseq
    %v3578 = vshrl.u32 %v3577, 7
    %v3579 = vsub.s32 %v3576, %v3578
    %v3580 = vrot.slane %v3572, %v3579
    %v3582 = vunpack.c.l.s4 1966171168
    %v3583 = vunpack.c.0.s8 %v3582
    %v3584 = vlaneseq
    %v3585 = vshrl.u32 %v3584, 7
    %v3586 = vsub.s32 %v3583, %v3585
    %v3587 = vrot.slane %v3573, %v3586
    %v3588 = vcombine.high %v3580, %v3580
    %v3589 = vcombine.high %v3587, %v3587
    %v3590 = vlaneseq
    %v3591 = vshrl.u32 %v3590, 7
    %v3592 = vsub.s32 0, %v3591
    %v3593 = vrot.slane %v3580, %v3592
    %v3594 = vlaneseq
    %v3595 = vshrl.u32 %v3594, 7
    %v3596 = vsub.s32 0, %v3595
    %v3597 = vrot.slane %v3587, %v3596
    %v3598 = vlaneseq
    %v3599 = vshrl.u32 %v3598, 7
    %v3600 = vsub.s32 0, %v3599
    %v3601 = vrot.slane %v3588, %v3600
    %v3602 = vlaneseq
    %v3603 = vshrl.u32 %v3602, 7
    %v3604 = vsub.s32 0, %v3603
    %v3605 = vrot.slane %v3589, %v3604
    %v3610 = vmul.f32 %v3593, %v892
    %v3611 = vmul.f32 %v3597, %v894
    %v3612 = vmul.f32 %v3601, %v896
    %v3613 = vmul.f32 %v3605, %v898
    %v3616 = vunpack.c.l.s4 1966171168
    %v3617 = vunpack.c.0.s8 %v3616
    %v3618 = vlaneseq
    %v3619 = vshrl.u32 %v3618, 7
    %v3620 = vsub.s32 %v3617, %v3619
    %v3621 = vrot.slane %v3449, %v3620
    %v3622 = vcombine.high %v3621, %v3621
    %v3624 = vunpack.c.l.s4 1966171168
    %v3625 = vunpack.c.0.s8 %v3624
    %v3626 = vlaneseq
    %v3627 = vshrl.u32 %v3626, 7
    %v3628 = vsub.s32 %v3625, %v3627
    %v3629 = vrot.slane %v3621, %v3628
    %v3631 = vunpack.c.l.s4 1966171168
    %v3632 = vunpack.c.0.s8 %v3631
    %v3633 = vlaneseq
    %v3634 = vshrl.u32 %v3633, 7
    %v3635 = vsub.s32 %v3632, %v3634
    %v3636 = vrot.slane %v3622, %v3635
    %v3637 = vcombine.high %v3629, %v3629
    %v3638 = vcombine.high %v3636, %v3636
    %v3639 = vlaneseq
    %v3640 = vshrl.u32 %v3639, 7
    %v3641 = vsub.s32 0, %v3640
    %v3642 = vrot.slane %v3629, %v3641
    %v3643 = vlaneseq
    %v3644 = vshrl.u32 %v3643, 7
    %v3645 = vsub.s32 0, %v3644
    %v3646 = vrot.slane %v3636, %v3645
    %v3647 = vlaneseq
    %v3648 = vshrl.u32 %v3647, 7
    %v3649 = vsub.s32 0, %v3648
    %v3650 = vrot.slane %v3637, %v3649
    %v3651 = vlaneseq
    %v3652 = vshrl.u32 %v3651, 7
    %v3653 = vsub.s32 0, %v3652
    %v3654 = vrot.slane %v3638, %v3653
    %v3659 = vmul.f32 %v3642, %v184
    %v3660 = vmul.f32 %v3646, %v257
    %v3661 = vmul.f32 %v3650, %v330
    %v3662 = vmul.f32 %v3654, %v403
    %3667 = vrot.lane.b32.xlu0 %v3659, 32
    %v3668 = vpop.permute.xlu0 %3667
    %3669 = vrot.lane.b32.xlu0 %v3660, 32
    %v3670 = vpop.permute.xlu0 %3669
    %3671 = vrot.lane.b32.xlu0 %v3661, 32
    %v3672 = vpop.permute.xlu0 %3671
    %3673 = vrot.lane.b32.xlu0 %v3662, 32
    %v3674 = vpop.permute.xlu0 %3673
    %v3679 = vadd.f32 %v3610, %v3668
    %v3680 = vadd.f32 %v3611, %v3670
    %v3681 = vadd.f32 %v3612, %v3672
    %v3682 = vadd.f32 %v3613, %v3674
    %3687 = vrot.lane.b32.xlu0 %v3679, 64
    %v3688 = vpop.permute.xlu0 %3687
    %3689 = vrot.lane.b32.xlu0 %v3680, 64
    %v3690 = vpop.permute.xlu0 %3689
    %3691 = vrot.lane.b32.xlu0 %v3681, 64
    %v3692 = vpop.permute.xlu0 %3691
    %3693 = vrot.lane.b32.xlu0 %v3682, 64
    %v3694 = vpop.permute.xlu0 %3693
    %v3699 = vsel %vm430, %v3688, 0.0
    %3700 = vadd.xlane.f32.xlu0 %v3699
    %v3701 = vpop.xlane.xlu0 %3700
    %v3702 = vsel %vm430, %v3690, 0.0
    %3703 = vadd.xlane.f32.xlu0 %v3702
    %v3704 = vpop.xlane.xlu0 %3703
    %v3705 = vsel %vm430, %v3692, 0.0
    %3706 = vadd.xlane.f32.xlu0 %v3705
    %v3707 = vpop.xlane.xlu0 %3706
    %v3708 = vsel %vm430, %v3694, 0.0
    %3709 = vadd.xlane.f32.xlu0 %v3708
    %v3710 = vpop.xlane.xlu0 %3709
    %v3715 = vlaneseq
    %v3716 = vshrl.u32 %v3715, 7
    %v3717 = vsub.s32 %v448, %v3716
    %v3718 = vrot.slane %v3701, %v3717
    %v3719 = vlaneseq
    %v3720 = vshrl.u32 %v3719, 7
    %v3721 = vsub.s32 %v448, %v3720
    %v3722 = vrot.slane %v3704, %v3721
    %v3723 = vlaneseq
    %v3724 = vshrl.u32 %v3723, 7
    %v3725 = vsub.s32 %v448, %v3724
    %v3726 = vrot.slane %v3707, %v3725
    %v3727 = vlaneseq
    %v3728 = vshrl.u32 %v3727, 7
    %v3729 = vsub.s32 %v448, %v3728
    %v3730 = vrot.slane %v3710, %v3729
    %v3731 = vsel %vm465, %v3722, %v3718
    %v3732 = vsel %vm467, %v3726, %v3731
    %v3733 = vsel %vm469, %v3730, %v3732
    %v3735 = vsel %vm472, %v3733, -inf
    %3736 = vmax.xlane.f32.xlu0 %v3735
    %v3737 = vpop.xlane.xlu0 %3736
    %v3739 = vlaneseq
    %v3740 = vshrl.u32 %v3739, 7
    %v3741 = vsub.s32 0, %v3740
    %v3742 = vrot.slane %v3737, %v3741
    %v3743 = vlaneseq
    %v3744 = vshrl.u32 %v3743, 7
    %v3745 = vsub.s32 1, %v3744
    %v3746 = vrot.slane %v3737, %v3745
    %v3747 = vlaneseq
    %v3748 = vshrl.u32 %v3747, 7
    %v3749 = vsub.s32 2, %v3748
    %v3750 = vrot.slane %v3737, %v3749
    %v3751 = vlaneseq
    %v3752 = vshrl.u32 %v3751, 7
    %v3753 = vsub.s32 3, %v3752
    %v3754 = vrot.slane %v3737, %v3753
    %v3759 = vsub.f32 %v3701, %v3742
    %v3760 = vsub.f32 %v3704, %v3746
    %v3761 = vsub.f32 %v3707, %v3750
    %v3762 = vsub.f32 %v3710, %v3754
    %v3763 = vmul.f32 %v3759, 1.442695
    %v3764 = vpow.pop %v3763
    %v3765 = vmul.f32 %v3760, 1.442695
    %v3766 = vpow.pop %v3765
    %v3767 = vmul.f32 %v3761, 1.442695
    %v3768 = vpow.pop %v3767
    %v3769 = vmul.f32 %v3762, 1.442695
    %v3770 = vpow.pop %v3769
    %3775 = vset.pattern.permute.xlu0 0
    %3776 = vperm.xlu0 %3775, %v3764
    %v3777 = vpop.permute.xlu0 %3776
    %3778 = vset.pattern.permute.xlu0 0
    %3779 = vperm.xlu0 %3778, %v3766
    %v3780 = vpop.permute.xlu0 %3779
    %3781 = vset.pattern.permute.xlu0 0
    %3782 = vperm.xlu0 %3781, %v3768
    %v3783 = vpop.permute.xlu0 %3782
    %3784 = vset.pattern.permute.xlu0 0
    %3785 = vperm.xlu0 %3784, %v3770
    %v3786 = vpop.permute.xlu0 %3785
    %v3787 = vlaneseq
    %v3788 = vshrl.u32 %v3787, 7
    %v3789 = vsub.s32 %v448, %v3788
    %v3790 = vrot.slane %v3777, %v3789
    %v3791 = vlaneseq
    %v3792 = vshrl.u32 %v3791, 7
    %v3793 = vsub.s32 %v448, %v3792
    %v3794 = vrot.slane %v3780, %v3793
    %v3795 = vlaneseq
    %v3796 = vshrl.u32 %v3795, 7
    %v3797 = vsub.s32 %v448, %v3796
    %v3798 = vrot.slane %v3783, %v3797
    %v3799 = vlaneseq
    %v3800 = vshrl.u32 %v3799, 7
    %v3801 = vsub.s32 %v448, %v3800
    %v3802 = vrot.slane %v3786, %v3801
    %v3803 = vsel %vm465, %v3794, %v3790
    %v3804 = vsel %vm467, %v3798, %v3803
    %v3805 = vsel %vm469, %v3802, %v3804
    %v3807 = vsel %vm472, %v3805, 0.0
    %3808 = vadd.xlane.f32.xlu0 %v3807
    %v3809 = vpop.xlane.xlu0 %3808
    %v3810 = vrcp.pop %v3809
    %v3811 = vmul.f32 1.0, %v3810
    %v3813 = vlaneseq
    %v3814 = vshrl.u32 %v3813, 7
    %v3815 = vsub.s32 0, %v3814
    %v3816 = vrot.slane %v3811, %v3815
    %v3817 = vlaneseq
    %v3818 = vshrl.u32 %v3817, 7
    %v3819 = vsub.s32 1, %v3818
    %v3820 = vrot.slane %v3811, %v3819
    %v3821 = vlaneseq
    %v3822 = vshrl.u32 %v3821, 7
    %v3823 = vsub.s32 2, %v3822
    %v3824 = vrot.slane %v3811, %v3823
    %v3825 = vlaneseq
    %v3826 = vshrl.u32 %v3825, 7
    %v3827 = vsub.s32 3, %v3826
    %v3828 = vrot.slane %v3811, %v3827
    %v3833 = vmul.f32 %v3764, %v3816
    %v3834 = vmul.f32 %v3766, %v3820
    %v3835 = vmul.f32 %v3768, %v3824
    %v3836 = vmul.f32 %v3770, %v3828
    %3838 = vset.pattern.permute.xlu0 0
    %3839 = vperm.xlu0 %3838, %v3833
    %v3840 = vpop.permute.xlu0 %3839
    %3843 = vset.pattern.permute.xlu0 0
    %3844 = vperm.xlu0 %3843, %v3834
    %v3845 = vpop.permute.xlu0 %3844
    %3848 = vset.pattern.permute.xlu0 0
    %3849 = vperm.xlu0 %3848, %v3835
    %v3850 = vpop.permute.xlu0 %3849
    %3853 = vset.pattern.permute.xlu0 0
    %3854 = vperm.xlu0 %3853, %v3836
    %v3855 = vpop.permute.xlu0 %3854
    %v3857 = vmul.f32 %v3840, %v79
    %v3858 = vmul.f32 %v3845, %v80
    %v3859 = vmul.f32 %v3850, %v81
    %v3860 = vmul.f32 %v3855, %v82
    %v3861 = vsel %vm113, %v3857, 0.0
    %v3862 = vrot.slane %v3861, 4
    %v3863 = vadd.f32 %v3861, %v3862
    %v3864 = vrot.slane %v3863, 2
    %v3865 = vadd.f32 %v3863, %v3864
    %v3866 = vrot.slane %v3865, 1
    %v3867 = vadd.f32 %v3865, %v3866
    %v3868 = vsel %vm113, %v3858, 0.0
    %v3869 = vrot.slane %v3868, 4
    %v3870 = vadd.f32 %v3868, %v3869
    %v3871 = vrot.slane %v3870, 2
    %v3872 = vadd.f32 %v3870, %v3871
    %v3873 = vrot.slane %v3872, 1
    %v3874 = vadd.f32 %v3872, %v3873
    %v3875 = vsel %vm113, %v3859, 0.0
    %v3876 = vrot.slane %v3875, 4
    %v3877 = vadd.f32 %v3875, %v3876
    %v3878 = vrot.slane %v3877, 2
    %v3879 = vadd.f32 %v3877, %v3878
    %v3880 = vrot.slane %v3879, 1
    %v3881 = vadd.f32 %v3879, %v3880
    %v3882 = vsel %vm113, %v3860, 0.0
    %v3883 = vrot.slane %v3882, 4
    %v3884 = vadd.f32 %v3882, %v3883
    %v3885 = vrot.slane %v3884, 2
    %v3886 = vadd.f32 %v3884, %v3885
    %v3887 = vrot.slane %v3886, 1
    %v3888 = vadd.f32 %v3886, %v3887
    %v3893 = vsel %vm465, %v3874, %v3867
    %v3894 = vsel %vm467, %v3881, %v3893
    %v3895 = vsel %vm469, %v3888, %v3894
    %3897 = vrot.lane.b32.xlu0 %v3455, 80
    %v3898 = vpop.permute.xlu0 %3897
    %v3900 = vsel %vm113, %v3895, %v3898
    %v3902 = vsel %vm636, %v3900, 0
    %3904 = vmatprep.subr.mxu0 0.0
    %3905 = vmatpush1.msra.mxu0 0.0
    %3906 = vmatprep.subr.mxu0 0.0
    %3907 = vmatpush1.msra.mxu0 0.0
    %3908 = vmatprep.subr.mxu0 0.0
    %3909 = vmatpush1.msra.mxu0 0.0
    %3910 = vmatprep.subr.mxu0 0.0
    %3911 = vmatpush1.msra.mxu0 0.0
    %3912 = vmatprep.subr.mxu0 0.0
    %3913 = vmatpush1.msra.mxu0 0.0
    %3914 = vmatprep.subr.mxu0 0.0
    %3915 = vmatpush1.msra.mxu0 0.0
    %3916 = vmatprep.subr.mxu0 0.0
    %3917 = vmatpush1.msra.mxu0 0.0
    %3918 = vmatprep.subr.mxu0 0.0
    %3919 = vmatpush1.msra.mxu0 0.0
    %3920 = vmatprep.subr.mxu0 0.0
    %3921 = vmatpush1.msra.mxu0 0.0
    %3922 = vmatprep.subr.mxu0 0.0
    %3923 = vmatpush1.msra.mxu0 0.0
    %3924 = vmatprep.subr.mxu0 0.0
    %3925 = vmatpush1.msra.mxu0 %v90
    %3926 = vmatprep.subr.mxu0 0.0
    %3927 = vmatpush1.msra.mxu0 %v89
    %3928 = vmatprep.subr.mxu0 0.0
    %3929 = vmatpush1.msra.mxu0 %v88
    %3930 = vmatprep.subr.mxu0 0.0
    %3931 = vmatpush1.msra.mxu0 %v87
    %3932 = vmatprep.subr.mxu0 0.0
    %3933 = vmatpush1.msra.mxu0 %v86
    %3934 = vmatprep.subr.mxu0 0.0
    %3935 = vmatpush1.msra.mxu0 %v85
    %3936 = vmatprep.subr.mxu0 0.0
    %3937 = vmatpush2.msra.mxu0 0.0
    %3938 = vmatprep.subr.mxu0 0.0
    %3939 = vmatpush2.msra.mxu0 0.0
    %3940 = vmatprep.subr.mxu0 0.0
    %3941 = vmatpush2.msra.mxu0 0.0
    %3942 = vmatprep.subr.mxu0 0.0
    %3943 = vmatpush2.msra.mxu0 0.0
    %3944 = vmatprep.subr.mxu0 0.0
    %3945 = vmatpush2.msra.mxu0 0.0
    %3946 = vmatprep.subr.mxu0 0.0
    %3947 = vmatpush2.msra.mxu0 0.0
    %3948 = vmatprep.subr.mxu0 0.0
    %3949 = vmatpush2.msra.mxu0 0.0
    %3950 = vmatprep.subr.mxu0 0.0
    %3951 = vmatpush2.msra.mxu0 0.0
    %3952 = vmatprep.subr.mxu0 0.0
    %3953 = vmatpush2.msra.mxu0 0.0
    %3954 = vmatprep.subr.mxu0 0.0
    %3955 = vmatpush2.msra.mxu0 0.0
    %3956 = vmatprep.subr.mxu0 0.0
    %3957 = vmatpush2.msra.mxu0 0.0
    %3958 = vmatprep.subr.mxu0 0.0
    %3959 = vmatpush2.msra.mxu0 0.0
    %3960 = vmatprep.subr.mxu0 0.0
    %3961 = vmatpush2.msra.mxu0 0.0
    %3962 = vmatprep.subr.mxu0 0.0
    %3963 = vmatpush2.msra.mxu0 0.0
    %3964 = vmatprep.subr.mxu0 0.0
    %3965 = vmatpush2.msra.mxu0 0.0
    %3966 = vmatprep.subr.mxu0 0.0
    %3967 = vmatpush2.msra.mxu0 0.0
    %3968 = vmatprep.mubr.f32.mxu0 0.0
    %3969 = vmatmul.mubr.f32.gmra.mxu0 %v3902
    %v3970 = vpop.f32.mrf.mxu0
    %v3971 = vadd.f32 %v104, %v3970
    %v3972 = vpop.f32.mrf.mxu0
    %3973 = vdwg.mxu0
    %v3974 = vxor.u32 %v3971, 2147483648
    %v3975 = vmul.f32 %v3974, 1.442695
    %v3976 = vpow.pop %v3975
    %v3977 = vadd.f32 %v3976, 1.0
    %v3978 = vrcp.pop %v3977
    %v3979 = vmul.f32 1.0, %v3978
    %v3980 = vtanh.pop %v3971
    %v3981 = vmul.f32 %v3979, %v3449
    %3983 = vrot.lane.b32.xlu0 %v3980, 32
    %v3984 = vpop.permute.xlu0 %3983
    %v3986 = vmul.f32 %v3979, %v3984
    %3988 = vrot.lane.b32.xlu0 %v3986, 32
    %v3989 = vpop.permute.xlu0 %3988
    %v3991 = vadd.f32 %v3981, %v3989
    %v3992 = vtanh.pop %v3991
    %3994 = vrot.lane.b32.xlu0 %v3992, 32
    %v3995 = vpop.permute.xlu0 %3994
    %v3997 = vmul.f32 %v3979, %v3995
    %3999 = vrot.lane.b32.xlu0 %v3997, 64
    %v4000 = vpop.permute.xlu0 %3999
    %v4002 = vsel %vm430, %v4000, %v3563
    %v4004 = vsel %vm739, %v4002, 0
    %4006 = vmatprep.subr.mxu0 0.0
    %4007 = vmatpush1.msra.mxu0 0.0
    %4008 = vmatprep.subr.mxu0 0.0
    %4009 = vmatpush1.msra.mxu0 0.0
    %4010 = vmatprep.subr.mxu0 0.0
    %4011 = vmatpush1.msra.mxu0 0.0
    %4012 = vmatprep.subr.mxu0 0.0
    %4013 = vmatpush1.msra.mxu0 0.0
    %4014 = vmatprep.subr.mxu0 0.0
    %4015 = vmatpush1.msra.mxu0 0.0
    %4016 = vmatprep.subr.mxu0 0.0
    %4017 = vmatpush1.msra.mxu0 0.0
    %4018 = vmatprep.subr.mxu0 0.0
    %4019 = vmatpush1.msra.mxu0 0.0
    %4020 = vmatprep.subr.mxu0 0.0
    %4021 = vmatpush1.msra.mxu0 0.0
    %4022 = vmatprep.subr.mxu0 0.0
    %4023 = vmatpush1.msra.mxu0 %v98
    %4024 = vmatprep.subr.mxu0 0.0
    %4025 = vmatpush1.msra.mxu0 %v97
    %4026 = vmatprep.subr.mxu0 0.0
    %4027 = vmatpush1.msra.mxu0 %v96
    %4028 = vmatprep.subr.mxu0 0.0
    %4029 = vmatpush1.msra.mxu0 %v95
    %4030 = vmatprep.subr.mxu0 0.0
    %4031 = vmatpush1.msra.mxu0 %v94
    %4032 = vmatprep.subr.mxu0 0.0
    %4033 = vmatpush1.msra.mxu0 %v93
    %4034 = vmatprep.subr.mxu0 0.0
    %4035 = vmatpush1.msra.mxu0 %v92
    %4036 = vmatprep.subr.mxu0 0.0
    %4037 = vmatpush1.msra.mxu0 %v91
    %4038 = vmatprep.subr.mxu0 0.0
    %4039 = vmatpush2.msra.mxu0 0.0
    %4040 = vmatprep.subr.mxu0 0.0
    %4041 = vmatpush2.msra.mxu0 0.0
    %4042 = vmatprep.subr.mxu0 0.0
    %4043 = vmatpush2.msra.mxu0 0.0
    %4044 = vmatprep.subr.mxu0 0.0
    %4045 = vmatpush2.msra.mxu0 0.0
    %4046 = vmatprep.subr.mxu0 0.0
    %4047 = vmatpush2.msra.mxu0 0.0
    %4048 = vmatprep.subr.mxu0 0.0
    %4049 = vmatpush2.msra.mxu0 0.0
    %4050 = vmatprep.subr.mxu0 0.0
    %4051 = vmatpush2.msra.mxu0 0.0
    %4052 = vmatprep.subr.mxu0 0.0
    %4053 = vmatpush2.msra.mxu0 0.0
    %4054 = vmatprep.subr.mxu0 0.0
    %4055 = vmatpush2.msra.mxu0 0.0
    %4056 = vmatprep.subr.mxu0 0.0
    %4057 = vmatpush2.msra.mxu0 0.0
    %4058 = vmatprep.subr.mxu0 0.0
    %4059 = vmatpush2.msra.mxu0 0.0
    %4060 = vmatprep.subr.mxu0 0.0
    %4061 = vmatpush2.msra.mxu0 0.0
    %4062 = vmatprep.subr.mxu0 0.0
    %4063 = vmatpush2.msra.mxu0 0.0
    %4064 = vmatprep.subr.mxu0 0.0
    %4065 = vmatpush2.msra.mxu0 0.0
    %4066 = vmatprep.subr.mxu0 0.0
    %4067 = vmatpush2.msra.mxu0 0.0
    %4068 = vmatprep.subr.mxu0 0.0
    %4069 = vmatpush2.msra.mxu0 0.0
    %4070 = vmatprep.mubr.f32.mxu0 0.0
    %4071 = vmatmul.mubr.f32.gmra.mxu0 %v4004
    %v4072 = vpop.f32.mrf.mxu0
    %v4073 = vadd.f32 %v111, %v4072
    %v4074 = vpop.f32.mrf.mxu0
    %4075 = vdwg.mxu0
    %v4076 = vxor.u32 %v4073, 2147483648
    %v4077 = vmul.f32 %v4076, 1.442695
    %v4078 = vpow.pop %v4077
    %v4079 = vadd.f32 %v4078, 1.0
    %v4080 = vrcp.pop %v4079
    %v4081 = vmul.f32 1.0, %v4080
    %v4082 = vtanh.pop %v4073
    %v4083 = vmul.f32 %v4081, %v3554
    %4085 = vrot.lane.b32.xlu0 %v4082, 32
    %v4086 = vpop.permute.xlu0 %4085
    %v4088 = vmul.f32 %v4081, %v4086
    %4090 = vrot.lane.b32.xlu0 %v4088, 32
    %v4091 = vpop.permute.xlu0 %4090
    %v4093 = vadd.f32 %v4083, %v4091
    %v4094 = vtanh.pop %v4093
    %4096 = vrot.lane.b32.xlu0 %v4094, 32
    %v4097 = vpop.permute.xlu0 %4096
    %v4099 = vmul.f32 %v4081, %v4097
    %4100 = vst.msk [vmem:[#allocation10 + $0x4] sm:$0xf] %vm1936, %v4099
    %v4102 = vunpack.c.l.s4 1966171168
    %v4103 = vunpack.c.0.s8 %v4102
    %v4104 = vlaneseq
    %v4105 = vshrl.u32 %v4104, 7
    %v4106 = vsub.s32 %v4103, %v4105
    %v4107 = vrot.slane %v3997, %v4106
    %v4108 = vcombine.high %v4107, %v4107
    %v4110 = vunpack.c.l.s4 1966171168
    %v4111 = vunpack.c.0.s8 %v4110
    %v4112 = vlaneseq
    %v4113 = vshrl.u32 %v4112, 7
    %v4114 = vsub.s32 %v4111, %v4113
    %v4115 = vrot.slane %v4107, %v4114
    %v4117 = vunpack.c.l.s4 1966171168
    %v4118 = vunpack.c.0.s8 %v4117
    %v4119 = vlaneseq
    %v4120 = vshrl.u32 %v4119, 7
    %v4121 = vsub.s32 %v4118, %v4120
    %v4122 = vrot.slane %v4108, %v4121
    %v4123 = vcombine.high %v4115, %v4115
    %v4124 = vcombine.high %v4122, %v4122
    %v4125 = vlaneseq
    %v4126 = vshrl.u32 %v4125, 7
    %v4127 = vsub.s32 0, %v4126
    %v4128 = vrot.slane %v4115, %v4127
    %v4129 = vlaneseq
    %v4130 = vshrl.u32 %v4129, 7
    %v4131 = vsub.s32 0, %v4130
    %v4132 = vrot.slane %v4122, %v4131
    %v4133 = vlaneseq
    %v4134 = vshrl.u32 %v4133, 7
    %v4135 = vsub.s32 0, %v4134
    %v4136 = vrot.slane %v4123, %v4135
    %v4137 = vlaneseq
    %v4138 = vshrl.u32 %v4137, 7
    %v4139 = vsub.s32 0, %v4138
    %v4140 = vrot.slane %v4124, %v4139
    %v4145 = vmul.f32 %v4128, %v892
    %v4146 = vmul.f32 %v4132, %v894
    %v4147 = vmul.f32 %v4136, %v896
    %v4148 = vmul.f32 %v4140, %v898
    %v4151 = vunpack.c.l.s4 1966171168
    %v4152 = vunpack.c.0.s8 %v4151
    %v4153 = vlaneseq
    %v4154 = vshrl.u32 %v4153, 7
    %v4155 = vsub.s32 %v4152, %v4154
    %v4156 = vrot.slane %v3991, %v4155
    %v4157 = vcombine.high %v4156, %v4156
    %v4159 = vunpack.c.l.s4 1966171168
    %v4160 = vunpack.c.0.s8 %v4159
    %v4161 = vlaneseq
    %v4162 = vshrl.u32 %v4161, 7
    %v4163 = vsub.s32 %v4160, %v4162
    %v4164 = vrot.slane %v4156, %v4163
    %v4166 = vunpack.c.l.s4 1966171168
    %v4167 = vunpack.c.0.s8 %v4166
    %v4168 = vlaneseq
    %v4169 = vshrl.u32 %v4168, 7
    %v4170 = vsub.s32 %v4167, %v4169
    %v4171 = vrot.slane %v4157, %v4170
    %v4172 = vcombine.high %v4164, %v4164
    %v4173 = vcombine.high %v4171, %v4171
    %v4174 = vlaneseq
    %v4175 = vshrl.u32 %v4174, 7
    %v4176 = vsub.s32 0, %v4175
    %v4177 = vrot.slane %v4164, %v4176
    %v4178 = vlaneseq
    %v4179 = vshrl.u32 %v4178, 7
    %v4180 = vsub.s32 0, %v4179
    %v4181 = vrot.slane %v4171, %v4180
    %v4182 = vlaneseq
    %v4183 = vshrl.u32 %v4182, 7
    %v4184 = vsub.s32 0, %v4183
    %v4185 = vrot.slane %v4172, %v4184
    %v4186 = vlaneseq
    %v4187 = vshrl.u32 %v4186, 7
    %v4188 = vsub.s32 0, %v4187
    %v4189 = vrot.slane %v4173, %v4188
    %v4194 = vmul.f32 %v4177, %v184
    %v4195 = vmul.f32 %v4181, %v257
    %v4196 = vmul.f32 %v4185, %v330
    %v4197 = vmul.f32 %v4189, %v403
    %4202 = vrot.lane.b32.xlu0 %v4194, 32
    %v4203 = vpop.permute.xlu0 %4202
    %4204 = vrot.lane.b32.xlu0 %v4195, 32
    %v4205 = vpop.permute.xlu0 %4204
    %4206 = vrot.lane.b32.xlu0 %v4196, 32
    %v4207 = vpop.permute.xlu0 %4206
    %4208 = vrot.lane.b32.xlu0 %v4197, 32
    %v4209 = vpop.permute.xlu0 %4208
    %v4214 = vadd.f32 %v4145, %v4203
    %v4215 = vadd.f32 %v4146, %v4205
    %v4216 = vadd.f32 %v4147, %v4207
    %v4217 = vadd.f32 %v4148, %v4209
    %4222 = vrot.lane.b32.xlu0 %v4214, 64
    %v4223 = vpop.permute.xlu0 %4222
    %4224 = vrot.lane.b32.xlu0 %v4215, 64
    %v4225 = vpop.permute.xlu0 %4224
    %4226 = vrot.lane.b32.xlu0 %v4216, 64
    %v4227 = vpop.permute.xlu0 %4226
    %4228 = vrot.lane.b32.xlu0 %v4217, 64
    %v4229 = vpop.permute.xlu0 %4228
    %v4234 = vsel %vm430, %v4223, 0.0
    %4235 = vadd.xlane.f32.xlu0 %v4234
    %v4236 = vpop.xlane.xlu0 %4235
    %v4237 = vsel %vm430, %v4225, 0.0
    %4238 = vadd.xlane.f32.xlu0 %v4237
    %v4239 = vpop.xlane.xlu0 %4238
    %v4240 = vsel %vm430, %v4227, 0.0
    %4241 = vadd.xlane.f32.xlu0 %v4240
    %v4242 = vpop.xlane.xlu0 %4241
    %v4243 = vsel %vm430, %v4229, 0.0
    %4244 = vadd.xlane.f32.xlu0 %v4243
    %v4245 = vpop.xlane.xlu0 %4244
    %v4250 = vlaneseq
    %v4251 = vshrl.u32 %v4250, 7
    %v4252 = vsub.s32 %v448, %v4251
    %v4253 = vrot.slane %v4236, %v4252
    %v4254 = vlaneseq
    %v4255 = vshrl.u32 %v4254, 7
    %v4256 = vsub.s32 %v448, %v4255
    %v4257 = vrot.slane %v4239, %v4256
    %v4258 = vlaneseq
    %v4259 = vshrl.u32 %v4258, 7
    %v4260 = vsub.s32 %v448, %v4259
    %v4261 = vrot.slane %v4242, %v4260
    %v4262 = vlaneseq
    %v4263 = vshrl.u32 %v4262, 7
    %v4264 = vsub.s32 %v448, %v4263
    %v4265 = vrot.slane %v4245, %v4264
    %v4266 = vsel %vm465, %v4257, %v4253
    %v4267 = vsel %vm467, %v4261, %v4266
    %v4268 = vsel %vm469, %v4265, %v4267
    %v4270 = vsel %vm472, %v4268, -inf
    %4271 = vmax.xlane.f32.xlu0 %v4270
    %v4272 = vpop.xlane.xlu0 %4271
    %v4274 = vlaneseq
    %v4275 = vshrl.u32 %v4274, 7
    %v4276 = vsub.s32 0, %v4275
    %v4277 = vrot.slane %v4272, %v4276
    %v4278 = vlaneseq
    %v4279 = vshrl.u32 %v4278, 7
    %v4280 = vsub.s32 1, %v4279
    %v4281 = vrot.slane %v4272, %v4280
    %v4282 = vlaneseq
    %v4283 = vshrl.u32 %v4282, 7
    %v4284 = vsub.s32 2, %v4283
    %v4285 = vrot.slane %v4272, %v4284
    %v4286 = vlaneseq
    %v4287 = vshrl.u32 %v4286, 7
    %v4288 = vsub.s32 3, %v4287
    %v4289 = vrot.slane %v4272, %v4288
    %v4294 = vsub.f32 %v4236, %v4277
    %v4295 = vsub.f32 %v4239, %v4281
    %v4296 = vsub.f32 %v4242, %v4285
    %v4297 = vsub.f32 %v4245, %v4289
    %v4298 = vmul.f32 %v4294, 1.442695
    %v4299 = vpow.pop %v4298
    %v4300 = vmul.f32 %v4295, 1.442695
    %v4301 = vpow.pop %v4300
    %v4302 = vmul.f32 %v4296, 1.442695
    %v4303 = vpow.pop %v4302
    %v4304 = vmul.f32 %v4297, 1.442695
    %v4305 = vpow.pop %v4304
    %4310 = vset.pattern.permute.xlu0 0
    %4311 = vperm.xlu0 %4310, %v4299
    %v4312 = vpop.permute.xlu0 %4311
    %4313 = vset.pattern.permute.xlu0 0
    %4314 = vperm.xlu0 %4313, %v4301
    %v4315 = vpop.permute.xlu0 %4314
    %4316 = vset.pattern.permute.xlu0 0
    %4317 = vperm.xlu0 %4316, %v4303
    %v4318 = vpop.permute.xlu0 %4317
    %4319 = vset.pattern.permute.xlu0 0
    %4320 = vperm.xlu0 %4319, %v4305
    %v4321 = vpop.permute.xlu0 %4320
    %v4322 = vlaneseq
    %v4323 = vshrl.u32 %v4322, 7
    %v4324 = vsub.s32 %v448, %v4323
    %v4325 = vrot.slane %v4312, %v4324
    %v4326 = vlaneseq
    %v4327 = vshrl.u32 %v4326, 7
    %v4328 = vsub.s32 %v448, %v4327
    %v4329 = vrot.slane %v4315, %v4328
    %v4330 = vlaneseq
    %v4331 = vshrl.u32 %v4330, 7
    %v4332 = vsub.s32 %v448, %v4331
    %v4333 = vrot.slane %v4318, %v4332
    %v4334 = vlaneseq
    %v4335 = vshrl.u32 %v4334, 7
    %v4336 = vsub.s32 %v448, %v4335
    %v4337 = vrot.slane %v4321, %v4336
    %v4338 = vsel %vm465, %v4329, %v4325
    %v4339 = vsel %vm467, %v4333, %v4338
    %v4340 = vsel %vm469, %v4337, %v4339
    %v4342 = vsel %vm472, %v4340, 0.0
    %4343 = vadd.xlane.f32.xlu0 %v4342
    %v4344 = vpop.xlane.xlu0 %4343
    %v4345 = vrcp.pop %v4344
    %v4346 = vmul.f32 1.0, %v4345
    %v4348 = vlaneseq
    %v4349 = vshrl.u32 %v4348, 7
    %v4350 = vsub.s32 0, %v4349
    %v4351 = vrot.slane %v4346, %v4350
    %v4352 = vlaneseq
    %v4353 = vshrl.u32 %v4352, 7
    %v4354 = vsub.s32 1, %v4353
    %v4355 = vrot.slane %v4346, %v4354
    %v4356 = vlaneseq
    %v4357 = vshrl.u32 %v4356, 7
    %v4358 = vsub.s32 2, %v4357
    %v4359 = vrot.slane %v4346, %v4358
    %v4360 = vlaneseq
    %v4361 = vshrl.u32 %v4360, 7
    %v4362 = vsub.s32 3, %v4361
    %v4363 = vrot.slane %v4346, %v4362
    %v4368 = vmul.f32 %v4299, %v4351
    %v4369 = vmul.f32 %v4301, %v4355
    %v4370 = vmul.f32 %v4303, %v4359
    %v4371 = vmul.f32 %v4305, %v4363
    %4373 = vset.pattern.permute.xlu0 0
    %4374 = vperm.xlu0 %4373, %v4368
    %v4375 = vpop.permute.xlu0 %4374
    %4378 = vset.pattern.permute.xlu0 0
    %4379 = vperm.xlu0 %4378, %v4369
    %v4380 = vpop.permute.xlu0 %4379
    %4383 = vset.pattern.permute.xlu0 0
    %4384 = vperm.xlu0 %4383, %v4370
    %v4385 = vpop.permute.xlu0 %4384
    %4388 = vset.pattern.permute.xlu0 0
    %4389 = vperm.xlu0 %4388, %v4371
    %v4390 = vpop.permute.xlu0 %4389
    %v4392 = vmul.f32 %v4375, %v79
    %v4393 = vmul.f32 %v4380, %v80
    %v4394 = vmul.f32 %v4385, %v81
    %v4395 = vmul.f32 %v4390, %v82
    %v4396 = vsel %vm113, %v4392, 0.0
    %v4397 = vrot.slane %v4396, 4
    %v4398 = vadd.f32 %v4396, %v4397
    %v4399 = vrot.slane %v4398, 2
    %v4400 = vadd.f32 %v4398, %v4399
    %v4401 = vrot.slane %v4400, 1
    %v4402 = vadd.f32 %v4400, %v4401
    %v4403 = vsel %vm113, %v4393, 0.0
    %v4404 = vrot.slane %v4403, 4
    %v4405 = vadd.f32 %v4403, %v4404
    %v4406 = vrot.slane %v4405, 2
    %v4407 = vadd.f32 %v4405, %v4406
    %v4408 = vrot.slane %v4407, 1
    %v4409 = vadd.f32 %v4407, %v4408
    %v4410 = vsel %vm113, %v4394, 0.0
    %v4411 = vrot.slane %v4410, 4
    %v4412 = vadd.f32 %v4410, %v4411
    %v4413 = vrot.slane %v4412, 2
    %v4414 = vadd.f32 %v4412, %v4413
    %v4415 = vrot.slane %v4414, 1
    %v4416 = vadd.f32 %v4414, %v4415
    %v4417 = vsel %vm113, %v4395, 0.0
    %v4418 = vrot.slane %v4417, 4
    %v4419 = vadd.f32 %v4417, %v4418
    %v4420 = vrot.slane %v4419, 2
    %v4421 = vadd.f32 %v4419, %v4420
    %v4422 = vrot.slane %v4421, 1
    %v4423 = vadd.f32 %v4421, %v4422
    %v4428 = vsel %vm465, %v4409, %v4402
    %v4429 = vsel %vm467, %v4416, %v4428
    %v4430 = vsel %vm469, %v4423, %v4429
    %4432 = vrot.lane.b32.xlu0 %v3997, 80
    %v4433 = vpop.permute.xlu0 %4432
    %v4435 = vsel %vm113, %v4430, %v4433
    %v4437 = vsel %vm636, %v4435, 0
    %4439 = vmatprep.subr.mxu0 0.0
    %4440 = vmatpush1.msra.mxu0 0.0
    %4441 = vmatprep.subr.mxu0 0.0
    %4442 = vmatpush1.msra.mxu0 0.0
    %4443 = vmatprep.subr.mxu0 0.0
    %4444 = vmatpush1.msra.mxu0 0.0
    %4445 = vmatprep.subr.mxu0 0.0
    %4446 = vmatpush1.msra.mxu0 0.0
    %4447 = vmatprep.subr.mxu0 0.0
    %4448 = vmatpush1.msra.mxu0 0.0
    %4449 = vmatprep.subr.mxu0 0.0
    %4450 = vmatpush1.msra.mxu0 0.0
    %4451 = vmatprep.subr.mxu0 0.0
    %4452 = vmatpush1.msra.mxu0 0.0
    %4453 = vmatprep.subr.mxu0 0.0
    %4454 = vmatpush1.msra.mxu0 0.0
    %4455 = vmatprep.subr.mxu0 0.0
    %4456 = vmatpush1.msra.mxu0 0.0
    %4457 = vmatprep.subr.mxu0 0.0
    %4458 = vmatpush1.msra.mxu0 0.0
    %4459 = vmatprep.subr.mxu0 0.0
    %4460 = vmatpush1.msra.mxu0 %v90
    %4461 = vmatprep.subr.mxu0 0.0
    %4462 = vmatpush1.msra.mxu0 %v89
    %4463 = vmatprep.subr.mxu0 0.0
    %4464 = vmatpush1.msra.mxu0 %v88
    %4465 = vmatprep.subr.mxu0 0.0
    %4466 = vmatpush1.msra.mxu0 %v87
    %4467 = vmatprep.subr.mxu0 0.0
    %4468 = vmatpush1.msra.mxu0 %v86
    %4469 = vmatprep.subr.mxu0 0.0
    %4470 = vmatpush1.msra.mxu0 %v85
    %4471 = vmatprep.subr.mxu0 0.0
    %4472 = vmatpush2.msra.mxu0 0.0
    %4473 = vmatprep.subr.mxu0 0.0
    %4474 = vmatpush2.msra.mxu0 0.0
    %4475 = vmatprep.subr.mxu0 0.0
    %4476 = vmatpush2.msra.mxu0 0.0
    %4477 = vmatprep.subr.mxu0 0.0
    %4478 = vmatpush2.msra.mxu0 0.0
    %4479 = vmatprep.subr.mxu0 0.0
    %4480 = vmatpush2.msra.mxu0 0.0
    %4481 = vmatprep.subr.mxu0 0.0
    %4482 = vmatpush2.msra.mxu0 0.0
    %4483 = vmatprep.subr.mxu0 0.0
    %4484 = vmatpush2.msra.mxu0 0.0
    %4485 = vmatprep.subr.mxu0 0.0
    %4486 = vmatpush2.msra.mxu0 0.0
    %4487 = vmatprep.subr.mxu0 0.0
    %4488 = vmatpush2.msra.mxu0 0.0
    %4489 = vmatprep.subr.mxu0 0.0
    %4490 = vmatpush2.msra.mxu0 0.0
    %4491 = vmatprep.subr.mxu0 0.0
    %4492 = vmatpush2.msra.mxu0 0.0
    %4493 = vmatprep.subr.mxu0 0.0
    %4494 = vmatpush2.msra.mxu0 0.0
    %4495 = vmatprep.subr.mxu0 0.0
    %4496 = vmatpush2.msra.mxu0 0.0
    %4497 = vmatprep.subr.mxu0 0.0
    %4498 = vmatpush2.msra.mxu0 0.0
    %4499 = vmatprep.subr.mxu0 0.0
    %4500 = vmatpush2.msra.mxu0 0.0
    %4501 = vmatprep.subr.mxu0 0.0
    %4502 = vmatpush2.msra.mxu0 0.0
    %4503 = vmatprep.mubr.f32.mxu0 0.0
    %4504 = vmatmul.mubr.f32.gmra.mxu0 %v4437
    %v4505 = vpop.f32.mrf.mxu0
    %v4506 = vadd.f32 %v104, %v4505
    %v4507 = vpop.f32.mrf.mxu0
    %4508 = vdwg.mxu0
    %v4509 = vxor.u32 %v4506, 2147483648
    %v4510 = vmul.f32 %v4509, 1.442695
    %v4511 = vpow.pop %v4510
    %v4512 = vadd.f32 %v4511, 1.0
    %v4513 = vrcp.pop %v4512
    %v4514 = vmul.f32 1.0, %v4513
    %v4515 = vtanh.pop %v4506
    %v4516 = vmul.f32 %v4514, %v3991
    %4518 = vrot.lane.b32.xlu0 %v4515, 32
    %v4519 = vpop.permute.xlu0 %4518
    %v4521 = vmul.f32 %v4514, %v4519
    %4523 = vrot.lane.b32.xlu0 %v4521, 32
    %v4524 = vpop.permute.xlu0 %4523
    %v4526 = vadd.f32 %v4516, %v4524
    %v4527 = vtanh.pop %v4526
    %4529 = vrot.lane.b32.xlu0 %v4527, 32
    %v4530 = vpop.permute.xlu0 %4529
    %v4532 = vmul.f32 %v4514, %v4530
    %4534 = vrot.lane.b32.xlu0 %v4532, 64
    %v4535 = vpop.permute.xlu0 %4534
    %4538 = vrot.lane.b32.xlu0 %v4099, 96
    %v4539 = vpop.permute.xlu0 %4538
    %v4541 = vsel %vm430, %v4535, %v4539
    %v4543 = vsel %vm739, %v4541, 0
    %4545 = vmatprep.subr.mxu0 0.0
    %4546 = vmatpush1.msra.mxu0 0.0
    %4547 = vmatprep.subr.mxu0 0.0
    %4548 = vmatpush1.msra.mxu0 0.0
    %4549 = vmatprep.subr.mxu0 0.0
    %4550 = vmatpush1.msra.mxu0 0.0
    %4551 = vmatprep.subr.mxu0 0.0
    %4552 = vmatpush1.msra.mxu0 0.0
    %4553 = vmatprep.subr.mxu0 0.0
    %4554 = vmatpush1.msra.mxu0 0.0
    %4555 = vmatprep.subr.mxu0 0.0
    %4556 = vmatpush1.msra.mxu0 0.0
    %4557 = vmatprep.subr.mxu0 0.0
    %4558 = vmatpush1.msra.mxu0 0.0
    %4559 = vmatprep.subr.mxu0 0.0
    %4560 = vmatpush1.msra.mxu0 0.0
    %4561 = vmatprep.subr.mxu0 0.0
    %4562 = vmatpush1.msra.mxu0 %v98
    %4563 = vmatprep.subr.mxu0 0.0
    %4564 = vmatpush1.msra.mxu0 %v97
    %4565 = vmatprep.subr.mxu0 0.0
    %4566 = vmatpush1.msra.mxu0 %v96
    %4567 = vmatprep.subr.mxu0 0.0
    %4568 = vmatpush1.msra.mxu0 %v95
    %4569 = vmatprep.subr.mxu0 0.0
    %4570 = vmatpush1.msra.mxu0 %v94
    %4571 = vmatprep.subr.mxu0 0.0
    %4572 = vmatpush1.msra.mxu0 %v93
    %4573 = vmatprep.subr.mxu0 0.0
    %4574 = vmatpush1.msra.mxu0 %v92
    %4575 = vmatprep.subr.mxu0 0.0
    %4576 = vmatpush1.msra.mxu0 %v91
    %4577 = vmatprep.subr.mxu0 0.0
    %4578 = vmatpush2.msra.mxu0 0.0
    %4579 = vmatprep.subr.mxu0 0.0
    %4580 = vmatpush2.msra.mxu0 0.0
    %4581 = vmatprep.subr.mxu0 0.0
    %4582 = vmatpush2.msra.mxu0 0.0
    %4583 = vmatprep.subr.mxu0 0.0
    %4584 = vmatpush2.msra.mxu0 0.0
    %4585 = vmatprep.subr.mxu0 0.0
    %4586 = vmatpush2.msra.mxu0 0.0
    %4587 = vmatprep.subr.mxu0 0.0
    %4588 = vmatpush2.msra.mxu0 0.0
    %4589 = vmatprep.subr.mxu0 0.0
    %4590 = vmatpush2.msra.mxu0 0.0
    %4591 = vmatprep.subr.mxu0 0.0
    %4592 = vmatpush2.msra.mxu0 0.0
    %4593 = vmatprep.subr.mxu0 0.0
    %4594 = vmatpush2.msra.mxu0 0.0
    %4595 = vmatprep.subr.mxu0 0.0
    %4596 = vmatpush2.msra.mxu0 0.0
    %4597 = vmatprep.subr.mxu0 0.0
    %4598 = vmatpush2.msra.mxu0 0.0
    %4599 = vmatprep.subr.mxu0 0.0
    %4600 = vmatpush2.msra.mxu0 0.0
    %4601 = vmatprep.subr.mxu0 0.0
    %4602 = vmatpush2.msra.mxu0 0.0
    %4603 = vmatprep.subr.mxu0 0.0
    %4604 = vmatpush2.msra.mxu0 0.0
    %4605 = vmatprep.subr.mxu0 0.0
    %4606 = vmatpush2.msra.mxu0 0.0
    %4607 = vmatprep.subr.mxu0 0.0
    %4608 = vmatpush2.msra.mxu0 0.0
    %4609 = vmatprep.mubr.f32.mxu0 0.0
    %4610 = vmatmul.mubr.f32.gmra.mxu0 %v4543
    %v4611 = vpop.f32.mrf.mxu0
    %v4612 = vadd.f32 %v111, %v4611
    %v4613 = vpop.f32.mrf.mxu0
    %4614 = vdwg.mxu0
    %v4615 = vxor.u32 %v4612, 2147483648
    %v4616 = vmul.f32 %v4615, 1.442695
    %v4617 = vpow.pop %v4616
    %v4618 = vadd.f32 %v4617, 1.0
    %v4619 = vrcp.pop %v4618
    %v4620 = vmul.f32 1.0, %v4619
    %v4621 = vtanh.pop %v4612
    %v4622 = vmul.f32 %v4620, %v4093
    %4624 = vrot.lane.b32.xlu0 %v4621, 32
    %v4625 = vpop.permute.xlu0 %4624
    %v4627 = vmul.f32 %v4620, %v4625
    %4629 = vrot.lane.b32.xlu0 %v4627, 32
    %v4630 = vpop.permute.xlu0 %4629
    %v4632 = vadd.f32 %v4622, %v4630
    %v4633 = vtanh.pop %v4632
    %4635 = vrot.lane.b32.xlu0 %v4633, 32
    %v4636 = vpop.permute.xlu0 %4635
    %v4638 = vmul.f32 %v4620, %v4636
    %4640 = vrot.lane.b32.xlu0 %v4638, 32
    %v4641 = vpop.permute.xlu0 %4640
    %4643 = vst.msk [vmem:[#allocation10 + $0x4] sm:$0xf] %vm2480, %v4641
    // Predicated region
    $region42: #{tpu_custom_call.1} parent=1 // pred_check
      _
    $region43: #{tpu_custom_call.1} parent=1 // pred_check_branch
      %4645 = sbr.rel (0) target = $region45
    $region44: #{tpu_custom_call.1} parent=1 // pred_region
      %s4647 = ssub.s32 128, 128
      %4648 = vsyncadd [#allocation4], %s4647
      %s4650 = sshll.u32 [#allocation10], 4
      %s4651 = int_to_ptr.vmem [resolvable:$true] %s4650
      %4653 = dma.vmem_to_hbm [thread:$0]  %s4651, 128, %s6, [#allocation4]
    $region45: #{tpu_custom_call.1} parent=1 // pred_fallthru
      _
    // Predicated region
    $region46: #{tpu_custom_call.1} parent=1 // pred_check
      _
    $region47: #{tpu_custom_call.1} parent=1 // pred_check_branch
      %4655 = sbr.rel (0) target = $region49
    $region48: #{tpu_custom_call.1} parent=1 // pred_region
      %4656 = dma.done [#allocation4], 128
    $region49: #{tpu_custom_call.1} parent=1 // pred_fallthru
      _
    %4657 = vsyncpa [#allocation3], 1
    %4658 = vsyncpa [#allocation6], 1
    %4659 = vsyncpa [#allocation9], 1
    %4660 = vsyncpa [#allocation4], 1

</llo_original>
